<compile_context>
chip_gen: v7x
topology: tpu7x:2x2x1
jax: 0.10.0
libtpu: 0.0.40
codegen_flags: <defaults>
</compile_context>

<pallas_src>
import math
import jax
import jax.numpy as jnp
from jax.experimental import pallas as pl
from jax.experimental.pallas import tpu as pltpu

PAD_IDX = 0
NEG_BIAS = -1e9   # finite "masked key" bias: guards fully-padded rows against NaN


def _vmem_limit_bytes():
    """Per-generation scoped VMEM limit: ~75% of physical, capped at 100 MiB.

    v7x has only 64 MiB per TensorCore (-> ~48 MiB limit, headroom for the
    compiler); v5e/v6e have 128 MiB (-> ~96 MiB, room for larger batch blocks).
    """
    phys = 64 * 1024 * 1024  # conservative fallback (v7x per-TC VMEM)
    try:
        phys = int(getattr(pltpu.get_tpu_info(), "vmem_capacity_bytes", phys))
    except Exception:
        pass
    return min((phys * 3) // 4, 100 * 1024 * 1024)


def _pick_batch_block(B, cap=4):
    """Largest divisor of B that is <= cap (amortizes per-layer weight DMA)."""
    for bt in range(min(B, cap), 0, -1):
        if B % bt == 0:
            return bt
    return 1


def make_decoder_call(B, S, E, hidden, H, L, k1, p1, k2, p2, Bt):
    """One pallas_call running all L FFT blocks; grid = (batch blocks, layer)."""
    assert B % Bt == 0 and E % H == 0
    hd = E // H
    scale = 1.0 / math.sqrt(hd)

    def kernel(x_ref, kb_ref,
               wqkv_ref, bqkv_ref, wo_ref, bo_ref, g1_ref, be1_ref,
               w1_ref, bc1_ref, w2_ref, bc2_ref, g2_ref, be2_ref,
               o_ref, pv_sc, xp_sc, hp_sc):
        layer = pl.program_id(1)

        @pl.when(layer == 0)
        def _init():
            # Activation becomes resident in the output VMEM block for the whole
            # layer loop of this batch block (no HBM round trip between layers).
            o_ref[...] = x_ref[...]
            # Zero the conv 'same'-padding rows of the persistent bf16 scratches
            # once per batch block; payload rows are rewritten every layer.
            for bi in range(Bt):
                if p1 > 0:
                    xp_sc[bi, pl.ds(0, p1), :] = jnp.zeros((p1, E), jnp.bfloat16)
                    xp_sc[bi, pl.ds(p1 + S, p1), :] = jnp.zeros((p1, E), jnp.bfloat16)
                if p2 > 0:
                    hp_sc[bi, pl.ds(0, p2), :] = jnp.zeros((p2, hidden), jnp.bfloat16)
                    hp_sc[bi, pl.ds(p2 + S, p2), :] = jnp.zeros((p2, hidden), jnp.bfloat16)

        def layernorm(y, g_ref, b_ref):
            mu = jnp.mean(y, axis=-1, keepdims=True)
            var = jnp.mean(jnp.square(y - mu), axis=-1, keepdims=True)
            return (y - mu) * jax.lax.rsqrt(var + 1e-5) * g_ref[0] + b_ref[0]

        wqkv = wqkv_ref[0]        # (E, 3E) bf16, fused QKV projection
        wo = wo_ref[0]            # (E, E)  bf16, full out-projection (one wide matmul)

        # TODO(synk): for small B on v7x, shard heads / the S axis across the two
        # TensorCores (core_map) instead of relying on the batch-block axis alone.
        for bi in range(Bt):
            x = o_ref[bi]                                     # (S, E) f32, resident

            # ---- nn.MultiheadAttention (batch_first, eval -> no dropout) ----
            xb = x.astype(jnp.bfloat16)
            qkv = jnp.dot(xb, wqkv, preferred_element_type=jnp.float32) + bqkv_ref[0]
            # TODO(synk): for long S, tile keys with an online (flash-style) softmax
            # and use scalar-prefetched sequence lengths to skip all-pad key tiles.
            for h in range(H):
                qh = qkv[:, h * hd:(h + 1) * hd].astype(jnp.bfloat16)
                kh = qkv[:, E + h * hd:E + (h + 1) * hd].astype(jnp.bfloat16)
                vh = qkv[:, 2 * E + h * hd:2 * E + (h + 1) * hd].astype(jnp.bfloat16)
                s = jax.lax.dot_general(qh, kh, (((1,), (1,)), ((), ())),
                                        preferred_element_type=jnp.float32) * scale
                s = s + kb_ref[bi, h]                         # (1,S) key bias, bcast over queries
                m = jnp.max(s, axis=-1, keepdims=True)
                p = jnp.exp(s - m)
                p = p * pl.reciprocal(jnp.sum(p, axis=-1, keepdims=True), approx=True)
                pv = jnp.dot(p.astype(jnp.bfloat16), vh,
                             preferred_element_type=jnp.float32)
                # Concatenate heads into a bf16 VMEM scratch: bounds the (S,S)
                # temporaries' live range and feeds one full-width out-projection.
                pv_sc[bi, :, pl.ds(h * hd, hd)] = pv.astype(jnp.bfloat16)
            attn = jnp.dot(pv_sc[bi], wo, preferred_element_type=jnp.float32) + bo_ref[0]
            x1 = x + layernorm(attn, g1_ref, be1_ref)         # x + norm(mha(x))

            # ---- conv FFN: Conv1d(E->hidden,k1,'same') -> ReLU -> Conv1d(hidden->E,k2,'same') -> LN
            # k-tap shifted matmuls over the zero-padded bf16 VMEM scratches.
            # TODO(synk): on v5e, replace the k sublane-offset reads with one slab
            # load + pltpu.roll per tap (XLU slot) to relieve the load path.
            xp_sc[bi, pl.ds(p1, S), :] = x1.astype(jnp.bfloat16)
            h1 = jnp.dot(xp_sc[bi, pl.ds(0, S), :], w1_ref[0, 0],
                         preferred_element_type=jnp.float32)
            for kk in range(1, k1):
                h1 = h1 + jnp.dot(xp_sc[bi, pl.ds(kk, S), :], w1_ref[0, kk],
                                  preferred_element_type=jnp.float32)
            h1 = jnp.maximum(h1 + bc1_ref[0], 0.0)            # bias + ReLU
            hp_sc[bi, pl.ds(p2, S), :] = h1.astype(jnp.bfloat16)
            h2 = jnp.dot(hp_sc[bi, pl.ds(0, S), :], w2_ref[0, 0],
                         preferred_element_type=jnp.float32)
            for kk in range(1, k2):
                h2 = h2 + jnp.dot(hp_sc[bi, pl.ds(kk, S), :], w2_ref[0, kk],
                                  preferred_element_type=jnp.float32)
            h2 = h2 + bc2_ref[0]
            x2 = x1 + layernorm(h2, g2_ref, be2_ref)          # x + conv(x)

            o_ref[bi] = x2                                    # resident; written back after last layer

    def wspec(shape):
        nd = len(shape)
        return pl.BlockSpec((1,) + tuple(shape), lambda b, l, nd=nd: (l,) + (0,) * nd)

    in_specs = [
        pl.BlockSpec((Bt, S, E), lambda b, l: (b, 0, 0)),         # x (f32)
        pl.BlockSpec((Bt, H, 1, S), lambda b, l: (b, 0, 0, 0)),   # key-padding bias (f32)
        wspec((E, 3 * E)),                                        # wqkv (bf16)
        wspec((1, 3 * E)),                                        # bqkv
        wspec((E, E)),                                            # wo (bf16, full matrix)
        wspec((1, E)),                                            # bo
        wspec((1, E)), wspec((1, E)),                             # LN1 gamma / beta
        wspec((k1, E, hidden)), wspec((1, hidden)),               # conv1 w (bf16) / b
        wspec((k2, hidden, E)), wspec((1, E)),                    # conv2 w (bf16) / b
        wspec((1, E)), wspec((1, E)),                             # LN2 gamma / beta
    ]

    flops_layer = (2 * S * E * 3 * E            # fused QKV projection
                   + 4 * S * S * E              # QK^T + P@V over all heads
                   + 2 * S * E * E              # output projection
                   + 2 * S * (k1 * E * hidden + k2 * hidden * E))   # conv FFN
    transc_layer = H * S * S + H * S + 4 * S
    weight_bytes = (2 * (3 * E * E + E * E + k1 * E * hidden + k2 * hidden * E)
                    + 4 * (3 * E + 6 * E + hidden))
    cost = pl.CostEstimate(
        flops=B * L * flops_layer,
        transcendentals=B * L * transc_layer,
        # weights are streamed once per (batch block, layer) -> amortized by Bt
        bytes_accessed=(B // Bt) * L * weight_bytes + 2 * B * S * E * 4 + B * H * S * 4)

    return pl.pallas_call(
        kernel,
        out_shape=jax.ShapeDtypeStruct((B, S, E), jnp.float32),
        grid_spec=pltpu.PrefetchScalarGridSpec(
            num_scalar_prefetch=0,
            grid=(B // Bt, L),
            in_specs=in_specs,
            out_specs=pl.BlockSpec((Bt, S, E), lambda b, l: (b, 0, 0)),
            scratch_shapes=[pltpu.VMEM((Bt, S, E), jnp.bfloat16),            # PV concat
                            pltpu.VMEM((Bt, S + 2 * p1, E), jnp.bfloat16),   # conv1 pad
                            pltpu.VMEM((Bt, S + 2 * p2, hidden), jnp.bfloat16)]),  # conv2 pad
        compiler_params=pltpu.CompilerParams(
            dimension_semantics=("parallel", "arbitrary"),
            vmem_limit_bytes=_vmem_limit_bytes()),
        cost_estimate=cost,
    )


def stack_layer_params(layer_params_list):
    """Stack per-layer params along a layer axis, fuse QKV, keep Wo full-width,
    and cast matmul weights to bf16 (biases / LN params stay f32)."""
    cols = [[] for _ in range(12)]
    for (wq, wk, wv, bq, bk, bv, wo, bo, g1, be1,
         w1, bc1, w2, bc2, g2, be2) in layer_params_list:
        cols[0].append(jnp.concatenate([wq, wk, wv], axis=1).astype(jnp.bfloat16))  # (E,3E)
        cols[1].append(jnp.concatenate([bq, bk, bv], axis=1))                       # (1,3E)
        cols[2].append(wo.astype(jnp.bfloat16))                                     # (E,E)
        cols[3].append(bo)
        cols[4].append(g1)
        cols[5].append(be1)
        cols[6].append(w1.astype(jnp.bfloat16))                                     # (k1,E,hidden)
        cols[7].append(bc1)
        cols[8].append(w2.astype(jnp.bfloat16))                                     # (k2,hidden,E)
        cols[9].append(bc2)
        cols[10].append(g2)
        cols[11].append(be2)
    return tuple(jnp.stack(c, axis=0) for c in cols)


def decoder_forward(enc_out, enc_pos, pos_table, layer_params_list, *,
                    num_heads, hidden, k1, p1, k2, p2, batch_block=None):
    B, S, E = enc_out.shape
    H = num_heads
    L = len(layer_params_list)
    assert k1 == 2 * p1 + 1 and k2 == 2 * p2 + 1, "residual add needs 'same' convs"
    Bt = batch_block if batch_block is not None else _pick_batch_block(B)

    # attn_mask = enc_pos.eq(PAD).unsqueeze(1).expand(-1,S,-1).repeat(H,1,1):
    # nn.MultiheadAttention reads row i of the (B*H,S,S) mask as (b=i//H, h=i%H),
    # while .repeat makes row i == base[i % B]; reproduce that exact indexing,
    # but only along the key axis (O(S) per (b,h) instead of the O(S^2) mask).
    # NEG_BIAS is large-but-finite so fully-padded rows give uniform attention
    # instead of NaN (PyTorch would NaN there).
    pad = (enc_pos == PAD_IDX)
    key_bias = jnp.where(pad, jnp.float32(NEG_BIAS), jnp.float32(0.0))      # (B, S)
    idx = (jnp.arange(B)[:, None] * H + jnp.arange(H)[None, :]) % B         # (B, H)
    key_bias = key_bias[idx][:, :, None, :]                                 # (B, H, 1, S)

    x = enc_out + pos_table[enc_pos]   # positional embedding lookup (glue; gather)

    stacked = stack_layer_params(layer_params_list)
    call = make_decoder_call(B, S, E, hidden, H, L, k1, p1, k2, p2, Bt)
    return call(x.astype(jnp.float32), key_bias, *stacked)


def decoder_reference(enc_out, enc_pos, pos_table, layer_params_list, *,
                      num_heads, hidden, k1, p1, k2, p2):
    """Pure-jnp reference mimicking the kernel's bf16 matmul inputs / f32 accum."""
    B, S, E = enc_out.shape
    H = num_heads
    hd = E // H
    scale = 1.0 / math.sqrt(hd)
    bf = lambda a: a.astype(jnp.bfloat16)

    def mm(a, b):
        return jnp.dot(bf(a), bf(b), preferred_element_type=jnp.float32)

    def ln(y, g, b):
        mu = jnp.mean(y, -1, keepdims=True)
        var = jnp.mean(jnp.square(y - mu), -1, keepdims=True)
        return (y - mu) * jax.lax.rsqrt(var + 1e-5) * g + b

    pad = (enc_pos == PAD_IDX)
    key_bias = jnp.where(pad, jnp.float32(NEG_BIAS), jnp.float32(0.0))
    idx = (jnp.arange(B)[:, None] * H + jnp.arange(H)[None, :]) % B
    kb = key_bias[idx]                                    # (B, H, S)

    x = enc_out + pos_table[enc_pos]
    for (wq, wk, wv, bq, bk, bv, wo, bo, g1, be1,
         w1, bc1, w2, bc2, g2, be2) in layer_params_list:
        new_x = []
        for bi in range(B):
            xb = x[bi]
            q = mm(xb, wq) + bq
            k = mm(xb, wk) + bk
            v = mm(xb, wv) + bv
            pv_heads = []
            for h in range(H):
                lo, hi = h * hd, (h + 1) * hd
                s = mm(q[:, lo:hi], k[:, lo:hi].T) * scale + kb[bi, h][None, :]
                s = s - jnp.max(s, -1, keepdims=True)
                p = jnp.exp(s)
                p = p / jnp.sum(p, -1, keepdims=True)
                pv_heads.append(mm(p, v[:, lo:hi]))
            attn = mm(jnp.concatenate(pv_heads, axis=-1), wo) + bo
            x1 = xb + ln(attn, g1, be1)
            xp = (jnp.concatenate([jnp.zeros((p1, E), jnp.float32), x1,
                                   jnp.zeros((p1, E), jnp.float32)], axis=0)
                  if p1 > 0 else x1)
            h1 = jnp.zeros((S, hidden), jnp.float32)
            for kk in range(k1):
                h1 = h1 + mm(xp[kk:kk + S, :], w1[kk])
            h1 = jnp.maximum(h1 + bc1, 0.0)
            hp = (jnp.concatenate([jnp.zeros((p2, hidden), jnp.float32), h1,
                                   jnp.zeros((p2, hidden), jnp.float32)], axis=0)
                  if p2 > 0 else h1)
            h2 = jnp.zeros((S, E), jnp.float32)
            for kk in range(k2):
                h2 = h2 + mm(hp[kk:kk + S, :], w2[kk])
            h2 = h2 + bc2
            new_x.append(x1 + ln(h2, g2, be2))
        x = jnp.stack(new_x, axis=0)
    return x


def init_layer_params(key, E, hidden, k1, k2):
    ks = jax.random.split(key, 12)
    s = 0.05
    wq = jax.random.normal(ks[0], (E, E), jnp.float32) * s    # = in_proj_weight[:E].T
    wk = jax.random.normal(ks[1], (E, E), jnp.float32) * s
    wv = jax.random.normal(ks[2], (E, E), jnp.float32) * s
    bq = jax.random.normal(ks[3], (1, E), jnp.float32) * s
    bk = jax.random.normal(ks[4], (1, E), jnp.float32) * s
    bv = jax.random.normal(ks[5], (1, E), jnp.float32) * s
    wo = jax.random.normal(ks[6], (E, E), jnp.float32) * s    # = out_proj.weight.T
    bo = jax.random.normal(ks[7], (1, E), jnp.float32) * s
    g1 = jnp.ones((1, E), jnp.float32)                        # LayerNorm after MHA
    be1 = jnp.zeros((1, E), jnp.float32)
    # conv1.weight (hidden,E,k1) re-laid as (k1, E, hidden); conv2 likewise.
    w1 = jax.random.normal(ks[8], (k1, E, hidden), jnp.float32) * s
    bc1 = jax.random.normal(ks[9], (1, hidden), jnp.float32) * s
    w2 = jax.random.normal(ks[10], (k2, hidden, E), jnp.float32) * s
    bc2 = jax.random.normal(ks[11], (1, E), jnp.float32) * s
    g2 = jnp.ones((1, E), jnp.float32)                        # LayerNorm after conv
    be2 = jnp.zeros((1, E), jnp.float32)
    return (wq, wk, wv, bq, bk, bv, wo, bo, g1, be1, w1, bc1, w2, bc2, g2, be2)


if __name__ == "__main__":
    # Small, forward-consistent shapes (real FastSpeech2: E=256, hidden=1024, S>=512).
    B, S, E = 2, 8, 32
    hidden, H, n_layers = 64, 2, 2
    max_seq_len = 16
    k1, p1, k2, p2 = 3, 1, 3, 1   # 'same' padding so residual adds line up

    key = jax.random.PRNGKey(0)
    k_enc, k_tab, k_layers = jax.random.split(key, 3)

    enc_out = jax.random.normal(k_enc, (B, S, E), jnp.float32)
    enc_pos = jnp.array([[1, 2, 3, 4, 5, 6, 7, 8],
                         [1, 2, 3, 4, 5, 0, 0, 0]], dtype=jnp.int32)

    pos_table = jax.random.normal(k_tab, (max_seq_len + 1, E), jnp.float32) * 0.05
    pos_table = pos_table.at[PAD_IDX].set(0.0)   # nn.Embedding padding_idx row is zero

    layer_keys = jax.random.split(k_layers, n_layers)
    layers = [init_layer_params(lk, E, hidden, k1, k2) for lk in layer_keys]

    out = decoder_forward(enc_out, enc_pos, pos_table, layers,
                          num_heads=H, hidden=hidden, k1=k1, p1=p1, k2=k2, p2=p2)
    out = jax.block_until_ready(out)

    ref = decoder_reference(enc_out, enc_pos, pos_table, layers,
                            num_heads=H, hidden=hidden, k1=k1, p1=p1, k2=k2, p2=p2)
    ref = jax.block_until_ready(ref)

    assert out.shape == (B, S, E)
    assert bool(jnp.all(jnp.isfinite(out)))
    assert bool(jnp.max(jnp.abs(out - ref)) < 5e-2)
    print("KERNEL_OK")
</pallas_src>

<mosaic_0001>
module attributes {stable_mosaic.version = 11 : i64} {
  func.func @kernel(%arg0: i32, %arg1: i32, %arg2: memref<2x8x32xf32, #tpu.memory_space<vmem>>, %arg3: memref<2x2x1x8xf32, #tpu.memory_space<vmem>>, %arg4: memref<1x32x96xbf16, #tpu.memory_space<vmem>>, %arg5: memref<1x1x96xf32, #tpu.memory_space<vmem>>, %arg6: memref<1x32x32xbf16, #tpu.memory_space<vmem>>, %arg7: memref<1x1x32xf32, #tpu.memory_space<vmem>>, %arg8: memref<1x1x32xf32, #tpu.memory_space<vmem>>, %arg9: memref<1x1x32xf32, #tpu.memory_space<vmem>>, %arg10: memref<1x3x32x64xbf16, #tpu.memory_space<vmem>>, %arg11: memref<1x1x64xf32, #tpu.memory_space<vmem>>, %arg12: memref<1x3x64x32xbf16, #tpu.memory_space<vmem>>, %arg13: memref<1x1x32xf32, #tpu.memory_space<vmem>>, %arg14: memref<1x1x32xf32, #tpu.memory_space<vmem>>, %arg15: memref<1x1x32xf32, #tpu.memory_space<vmem>>, %arg16: memref<2x8x32xf32, #tpu.memory_space<vmem>>, %arg17: memref<2x8x32xbf16, #tpu.memory_space<vmem>>, %arg18: memref<2x10x32xbf16, #tpu.memory_space<vmem>>, %arg19: memref<2x10x64xbf16, #tpu.memory_space<vmem>>) attributes {dimension_semantics = [#tpu.dimension_semantics<parallel>, #tpu.dimension_semantics<arbitrary>], iteration_bounds = array<i64: 1, 2>, scalar_prefetch = 0 : i64, scratch_operands = 3 : i64, tpu.core_type = #tpu.core_type<tc>, window_params = [{transform_indices = @transform_0, window_bounds = array<i64: 2, 8, 32>}, {transform_indices = @transform_1, window_bounds = array<i64: 2, 2, 1, 8>}, {transform_indices = @transform_2, window_bounds = array<i64: 1, 32, 96>}, {transform_indices = @transform_3, window_bounds = array<i64: 1, 1, 96>}, {transform_indices = @transform_4, window_bounds = array<i64: 1, 32, 32>}, {transform_indices = @transform_5, window_bounds = array<i64: 1, 1, 32>}, {transform_indices = @transform_6, window_bounds = array<i64: 1, 1, 32>}, {transform_indices = @transform_7, window_bounds = array<i64: 1, 1, 32>}, {transform_indices = @transform_8, window_bounds = array<i64: 1, 3, 32, 64>}, {transform_indices = @transform_9, window_bounds = array<i64: 1, 1, 64>}, {transform_indices = @transform_10, window_bounds = array<i64: 1, 3, 64, 32>}, {transform_indices = @transform_11, window_bounds = array<i64: 1, 1, 32>}, {transform_indices = @transform_12, window_bounds = array<i64: 1, 1, 32>}, {transform_indices = @transform_13, window_bounds = array<i64: 1, 1, 32>}, {transform_indices = @transform_14, window_bounds = array<i64: 2, 8, 32>}]} {
    %c0_i32 = arith.constant 0 : i32
    %0 = arith.cmpi eq, %arg1, %c0_i32 : i32
    %1 = arith.extui %0 : i1 to i32
    %c0_i32_0 = arith.constant 0 : i32
    %2 = arith.cmpi ne, %1, %c0_i32_0 : i32
    scf.if %2 {
      %c0_250 = arith.constant 0 : index
      %c0_251 = arith.constant 0 : index
      %c0_252 = arith.constant 0 : index
      %371 = vector.load %arg2[%c0_250, %c0_251, %c0_252] : memref<2x8x32xf32, #tpu.memory_space<vmem>>, vector<2x8x32xf32>
      %c0_253 = arith.constant 0 : index
      %c0_254 = arith.constant 0 : index
      %c0_255 = arith.constant 0 : index
      %372 = vector.load %arg16[%c0_253, %c0_254, %c0_255] : memref<2x8x32xf32, #tpu.memory_space<vmem>>, vector<2x8x32xf32>
      tpu.vector_store %arg16[%c0_253, %c0_254, %c0_255], %371 {strides = array<i32>} : memref<2x8x32xf32, #tpu.memory_space<vmem>>, vector<2x8x32xf32>,
      %cst_256 = arith.constant 0.000000e+00 : bf16
      %373 = vector.broadcast %cst_256 : bf16 to vector<1x32xbf16>
      %c0_257 = arith.constant 0 : index
      %c0_258 = arith.constant 0 : index
      %c0_259 = arith.constant 0 : index
      %374 = vector.load %arg18[%c0_257, %c0_258, %c0_259] : memref<2x10x32xbf16, #tpu.memory_space<vmem>>, vector<1x1x32xbf16>
      %375 = vector.shape_cast %374 : vector<1x1x32xbf16> to vector<1x32xbf16>
      %376 = vector.shape_cast %373 : vector<1x32xbf16> to vector<1x1x32xbf16>
      tpu.vector_store %arg18[%c0_257, %c0_258, %c0_259], %376 {strides = array<i32>} : memref<2x10x32xbf16, #tpu.memory_space<vmem>>, vector<1x1x32xbf16>,
      %cst_260 = arith.constant 0.000000e+00 : bf16
      %377 = vector.broadcast %cst_260 : bf16 to vector<1x32xbf16>
      %c0_261 = arith.constant 0 : index
      %c9 = arith.constant 9 : index
      %c0_262 = arith.constant 0 : index
      %378 = vector.load %arg18[%c0_261, %c9, %c0_262] : memref<2x10x32xbf16, #tpu.memory_space<vmem>>, vector<1x1x32xbf16>
      %379 = vector.shape_cast %378 : vector<1x1x32xbf16> to vector<1x32xbf16>
      %380 = vector.shape_cast %377 : vector<1x32xbf16> to vector<1x1x32xbf16>
      tpu.vector_store %arg18[%c0_261, %c9, %c0_262], %380 {strides = array<i32>} : memref<2x10x32xbf16, #tpu.memory_space<vmem>>, vector<1x1x32xbf16>,
      %cst_263 = arith.constant 0.000000e+00 : bf16
      %381 = vector.broadcast %cst_263 : bf16 to vector<1x64xbf16>
      %c0_264 = arith.constant 0 : index
      %c0_265 = arith.constant 0 : index
      %c0_266 = arith.constant 0 : index
      %382 = vector.load %arg19[%c0_264, %c0_265, %c0_266] : memref<2x10x64xbf16, #tpu.memory_space<vmem>>, vector<1x1x64xbf16>
      %383 = vector.shape_cast %382 : vector<1x1x64xbf16> to vector<1x64xbf16>
      %384 = vector.shape_cast %381 : vector<1x64xbf16> to vector<1x1x64xbf16>
      tpu.vector_store %arg19[%c0_264, %c0_265, %c0_266], %384 {strides = array<i32>} : memref<2x10x64xbf16, #tpu.memory_space<vmem>>, vector<1x1x64xbf16>,
      %cst_267 = arith.constant 0.000000e+00 : bf16
      %385 = vector.broadcast %cst_267 : bf16 to vector<1x64xbf16>
      %c0_268 = arith.constant 0 : index
      %c9_269 = arith.constant 9 : index
      %c0_270 = arith.constant 0 : index
      %386 = vector.load %arg19[%c0_268, %c9_269, %c0_270] : memref<2x10x64xbf16, #tpu.memory_space<vmem>>, vector<1x1x64xbf16>
      %387 = vector.shape_cast %386 : vector<1x1x64xbf16> to vector<1x64xbf16>
      %388 = vector.shape_cast %385 : vector<1x64xbf16> to vector<1x1x64xbf16>
      tpu.vector_store %arg19[%c0_268, %c9_269, %c0_270], %388 {strides = array<i32>} : memref<2x10x64xbf16, #tpu.memory_space<vmem>>, vector<1x1x64xbf16>,
      %cst_271 = arith.constant 0.000000e+00 : bf16
      %389 = vector.broadcast %cst_271 : bf16 to vector<1x32xbf16>
      %c1_272 = arith.constant 1 : index
      %c0_273 = arith.constant 0 : index
      %c0_274 = arith.constant 0 : index
      %390 = vector.load %arg18[%c1_272, %c0_273, %c0_274] : memref<2x10x32xbf16, #tpu.memory_space<vmem>>, vector<1x1x32xbf16>
      %391 = vector.shape_cast %390 : vector<1x1x32xbf16> to vector<1x32xbf16>
      %392 = vector.shape_cast %389 : vector<1x32xbf16> to vector<1x1x32xbf16>
      tpu.vector_store %arg18[%c1_272, %c0_273, %c0_274], %392 {strides = array<i32>} : memref<2x10x32xbf16, #tpu.memory_space<vmem>>, vector<1x1x32xbf16>,
      %cst_275 = arith.constant 0.000000e+00 : bf16
      %393 = vector.broadcast %cst_275 : bf16 to vector<1x32xbf16>
      %c1_276 = arith.constant 1 : index
      %c9_277 = arith.constant 9 : index
      %c0_278 = arith.constant 0 : index
      %394 = vector.load %arg18[%c1_276, %c9_277, %c0_278] : memref<2x10x32xbf16, #tpu.memory_space<vmem>>, vector<1x1x32xbf16>
      %395 = vector.shape_cast %394 : vector<1x1x32xbf16> to vector<1x32xbf16>
      %396 = vector.shape_cast %393 : vector<1x32xbf16> to vector<1x1x32xbf16>
      tpu.vector_store %arg18[%c1_276, %c9_277, %c0_278], %396 {strides = array<i32>} : memref<2x10x32xbf16, #tpu.memory_space<vmem>>, vector<1x1x32xbf16>,
      %cst_279 = arith.constant 0.000000e+00 : bf16
      %397 = vector.broadcast %cst_279 : bf16 to vector<1x64xbf16>
      %c1_280 = arith.constant 1 : index
      %c0_281 = arith.constant 0 : index
      %c0_282 = arith.constant 0 : index
      %398 = vector.load %arg19[%c1_280, %c0_281, %c0_282] : memref<2x10x64xbf16, #tpu.memory_space<vmem>>, vector<1x1x64xbf16>
      %399 = vector.shape_cast %398 : vector<1x1x64xbf16> to vector<1x64xbf16>
      %400 = vector.shape_cast %397 : vector<1x64xbf16> to vector<1x1x64xbf16>
      tpu.vector_store %arg19[%c1_280, %c0_281, %c0_282], %400 {strides = array<i32>} : memref<2x10x64xbf16, #tpu.memory_space<vmem>>, vector<1x1x64xbf16>,
      %cst_283 = arith.constant 0.000000e+00 : bf16
      %401 = vector.broadcast %cst_283 : bf16 to vector<1x64xbf16>
      %c1_284 = arith.constant 1 : index
      %c9_285 = arith.constant 9 : index
      %c0_286 = arith.constant 0 : index
      %402 = vector.load %arg19[%c1_284, %c9_285, %c0_286] : memref<2x10x64xbf16, #tpu.memory_space<vmem>>, vector<1x1x64xbf16>
      %403 = vector.shape_cast %402 : vector<1x1x64xbf16> to vector<1x64xbf16>
      %404 = vector.shape_cast %401 : vector<1x64xbf16> to vector<1x1x64xbf16>
      tpu.vector_store %arg19[%c1_284, %c9_285, %c0_286], %404 {strides = array<i32>} : memref<2x10x64xbf16, #tpu.memory_space<vmem>>, vector<1x1x64xbf16>,
    } else {
    }
    %c0 = arith.constant 0 : index
    %c0_1 = arith.constant 0 : index
    %c0_2 = arith.constant 0 : index
    %3 = vector.load %arg4[%c0, %c0_1, %c0_2] : memref<1x32x96xbf16, #tpu.memory_space<vmem>>, vector<1x32x96xbf16>
    %4 = vector.shape_cast %3 : vector<1x32x96xbf16> to vector<32x96xbf16>
    %c0_3 = arith.constant 0 : index
    %c0_4 = arith.constant 0 : index
    %c0_5 = arith.constant 0 : index
    %5 = vector.load %arg6[%c0_3, %c0_4, %c0_5] : memref<1x32x32xbf16, #tpu.memory_space<vmem>>, vector<1x32x32xbf16>
    %6 = vector.shape_cast %5 : vector<1x32x32xbf16> to vector<32x32xbf16>
    %c0_6 = arith.constant 0 : index
    %c0_7 = arith.constant 0 : index
    %c0_8 = arith.constant 0 : index
    %7 = vector.load %arg16[%c0_6, %c0_7, %c0_8] : memref<2x8x32xf32, #tpu.memory_space<vmem>>, vector<1x8x32xf32>
    %8 = vector.shape_cast %7 : vector<1x8x32xf32> to vector<8x32xf32>
    %9 = arith.truncf %8 : vector<8x32xf32> to vector<8x32xbf16>
    %cst = arith.constant dense<0.000000e+00> : vector<8x96xf32>
    %10 = tpu.matmul %9, %4, %cst {dimension_numbers = #tpu.dot_dimension_numbers<[1], [0], [0], [1], [0, 0, 1, 1], [], []>} : vector<8x32xbf16>, vector<32x96xbf16>, vector<8x96xf32> -> vector<8x96xf32>
    %c0_9 = arith.constant 0 : index
    %c0_10 = arith.constant 0 : index
    %c0_11 = arith.constant 0 : index
    %11 = vector.load %arg5[%c0_9, %c0_10, %c0_11] : memref<1x1x96xf32, #tpu.memory_space<vmem>>, vector<1x1x96xf32>
    %12 = vector.shape_cast %11 : vector<1x1x96xf32> to vector<1x96xf32>
    %13 = vector.broadcast %12 : vector<1x96xf32> to vector<8x96xf32>
    %14 = arith.addf %10, %13 : vector<8x96xf32>
    %15 = vector.extract_strided_slice %14 {offsets = [0, 0], sizes = [8, 16], strides = [1, 1]} : vector<8x96xf32> to vector<8x16xf32>
    %16 = arith.truncf %15 : vector<8x16xf32> to vector<8x16xbf16>
    %17 = vector.extract_strided_slice %14 {offsets = [0, 32], sizes = [8, 16], strides = [1, 1]} : vector<8x96xf32> to vector<8x16xf32>
    %18 = arith.truncf %17 : vector<8x16xf32> to vector<8x16xbf16>
    %19 = vector.extract_strided_slice %14 {offsets = [0, 64], sizes = [8, 16], strides = [1, 1]} : vector<8x96xf32> to vector<8x16xf32>
    %20 = arith.truncf %19 : vector<8x16xf32> to vector<8x16xbf16>
    %cst_12 = arith.constant dense<0.000000e+00> : vector<8x8xf32>
    %21 = tpu.matmul %16, %18, %cst_12 {dimension_numbers = #tpu.dot_dimension_numbers<[1], [1], [0], [0], [0, 0, 1, 0], [], []>} : vector<8x16xbf16>, vector<8x16xbf16>, vector<8x8xf32> -> vector<8x8xf32>
    %cst_13 = arith.constant 2.500000e-01 : f32
    %22 = vector.broadcast %cst_13 : f32 to vector<8x8xf32>
    %23 = arith.mulf %21, %22 : vector<8x8xf32>
    %c0_14 = arith.constant 0 : index
    %c0_15 = arith.constant 0 : index
    %c0_16 = arith.constant 0 : index
    %c0_17 = arith.constant 0 : index
    %24 = vector.load %arg3[%c0_14, %c0_15, %c0_16, %c0_17] : memref<2x2x1x8xf32, #tpu.memory_space<vmem>>, vector<1x1x1x8xf32>
    %25 = vector.shape_cast %24 : vector<1x1x1x8xf32> to vector<1x8xf32>
    %26 = vector.broadcast %25 : vector<1x8xf32> to vector<8x8xf32>
    %27 = arith.addf %23, %26 : vector<8x8xf32>
    %cst_18 = arith.constant dense<0xFF800000> : vector<8xf32>
    %28 = vector.multi_reduction <maximumf>, %27, %cst_18 [1] : vector<8x8xf32> to vector<8xf32>
    %29 = vector.shape_cast %28 : vector<8xf32> to vector<8x1xf32>
    %30 = vector.broadcast %29 : vector<8x1xf32> to vector<8x8xf32>
    %31 = arith.subf %27, %30 : vector<8x8xf32>
    %32 = math.exp %31 : vector<8x8xf32>
    %cst_19 = arith.constant dense<0.000000e+00> : vector<8xf32>
    %33 = vector.multi_reduction <add>, %32, %cst_19 [1] : vector<8x8xf32> to vector<8xf32>
    %34 = vector.shape_cast %33 : vector<8xf32> to vector<8x1xf32>
    %35 = tpu.reciprocal %34 {approx = true} : vector<8x1xf32> -> vector<8x1xf32>
    %36 = vector.broadcast %35 : vector<8x1xf32> to vector<8x8xf32>
    %37 = arith.mulf %32, %36 : vector<8x8xf32>
    %38 = arith.truncf %37 : vector<8x8xf32> to vector<8x8xbf16>
    %cst_20 = arith.constant dense<0.000000e+00> : vector<8x16xf32>
    %39 = tpu.matmul %38, %20, %cst_20 {dimension_numbers = #tpu.dot_dimension_numbers<[1], [0], [0], [1], [0, 0, 1, 1], [], []>} : vector<8x8xbf16>, vector<8x16xbf16>, vector<8x16xf32> -> vector<8x16xf32>
    %40 = arith.truncf %39 : vector<8x16xf32> to vector<8x16xbf16>
    %c0_21 = arith.constant 0 : index
    %c0_22 = arith.constant 0 : index
    %c0_23 = arith.constant 0 : index
    %41 = vector.load %arg17[%c0_21, %c0_22, %c0_23] : memref<2x8x32xbf16, #tpu.memory_space<vmem>>, vector<1x8x16xbf16>
    %42 = vector.shape_cast %41 : vector<1x8x16xbf16> to vector<8x16xbf16>
    %43 = vector.shape_cast %40 : vector<8x16xbf16> to vector<1x8x16xbf16>
    tpu.vector_store %arg17[%c0_21, %c0_22, %c0_23], %43 {strides = array<i32>} : memref<2x8x32xbf16, #tpu.memory_space<vmem>>, vector<1x8x16xbf16>,
    %44 = vector.extract_strided_slice %14 {offsets = [0, 16], sizes = [8, 16], strides = [1, 1]} : vector<8x96xf32> to vector<8x16xf32>
    %45 = arith.truncf %44 : vector<8x16xf32> to vector<8x16xbf16>
    %46 = vector.extract_strided_slice %14 {offsets = [0, 48], sizes = [8, 16], strides = [1, 1]} : vector<8x96xf32> to vector<8x16xf32>
    %47 = arith.truncf %46 : vector<8x16xf32> to vector<8x16xbf16>
    %48 = vector.extract_strided_slice %14 {offsets = [0, 80], sizes = [8, 16], strides = [1, 1]} : vector<8x96xf32> to vector<8x16xf32>
    %49 = arith.truncf %48 : vector<8x16xf32> to vector<8x16xbf16>
    %cst_24 = arith.constant dense<0.000000e+00> : vector<8x8xf32>
    %50 = tpu.matmul %45, %47, %cst_24 {dimension_numbers = #tpu.dot_dimension_numbers<[1], [1], [0], [0], [0, 0, 1, 0], [], []>} : vector<8x16xbf16>, vector<8x16xbf16>, vector<8x8xf32> -> vector<8x8xf32>
    %cst_25 = arith.constant 2.500000e-01 : f32
    %51 = vector.broadcast %cst_25 : f32 to vector<8x8xf32>
    %52 = arith.mulf %50, %51 : vector<8x8xf32>
    %c0_26 = arith.constant 0 : index
    %c1 = arith.constant 1 : index
    %c0_27 = arith.constant 0 : index
    %c0_28 = arith.constant 0 : index
    %53 = vector.load %arg3[%c0_26, %c1, %c0_27, %c0_28] : memref<2x2x1x8xf32, #tpu.memory_space<vmem>>, vector<1x1x1x8xf32>
    %54 = vector.shape_cast %53 : vector<1x1x1x8xf32> to vector<1x8xf32>
    %55 = vector.broadcast %54 : vector<1x8xf32> to vector<8x8xf32>
    %56 = arith.addf %52, %55 : vector<8x8xf32>
    %cst_29 = arith.constant dense<0xFF800000> : vector<8xf32>
    %57 = vector.multi_reduction <maximumf>, %56, %cst_29 [1] : vector<8x8xf32> to vector<8xf32>
    %58 = vector.shape_cast %57 : vector<8xf32> to vector<8x1xf32>
    %59 = vector.broadcast %58 : vector<8x1xf32> to vector<8x8xf32>
    %60 = arith.subf %56, %59 : vector<8x8xf32>
    %61 = math.exp %60 : vector<8x8xf32>
    %cst_30 = arith.constant dense<0.000000e+00> : vector<8xf32>
    %62 = vector.multi_reduction <add>, %61, %cst_30 [1] : vector<8x8xf32> to vector<8xf32>
    %63 = vector.shape_cast %62 : vector<8xf32> to vector<8x1xf32>
    %64 = tpu.reciprocal %63 {approx = true} : vector<8x1xf32> -> vector<8x1xf32>
    %65 = vector.broadcast %64 : vector<8x1xf32> to vector<8x8xf32>
    %66 = arith.mulf %61, %65 : vector<8x8xf32>
    %67 = arith.truncf %66 : vector<8x8xf32> to vector<8x8xbf16>
    %cst_31 = arith.constant dense<0.000000e+00> : vector<8x16xf32>
    %68 = tpu.matmul %67, %49, %cst_31 {dimension_numbers = #tpu.dot_dimension_numbers<[1], [0], [0], [1], [0, 0, 1, 1], [], []>} : vector<8x8xbf16>, vector<8x16xbf16>, vector<8x16xf32> -> vector<8x16xf32>
    %69 = arith.truncf %68 : vector<8x16xf32> to vector<8x16xbf16>
    %c0_32 = arith.constant 0 : index
    %c0_33 = arith.constant 0 : index
    %c16 = arith.constant 16 : index
    %70 = vector.load %arg17[%c0_32, %c0_33, %c16] : memref<2x8x32xbf16, #tpu.memory_space<vmem>>, vector<1x8x16xbf16>
    %71 = vector.shape_cast %70 : vector<1x8x16xbf16> to vector<8x16xbf16>
    %72 = vector.shape_cast %69 : vector<8x16xbf16> to vector<1x8x16xbf16>
    tpu.vector_store %arg17[%c0_32, %c0_33, %c16], %72 {strides = array<i32>} : memref<2x8x32xbf16, #tpu.memory_space<vmem>>, vector<1x8x16xbf16>,
    %c0_34 = arith.constant 0 : index
    %c0_35 = arith.constant 0 : index
    %c0_36 = arith.constant 0 : index
    %73 = vector.load %arg17[%c0_34, %c0_35, %c0_36] : memref<2x8x32xbf16, #tpu.memory_space<vmem>>, vector<1x8x32xbf16>
    %74 = vector.shape_cast %73 : vector<1x8x32xbf16> to vector<8x32xbf16>
    %cst_37 = arith.constant dense<0.000000e+00> : vector<8x32xf32>
    %75 = tpu.matmul %74, %6, %cst_37 {dimension_numbers = #tpu.dot_dimension_numbers<[1], [0], [0], [1], [0, 0, 1, 1], [], []>} : vector<8x32xbf16>, vector<32x32xbf16>, vector<8x32xf32> -> vector<8x32xf32>
    %c0_38 = arith.constant 0 : index
    %c0_39 = arith.constant 0 : index
    %c0_40 = arith.constant 0 : index
    %76 = vector.load %arg7[%c0_38, %c0_39, %c0_40] : memref<1x1x32xf32, #tpu.memory_space<vmem>>, vector<1x1x32xf32>
    %77 = vector.shape_cast %76 : vector<1x1x32xf32> to vector<1x32xf32>
    %78 = vector.broadcast %77 : vector<1x32xf32> to vector<8x32xf32>
    %79 = arith.addf %75, %78 : vector<8x32xf32>
    %cst_41 = arith.constant dense<0.000000e+00> : vector<8xf32>
    %80 = vector.multi_reduction <add>, %79, %cst_41 [1] : vector<8x32xf32> to vector<8xf32>
    %81 = vector.shape_cast %80 : vector<8xf32> to vector<8x1xf32>
    %cst_42 = arith.constant 3.200000e+01 : f32
    %82 = vector.broadcast %cst_42 : f32 to vector<8x1xf32>
    %83 = arith.divf %81, %82 : vector<8x1xf32>
    %84 = vector.broadcast %83 : vector<8x1xf32> to vector<8x32xf32>
    %85 = arith.subf %79, %84 : vector<8x32xf32>
    %86 = arith.mulf %85, %85 : vector<8x32xf32>
    %cst_43 = arith.constant dense<0.000000e+00> : vector<8xf32>
    %87 = vector.multi_reduction <add>, %86, %cst_43 [1] : vector<8x32xf32> to vector<8xf32>
    %88 = vector.shape_cast %87 : vector<8xf32> to vector<8x1xf32>
    %cst_44 = arith.constant 3.200000e+01 : f32
    %89 = vector.broadcast %cst_44 : f32 to vector<8x1xf32>
    %90 = arith.divf %88, %89 : vector<8x1xf32>
    %91 = vector.broadcast %83 : vector<8x1xf32> to vector<8x32xf32>
    %92 = arith.subf %79, %91 : vector<8x32xf32>
    %cst_45 = arith.constant 9.99999974E-6 : f32
    %93 = vector.broadcast %cst_45 : f32 to vector<8x1xf32>
    %94 = arith.addf %90, %93 : vector<8x1xf32>
    %95 = math.rsqrt %94 : vector<8x1xf32>
    %96 = vector.broadcast %95 : vector<8x1xf32> to vector<8x32xf32>
    %97 = arith.mulf %92, %96 : vector<8x32xf32>
    %c0_46 = arith.constant 0 : index
    %c0_47 = arith.constant 0 : index
    %c0_48 = arith.constant 0 : index
    %98 = vector.load %arg8[%c0_46, %c0_47, %c0_48] : memref<1x1x32xf32, #tpu.memory_space<vmem>>, vector<1x1x32xf32>
    %99 = vector.shape_cast %98 : vector<1x1x32xf32> to vector<1x32xf32>
    %100 = vector.broadcast %99 : vector<1x32xf32> to vector<8x32xf32>
    %101 = arith.mulf %97, %100 : vector<8x32xf32>
    %c0_49 = arith.constant 0 : index
    %c0_50 = arith.constant 0 : index
    %c0_51 = arith.constant 0 : index
    %102 = vector.load %arg9[%c0_49, %c0_50, %c0_51] : memref<1x1x32xf32, #tpu.memory_space<vmem>>, vector<1x1x32xf32>
    %103 = vector.shape_cast %102 : vector<1x1x32xf32> to vector<1x32xf32>
    %104 = vector.broadcast %103 : vector<1x32xf32> to vector<8x32xf32>
    %105 = arith.addf %101, %104 : vector<8x32xf32>
    %106 = arith.addf %8, %105 : vector<8x32xf32>
    %107 = arith.truncf %106 : vector<8x32xf32> to vector<8x32xbf16>
    %c0_52 = arith.constant 0 : index
    %c1_53 = arith.constant 1 : index
    %c0_54 = arith.constant 0 : index
    %108 = vector.load %arg18[%c0_52, %c1_53, %c0_54] : memref<2x10x32xbf16, #tpu.memory_space<vmem>>, vector<1x8x32xbf16>
    %109 = vector.shape_cast %108 : vector<1x8x32xbf16> to vector<8x32xbf16>
    %110 = vector.shape_cast %107 : vector<8x32xbf16> to vector<1x8x32xbf16>
    tpu.vector_store %arg18[%c0_52, %c1_53, %c0_54], %110 {strides = array<i32>} : memref<2x10x32xbf16, #tpu.memory_space<vmem>>, vector<1x8x32xbf16>,
    %c0_55 = arith.constant 0 : index
    %c0_56 = arith.constant 0 : index
    %c0_57 = arith.constant 0 : index
    %111 = vector.load %arg18[%c0_55, %c0_56, %c0_57] : memref<2x10x32xbf16, #tpu.memory_space<vmem>>, vector<1x8x32xbf16>
    %112 = vector.shape_cast %111 : vector<1x8x32xbf16> to vector<8x32xbf16>
    %c0_58 = arith.constant 0 : index
    %c0_59 = arith.constant 0 : index
    %c0_60 = arith.constant 0 : index
    %c0_61 = arith.constant 0 : index
    %113 = vector.load %arg10[%c0_58, %c0_59, %c0_60, %c0_61] : memref<1x3x32x64xbf16, #tpu.memory_space<vmem>>, vector<1x1x32x64xbf16>
    %114 = vector.shape_cast %113 : vector<1x1x32x64xbf16> to vector<32x64xbf16>
    %cst_62 = arith.constant dense<0.000000e+00> : vector<8x64xf32>
    %115 = tpu.matmul %112, %114, %cst_62 {dimension_numbers = #tpu.dot_dimension_numbers<[1], [0], [0], [1], [0, 0, 1, 1], [], []>} : vector<8x32xbf16>, vector<32x64xbf16>, vector<8x64xf32> -> vector<8x64xf32>
    %c0_63 = arith.constant 0 : index
    %c1_64 = arith.constant 1 : index
    %c0_65 = arith.constant 0 : index
    %116 = vector.load %arg18[%c0_63, %c1_64, %c0_65] : memref<2x10x32xbf16, #tpu.memory_space<vmem>>, vector<1x8x32xbf16>
    %117 = vector.shape_cast %116 : vector<1x8x32xbf16> to vector<8x32xbf16>
    %c0_66 = arith.constant 0 : index
    %c1_67 = arith.constant 1 : index
    %c0_68 = arith.constant 0 : index
    %c0_69 = arith.constant 0 : index
    %118 = vector.load %arg10[%c0_66, %c1_67, %c0_68, %c0_69] : memref<1x3x32x64xbf16, #tpu.memory_space<vmem>>, vector<1x1x32x64xbf16>
    %119 = vector.shape_cast %118 : vector<1x1x32x64xbf16> to vector<32x64xbf16>
    %cst_70 = arith.constant dense<0.000000e+00> : vector<8x64xf32>
    %120 = tpu.matmul %117, %119, %cst_70 {dimension_numbers = #tpu.dot_dimension_numbers<[1], [0], [0], [1], [0, 0, 1, 1], [], []>} : vector<8x32xbf16>, vector<32x64xbf16>, vector<8x64xf32> -> vector<8x64xf32>
    %121 = arith.addf %115, %120 : vector<8x64xf32>
    %c0_71 = arith.constant 0 : index
    %c2 = arith.constant 2 : index
    %c0_72 = arith.constant 0 : index
    %122 = vector.load %arg18[%c0_71, %c2, %c0_72] : memref<2x10x32xbf16, #tpu.memory_space<vmem>>, vector<1x8x32xbf16>
    %123 = vector.shape_cast %122 : vector<1x8x32xbf16> to vector<8x32xbf16>
    %c0_73 = arith.constant 0 : index
    %c2_74 = arith.constant 2 : index
    %c0_75 = arith.constant 0 : index
    %c0_76 = arith.constant 0 : index
    %124 = vector.load %arg10[%c0_73, %c2_74, %c0_75, %c0_76] : memref<1x3x32x64xbf16, #tpu.memory_space<vmem>>, vector<1x1x32x64xbf16>
    %125 = vector.shape_cast %124 : vector<1x1x32x64xbf16> to vector<32x64xbf16>
    %cst_77 = arith.constant dense<0.000000e+00> : vector<8x64xf32>
    %126 = tpu.matmul %123, %125, %cst_77 {dimension_numbers = #tpu.dot_dimension_numbers<[1], [0], [0], [1], [0, 0, 1, 1], [], []>} : vector<8x32xbf16>, vector<32x64xbf16>, vector<8x64xf32> -> vector<8x64xf32>
    %127 = arith.addf %121, %126 : vector<8x64xf32>
    %c0_78 = arith.constant 0 : index
    %c0_79 = arith.constant 0 : index
    %c0_80 = arith.constant 0 : index
    %128 = vector.load %arg11[%c0_78, %c0_79, %c0_80] : memref<1x1x64xf32, #tpu.memory_space<vmem>>, vector<1x1x64xf32>
    %129 = vector.shape_cast %128 : vector<1x1x64xf32> to vector<1x64xf32>
    %130 = vector.broadcast %129 : vector<1x64xf32> to vector<8x64xf32>
    %131 = arith.addf %127, %130 : vector<8x64xf32>
    %cst_81 = arith.constant 0.000000e+00 : f32
    %132 = vector.broadcast %cst_81 : f32 to vector<8x64xf32>
    %133 = arith.maximumf %131, %132 : vector<8x64xf32>
    %134 = arith.truncf %133 : vector<8x64xf32> to vector<8x64xbf16>
    %c0_82 = arith.constant 0 : index
    %c1_83 = arith.constant 1 : index
    %c0_84 = arith.constant 0 : index
    %135 = vector.load %arg19[%c0_82, %c1_83, %c0_84] : memref<2x10x64xbf16, #tpu.memory_space<vmem>>, vector<1x8x64xbf16>
    %136 = vector.shape_cast %135 : vector<1x8x64xbf16> to vector<8x64xbf16>
    %137 = vector.shape_cast %134 : vector<8x64xbf16> to vector<1x8x64xbf16>
    tpu.vector_store %arg19[%c0_82, %c1_83, %c0_84], %137 {strides = array<i32>} : memref<2x10x64xbf16, #tpu.memory_space<vmem>>, vector<1x8x64xbf16>,
    %c0_85 = arith.constant 0 : index
    %c0_86 = arith.constant 0 : index
    %c0_87 = arith.constant 0 : index
    %138 = vector.load %arg19[%c0_85, %c0_86, %c0_87] : memref<2x10x64xbf16, #tpu.memory_space<vmem>>, vector<1x8x64xbf16>
    %139 = vector.shape_cast %138 : vector<1x8x64xbf16> to vector<8x64xbf16>
    %c0_88 = arith.constant 0 : index
    %c0_89 = arith.constant 0 : index
    %c0_90 = arith.constant 0 : index
    %c0_91 = arith.constant 0 : index
    %140 = vector.load %arg12[%c0_88, %c0_89, %c0_90, %c0_91] : memref<1x3x64x32xbf16, #tpu.memory_space<vmem>>, vector<1x1x64x32xbf16>
    %141 = vector.shape_cast %140 : vector<1x1x64x32xbf16> to vector<64x32xbf16>
    %cst_92 = arith.constant dense<0.000000e+00> : vector<8x32xf32>
    %142 = tpu.matmul %139, %141, %cst_92 {dimension_numbers = #tpu.dot_dimension_numbers<[1], [0], [0], [1], [0, 0, 1, 1], [], []>} : vector<8x64xbf16>, vector<64x32xbf16>, vector<8x32xf32> -> vector<8x32xf32>
    %c0_93 = arith.constant 0 : index
    %c1_94 = arith.constant 1 : index
    %c0_95 = arith.constant 0 : index
    %143 = vector.load %arg19[%c0_93, %c1_94, %c0_95] : memref<2x10x64xbf16, #tpu.memory_space<vmem>>, vector<1x8x64xbf16>
    %144 = vector.shape_cast %143 : vector<1x8x64xbf16> to vector<8x64xbf16>
    %c0_96 = arith.constant 0 : index
    %c1_97 = arith.constant 1 : index
    %c0_98 = arith.constant 0 : index
    %c0_99 = arith.constant 0 : index
    %145 = vector.load %arg12[%c0_96, %c1_97, %c0_98, %c0_99] : memref<1x3x64x32xbf16, #tpu.memory_space<vmem>>, vector<1x1x64x32xbf16>
    %146 = vector.shape_cast %145 : vector<1x1x64x32xbf16> to vector<64x32xbf16>
    %cst_100 = arith.constant dense<0.000000e+00> : vector<8x32xf32>
    %147 = tpu.matmul %144, %146, %cst_100 {dimension_numbers = #tpu.dot_dimension_numbers<[1], [0], [0], [1], [0, 0, 1, 1], [], []>} : vector<8x64xbf16>, vector<64x32xbf16>, vector<8x32xf32> -> vector<8x32xf32>
    %148 = arith.addf %142, %147 : vector<8x32xf32>
    %c0_101 = arith.constant 0 : index
    %c2_102 = arith.constant 2 : index
    %c0_103 = arith.constant 0 : index
    %149 = vector.load %arg19[%c0_101, %c2_102, %c0_103] : memref<2x10x64xbf16, #tpu.memory_space<vmem>>, vector<1x8x64xbf16>
    %150 = vector.shape_cast %149 : vector<1x8x64xbf16> to vector<8x64xbf16>
    %c0_104 = arith.constant 0 : index
    %c2_105 = arith.constant 2 : index
    %c0_106 = arith.constant 0 : index
    %c0_107 = arith.constant 0 : index
    %151 = vector.load %arg12[%c0_104, %c2_105, %c0_106, %c0_107] : memref<1x3x64x32xbf16, #tpu.memory_space<vmem>>, vector<1x1x64x32xbf16>
    %152 = vector.shape_cast %151 : vector<1x1x64x32xbf16> to vector<64x32xbf16>
    %cst_108 = arith.constant dense<0.000000e+00> : vector<8x32xf32>
    %153 = tpu.matmul %150, %152, %cst_108 {dimension_numbers = #tpu.dot_dimension_numbers<[1], [0], [0], [1], [0, 0, 1, 1], [], []>} : vector<8x64xbf16>, vector<64x32xbf16>, vector<8x32xf32> -> vector<8x32xf32>
    %154 = arith.addf %148, %153 : vector<8x32xf32>
    %c0_109 = arith.constant 0 : index
    %c0_110 = arith.constant 0 : index
    %c0_111 = arith.constant 0 : index
    %155 = vector.load %arg13[%c0_109, %c0_110, %c0_111] : memref<1x1x32xf32, #tpu.memory_space<vmem>>, vector<1x1x32xf32>
    %156 = vector.shape_cast %155 : vector<1x1x32xf32> to vector<1x32xf32>
    %157 = vector.broadcast %156 : vector<1x32xf32> to vector<8x32xf32>
    %158 = arith.addf %154, %157 : vector<8x32xf32>
    %cst_112 = arith.constant dense<0.000000e+00> : vector<8xf32>
    %159 = vector.multi_reduction <add>, %158, %cst_112 [1] : vector<8x32xf32> to vector<8xf32>
    %160 = vector.shape_cast %159 : vector<8xf32> to vector<8x1xf32>
    %cst_113 = arith.constant 3.200000e+01 : f32
    %161 = vector.broadcast %cst_113 : f32 to vector<8x1xf32>
    %162 = arith.divf %160, %161 : vector<8x1xf32>
    %163 = vector.broadcast %162 : vector<8x1xf32> to vector<8x32xf32>
    %164 = arith.subf %158, %163 : vector<8x32xf32>
    %165 = arith.mulf %164, %164 : vector<8x32xf32>
    %cst_114 = arith.constant dense<0.000000e+00> : vector<8xf32>
    %166 = vector.multi_reduction <add>, %165, %cst_114 [1] : vector<8x32xf32> to vector<8xf32>
    %167 = vector.shape_cast %166 : vector<8xf32> to vector<8x1xf32>
    %cst_115 = arith.constant 3.200000e+01 : f32
    %168 = vector.broadcast %cst_115 : f32 to vector<8x1xf32>
    %169 = arith.divf %167, %168 : vector<8x1xf32>
    %170 = vector.broadcast %162 : vector<8x1xf32> to vector<8x32xf32>
    %171 = arith.subf %158, %170 : vector<8x32xf32>
    %cst_116 = arith.constant 9.99999974E-6 : f32
    %172 = vector.broadcast %cst_116 : f32 to vector<8x1xf32>
    %173 = arith.addf %169, %172 : vector<8x1xf32>
    %174 = math.rsqrt %173 : vector<8x1xf32>
    %175 = vector.broadcast %174 : vector<8x1xf32> to vector<8x32xf32>
    %176 = arith.mulf %171, %175 : vector<8x32xf32>
    %c0_117 = arith.constant 0 : index
    %c0_118 = arith.constant 0 : index
    %c0_119 = arith.constant 0 : index
    %177 = vector.load %arg14[%c0_117, %c0_118, %c0_119] : memref<1x1x32xf32, #tpu.memory_space<vmem>>, vector<1x1x32xf32>
    %178 = vector.shape_cast %177 : vector<1x1x32xf32> to vector<1x32xf32>
    %179 = vector.broadcast %178 : vector<1x32xf32> to vector<8x32xf32>
    %180 = arith.mulf %176, %179 : vector<8x32xf32>
    %c0_120 = arith.constant 0 : index
    %c0_121 = arith.constant 0 : index
    %c0_122 = arith.constant 0 : index
    %181 = vector.load %arg15[%c0_120, %c0_121, %c0_122] : memref<1x1x32xf32, #tpu.memory_space<vmem>>, vector<1x1x32xf32>
    %182 = vector.shape_cast %181 : vector<1x1x32xf32> to vector<1x32xf32>
    %183 = vector.broadcast %182 : vector<1x32xf32> to vector<8x32xf32>
    %184 = arith.addf %180, %183 : vector<8x32xf32>
    %185 = arith.addf %106, %184 : vector<8x32xf32>
    %c0_123 = arith.constant 0 : index
    %c0_124 = arith.constant 0 : index
    %c0_125 = arith.constant 0 : index
    %186 = vector.load %arg16[%c0_123, %c0_124, %c0_125] : memref<2x8x32xf32, #tpu.memory_space<vmem>>, vector<1x8x32xf32>
    %187 = vector.shape_cast %186 : vector<1x8x32xf32> to vector<8x32xf32>
    %188 = vector.shape_cast %185 : vector<8x32xf32> to vector<1x8x32xf32>
    tpu.vector_store %arg16[%c0_123, %c0_124, %c0_125], %188 {strides = array<i32>} : memref<2x8x32xf32, #tpu.memory_space<vmem>>, vector<1x8x32xf32>,
    %c1_126 = arith.constant 1 : index
    %c0_127 = arith.constant 0 : index
    %c0_128 = arith.constant 0 : index
    %189 = vector.load %arg16[%c1_126, %c0_127, %c0_128] : memref<2x8x32xf32, #tpu.memory_space<vmem>>, vector<1x8x32xf32>
    %190 = vector.shape_cast %189 : vector<1x8x32xf32> to vector<8x32xf32>
    %191 = arith.truncf %190 : vector<8x32xf32> to vector<8x32xbf16>
    %cst_129 = arith.constant dense<0.000000e+00> : vector<8x96xf32>
    %192 = tpu.matmul %191, %4, %cst_129 {dimension_numbers = #tpu.dot_dimension_numbers<[1], [0], [0], [1], [0, 0, 1, 1], [], []>} : vector<8x32xbf16>, vector<32x96xbf16>, vector<8x96xf32> -> vector<8x96xf32>
    %c0_130 = arith.constant 0 : index
    %c0_131 = arith.constant 0 : index
    %c0_132 = arith.constant 0 : index
    %193 = vector.load %arg5[%c0_130, %c0_131, %c0_132] : memref<1x1x96xf32, #tpu.memory_space<vmem>>, vector<1x1x96xf32>
    %194 = vector.shape_cast %193 : vector<1x1x96xf32> to vector<1x96xf32>
    %195 = vector.broadcast %194 : vector<1x96xf32> to vector<8x96xf32>
    %196 = arith.addf %192, %195 : vector<8x96xf32>
    %197 = vector.extract_strided_slice %196 {offsets = [0, 0], sizes = [8, 16], strides = [1, 1]} : vector<8x96xf32> to vector<8x16xf32>
    %198 = arith.truncf %197 : vector<8x16xf32> to vector<8x16xbf16>
    %199 = vector.extract_strided_slice %196 {offsets = [0, 32], sizes = [8, 16], strides = [1, 1]} : vector<8x96xf32> to vector<8x16xf32>
    %200 = arith.truncf %199 : vector<8x16xf32> to vector<8x16xbf16>
    %201 = vector.extract_strided_slice %196 {offsets = [0, 64], sizes = [8, 16], strides = [1, 1]} : vector<8x96xf32> to vector<8x16xf32>
    %202 = arith.truncf %201 : vector<8x16xf32> to vector<8x16xbf16>
    %cst_133 = arith.constant dense<0.000000e+00> : vector<8x8xf32>
    %203 = tpu.matmul %198, %200, %cst_133 {dimension_numbers = #tpu.dot_dimension_numbers<[1], [1], [0], [0], [0, 0, 1, 0], [], []>} : vector<8x16xbf16>, vector<8x16xbf16>, vector<8x8xf32> -> vector<8x8xf32>
    %cst_134 = arith.constant 2.500000e-01 : f32
    %204 = vector.broadcast %cst_134 : f32 to vector<8x8xf32>
    %205 = arith.mulf %203, %204 : vector<8x8xf32>
    %c1_135 = arith.constant 1 : index
    %c0_136 = arith.constant 0 : index
    %c0_137 = arith.constant 0 : index
    %c0_138 = arith.constant 0 : index
    %206 = vector.load %arg3[%c1_135, %c0_136, %c0_137, %c0_138] : memref<2x2x1x8xf32, #tpu.memory_space<vmem>>, vector<1x1x1x8xf32>
    %207 = vector.shape_cast %206 : vector<1x1x1x8xf32> to vector<1x8xf32>
    %208 = vector.broadcast %207 : vector<1x8xf32> to vector<8x8xf32>
    %209 = arith.addf %205, %208 : vector<8x8xf32>
    %cst_139 = arith.constant dense<0xFF800000> : vector<8xf32>
    %210 = vector.multi_reduction <maximumf>, %209, %cst_139 [1] : vector<8x8xf32> to vector<8xf32>
    %211 = vector.shape_cast %210 : vector<8xf32> to vector<8x1xf32>
    %212 = vector.broadcast %211 : vector<8x1xf32> to vector<8x8xf32>
    %213 = arith.subf %209, %212 : vector<8x8xf32>
    %214 = math.exp %213 : vector<8x8xf32>
    %cst_140 = arith.constant dense<0.000000e+00> : vector<8xf32>
    %215 = vector.multi_reduction <add>, %214, %cst_140 [1] : vector<8x8xf32> to vector<8xf32>
    %216 = vector.shape_cast %215 : vector<8xf32> to vector<8x1xf32>
    %217 = tpu.reciprocal %216 {approx = true} : vector<8x1xf32> -> vector<8x1xf32>
    %218 = vector.broadcast %217 : vector<8x1xf32> to vector<8x8xf32>
    %219 = arith.mulf %214, %218 : vector<8x8xf32>
    %220 = arith.truncf %219 : vector<8x8xf32> to vector<8x8xbf16>
    %cst_141 = arith.constant dense<0.000000e+00> : vector<8x16xf32>
    %221 = tpu.matmul %220, %202, %cst_141 {dimension_numbers = #tpu.dot_dimension_numbers<[1], [0], [0], [1], [0, 0, 1, 1], [], []>} : vector<8x8xbf16>, vector<8x16xbf16>, vector<8x16xf32> -> vector<8x16xf32>
    %222 = arith.truncf %221 : vector<8x16xf32> to vector<8x16xbf16>
    %c1_142 = arith.constant 1 : index
    %c0_143 = arith.constant 0 : index
    %c0_144 = arith.constant 0 : index
    %223 = vector.load %arg17[%c1_142, %c0_143, %c0_144] : memref<2x8x32xbf16, #tpu.memory_space<vmem>>, vector<1x8x16xbf16>
    %224 = vector.shape_cast %223 : vector<1x8x16xbf16> to vector<8x16xbf16>
    %225 = vector.shape_cast %222 : vector<8x16xbf16> to vector<1x8x16xbf16>
    tpu.vector_store %arg17[%c1_142, %c0_143, %c0_144], %225 {strides = array<i32>} : memref<2x8x32xbf16, #tpu.memory_space<vmem>>, vector<1x8x16xbf16>,
    %226 = vector.extract_strided_slice %196 {offsets = [0, 16], sizes = [8, 16], strides = [1, 1]} : vector<8x96xf32> to vector<8x16xf32>
    %227 = arith.truncf %226 : vector<8x16xf32> to vector<8x16xbf16>
    %228 = vector.extract_strided_slice %196 {offsets = [0, 48], sizes = [8, 16], strides = [1, 1]} : vector<8x96xf32> to vector<8x16xf32>
    %229 = arith.truncf %228 : vector<8x16xf32> to vector<8x16xbf16>
    %230 = vector.extract_strided_slice %196 {offsets = [0, 80], sizes = [8, 16], strides = [1, 1]} : vector<8x96xf32> to vector<8x16xf32>
    %231 = arith.truncf %230 : vector<8x16xf32> to vector<8x16xbf16>
    %cst_145 = arith.constant dense<0.000000e+00> : vector<8x8xf32>
    %232 = tpu.matmul %227, %229, %cst_145 {dimension_numbers = #tpu.dot_dimension_numbers<[1], [1], [0], [0], [0, 0, 1, 0], [], []>} : vector<8x16xbf16>, vector<8x16xbf16>, vector<8x8xf32> -> vector<8x8xf32>
    %cst_146 = arith.constant 2.500000e-01 : f32
    %233 = vector.broadcast %cst_146 : f32 to vector<8x8xf32>
    %234 = arith.mulf %232, %233 : vector<8x8xf32>
    %c1_147 = arith.constant 1 : index
    %c1_148 = arith.constant 1 : index
    %c0_149 = arith.constant 0 : index
    %c0_150 = arith.constant 0 : index
    %235 = vector.load %arg3[%c1_147, %c1_148, %c0_149, %c0_150] : memref<2x2x1x8xf32, #tpu.memory_space<vmem>>, vector<1x1x1x8xf32>
    %236 = vector.shape_cast %235 : vector<1x1x1x8xf32> to vector<1x8xf32>
    %237 = vector.broadcast %236 : vector<1x8xf32> to vector<8x8xf32>
    %238 = arith.addf %234, %237 : vector<8x8xf32>
    %cst_151 = arith.constant dense<0xFF800000> : vector<8xf32>
    %239 = vector.multi_reduction <maximumf>, %238, %cst_151 [1] : vector<8x8xf32> to vector<8xf32>
    %240 = vector.shape_cast %239 : vector<8xf32> to vector<8x1xf32>
    %241 = vector.broadcast %240 : vector<8x1xf32> to vector<8x8xf32>
    %242 = arith.subf %238, %241 : vector<8x8xf32>
    %243 = math.exp %242 : vector<8x8xf32>
    %cst_152 = arith.constant dense<0.000000e+00> : vector<8xf32>
    %244 = vector.multi_reduction <add>, %243, %cst_152 [1] : vector<8x8xf32> to vector<8xf32>
    %245 = vector.shape_cast %244 : vector<8xf32> to vector<8x1xf32>
    %246 = tpu.reciprocal %245 {approx = true} : vector<8x1xf32> -> vector<8x1xf32>
    %247 = vector.broadcast %246 : vector<8x1xf32> to vector<8x8xf32>
    %248 = arith.mulf %243, %247 : vector<8x8xf32>
    %249 = arith.truncf %248 : vector<8x8xf32> to vector<8x8xbf16>
    %cst_153 = arith.constant dense<0.000000e+00> : vector<8x16xf32>
    %250 = tpu.matmul %249, %231, %cst_153 {dimension_numbers = #tpu.dot_dimension_numbers<[1], [0], [0], [1], [0, 0, 1, 1], [], []>} : vector<8x8xbf16>, vector<8x16xbf16>, vector<8x16xf32> -> vector<8x16xf32>
    %251 = arith.truncf %250 : vector<8x16xf32> to vector<8x16xbf16>
    %c1_154 = arith.constant 1 : index
    %c0_155 = arith.constant 0 : index
    %c16_156 = arith.constant 16 : index
    %252 = vector.load %arg17[%c1_154, %c0_155, %c16_156] : memref<2x8x32xbf16, #tpu.memory_space<vmem>>, vector<1x8x16xbf16>
    %253 = vector.shape_cast %252 : vector<1x8x16xbf16> to vector<8x16xbf16>
    %254 = vector.shape_cast %251 : vector<8x16xbf16> to vector<1x8x16xbf16>
    tpu.vector_store %arg17[%c1_154, %c0_155, %c16_156], %254 {strides = array<i32>} : memref<2x8x32xbf16, #tpu.memory_space<vmem>>, vector<1x8x16xbf16>,
    %c1_157 = arith.constant 1 : index
    %c0_158 = arith.constant 0 : index
    %c0_159 = arith.constant 0 : index
    %255 = vector.load %arg17[%c1_157, %c0_158, %c0_159] : memref<2x8x32xbf16, #tpu.memory_space<vmem>>, vector<1x8x32xbf16>
    %256 = vector.shape_cast %255 : vector<1x8x32xbf16> to vector<8x32xbf16>
    %cst_160 = arith.constant dense<0.000000e+00> : vector<8x32xf32>
    %257 = tpu.matmul %256, %6, %cst_160 {dimension_numbers = #tpu.dot_dimension_numbers<[1], [0], [0], [1], [0, 0, 1, 1], [], []>} : vector<8x32xbf16>, vector<32x32xbf16>, vector<8x32xf32> -> vector<8x32xf32>
    %c0_161 = arith.constant 0 : index
    %c0_162 = arith.constant 0 : index
    %c0_163 = arith.constant 0 : index
    %258 = vector.load %arg7[%c0_161, %c0_162, %c0_163] : memref<1x1x32xf32, #tpu.memory_space<vmem>>, vector<1x1x32xf32>
    %259 = vector.shape_cast %258 : vector<1x1x32xf32> to vector<1x32xf32>
    %260 = vector.broadcast %259 : vector<1x32xf32> to vector<8x32xf32>
    %261 = arith.addf %257, %260 : vector<8x32xf32>
    %cst_164 = arith.constant dense<0.000000e+00> : vector<8xf32>
    %262 = vector.multi_reduction <add>, %261, %cst_164 [1] : vector<8x32xf32> to vector<8xf32>
    %263 = vector.shape_cast %262 : vector<8xf32> to vector<8x1xf32>
    %cst_165 = arith.constant 3.200000e+01 : f32
    %264 = vector.broadcast %cst_165 : f32 to vector<8x1xf32>
    %265 = arith.divf %263, %264 : vector<8x1xf32>
    %266 = vector.broadcast %265 : vector<8x1xf32> to vector<8x32xf32>
    %267 = arith.subf %261, %266 : vector<8x32xf32>
    %268 = arith.mulf %267, %267 : vector<8x32xf32>
    %cst_166 = arith.constant dense<0.000000e+00> : vector<8xf32>
    %269 = vector.multi_reduction <add>, %268, %cst_166 [1] : vector<8x32xf32> to vector<8xf32>
    %270 = vector.shape_cast %269 : vector<8xf32> to vector<8x1xf32>
    %cst_167 = arith.constant 3.200000e+01 : f32
    %271 = vector.broadcast %cst_167 : f32 to vector<8x1xf32>
    %272 = arith.divf %270, %271 : vector<8x1xf32>
    %273 = vector.broadcast %265 : vector<8x1xf32> to vector<8x32xf32>
    %274 = arith.subf %261, %273 : vector<8x32xf32>
    %cst_168 = arith.constant 9.99999974E-6 : f32
    %275 = vector.broadcast %cst_168 : f32 to vector<8x1xf32>
    %276 = arith.addf %272, %275 : vector<8x1xf32>
    %277 = math.rsqrt %276 : vector<8x1xf32>
    %278 = vector.broadcast %277 : vector<8x1xf32> to vector<8x32xf32>
    %279 = arith.mulf %274, %278 : vector<8x32xf32>
    %c0_169 = arith.constant 0 : index
    %c0_170 = arith.constant 0 : index
    %c0_171 = arith.constant 0 : index
    %280 = vector.load %arg8[%c0_169, %c0_170, %c0_171] : memref<1x1x32xf32, #tpu.memory_space<vmem>>, vector<1x1x32xf32>
    %281 = vector.shape_cast %280 : vector<1x1x32xf32> to vector<1x32xf32>
    %282 = vector.broadcast %281 : vector<1x32xf32> to vector<8x32xf32>
    %283 = arith.mulf %279, %282 : vector<8x32xf32>
    %c0_172 = arith.constant 0 : index
    %c0_173 = arith.constant 0 : index
    %c0_174 = arith.constant 0 : index
    %284 = vector.load %arg9[%c0_172, %c0_173, %c0_174] : memref<1x1x32xf32, #tpu.memory_space<vmem>>, vector<1x1x32xf32>
    %285 = vector.shape_cast %284 : vector<1x1x32xf32> to vector<1x32xf32>
    %286 = vector.broadcast %285 : vector<1x32xf32> to vector<8x32xf32>
    %287 = arith.addf %283, %286 : vector<8x32xf32>
    %288 = arith.addf %190, %287 : vector<8x32xf32>
    %289 = arith.truncf %288 : vector<8x32xf32> to vector<8x32xbf16>
    %c1_175 = arith.constant 1 : index
    %c1_176 = arith.constant 1 : index
    %c0_177 = arith.constant 0 : index
    %290 = vector.load %arg18[%c1_175, %c1_176, %c0_177] : memref<2x10x32xbf16, #tpu.memory_space<vmem>>, vector<1x8x32xbf16>
    %291 = vector.shape_cast %290 : vector<1x8x32xbf16> to vector<8x32xbf16>
    %292 = vector.shape_cast %289 : vector<8x32xbf16> to vector<1x8x32xbf16>
    tpu.vector_store %arg18[%c1_175, %c1_176, %c0_177], %292 {strides = array<i32>} : memref<2x10x32xbf16, #tpu.memory_space<vmem>>, vector<1x8x32xbf16>,
    %c1_178 = arith.constant 1 : index
    %c0_179 = arith.constant 0 : index
    %c0_180 = arith.constant 0 : index
    %293 = vector.load %arg18[%c1_178, %c0_179, %c0_180] : memref<2x10x32xbf16, #tpu.memory_space<vmem>>, vector<1x8x32xbf16>
    %294 = vector.shape_cast %293 : vector<1x8x32xbf16> to vector<8x32xbf16>
    %c0_181 = arith.constant 0 : index
    %c0_182 = arith.constant 0 : index
    %c0_183 = arith.constant 0 : index
    %c0_184 = arith.constant 0 : index
    %295 = vector.load %arg10[%c0_181, %c0_182, %c0_183, %c0_184] : memref<1x3x32x64xbf16, #tpu.memory_space<vmem>>, vector<1x1x32x64xbf16>
    %296 = vector.shape_cast %295 : vector<1x1x32x64xbf16> to vector<32x64xbf16>
    %cst_185 = arith.constant dense<0.000000e+00> : vector<8x64xf32>
    %297 = tpu.matmul %294, %296, %cst_185 {dimension_numbers = #tpu.dot_dimension_numbers<[1], [0], [0], [1], [0, 0, 1, 1], [], []>} : vector<8x32xbf16>, vector<32x64xbf16>, vector<8x64xf32> -> vector<8x64xf32>
    %c1_186 = arith.constant 1 : index
    %c1_187 = arith.constant 1 : index
    %c0_188 = arith.constant 0 : index
    %298 = vector.load %arg18[%c1_186, %c1_187, %c0_188] : memref<2x10x32xbf16, #tpu.memory_space<vmem>>, vector<1x8x32xbf16>
    %299 = vector.shape_cast %298 : vector<1x8x32xbf16> to vector<8x32xbf16>
    %c0_189 = arith.constant 0 : index
    %c1_190 = arith.constant 1 : index
    %c0_191 = arith.constant 0 : index
    %c0_192 = arith.constant 0 : index
    %300 = vector.load %arg10[%c0_189, %c1_190, %c0_191, %c0_192] : memref<1x3x32x64xbf16, #tpu.memory_space<vmem>>, vector<1x1x32x64xbf16>
    %301 = vector.shape_cast %300 : vector<1x1x32x64xbf16> to vector<32x64xbf16>
    %cst_193 = arith.constant dense<0.000000e+00> : vector<8x64xf32>
    %302 = tpu.matmul %299, %301, %cst_193 {dimension_numbers = #tpu.dot_dimension_numbers<[1], [0], [0], [1], [0, 0, 1, 1], [], []>} : vector<8x32xbf16>, vector<32x64xbf16>, vector<8x64xf32> -> vector<8x64xf32>
    %303 = arith.addf %297, %302 : vector<8x64xf32>
    %c1_194 = arith.constant 1 : index
    %c2_195 = arith.constant 2 : index
    %c0_196 = arith.constant 0 : index
    %304 = vector.load %arg18[%c1_194, %c2_195, %c0_196] : memref<2x10x32xbf16, #tpu.memory_space<vmem>>, vector<1x8x32xbf16>
    %305 = vector.shape_cast %304 : vector<1x8x32xbf16> to vector<8x32xbf16>
    %c0_197 = arith.constant 0 : index
    %c2_198 = arith.constant 2 : index
    %c0_199 = arith.constant 0 : index
    %c0_200 = arith.constant 0 : index
    %306 = vector.load %arg10[%c0_197, %c2_198, %c0_199, %c0_200] : memref<1x3x32x64xbf16, #tpu.memory_space<vmem>>, vector<1x1x32x64xbf16>
    %307 = vector.shape_cast %306 : vector<1x1x32x64xbf16> to vector<32x64xbf16>
    %cst_201 = arith.constant dense<0.000000e+00> : vector<8x64xf32>
    %308 = tpu.matmul %305, %307, %cst_201 {dimension_numbers = #tpu.dot_dimension_numbers<[1], [0], [0], [1], [0, 0, 1, 1], [], []>} : vector<8x32xbf16>, vector<32x64xbf16>, vector<8x64xf32> -> vector<8x64xf32>
    %309 = arith.addf %303, %308 : vector<8x64xf32>
    %c0_202 = arith.constant 0 : index
    %c0_203 = arith.constant 0 : index
    %c0_204 = arith.constant 0 : index
    %310 = vector.load %arg11[%c0_202, %c0_203, %c0_204] : memref<1x1x64xf32, #tpu.memory_space<vmem>>, vector<1x1x64xf32>
    %311 = vector.shape_cast %310 : vector<1x1x64xf32> to vector<1x64xf32>
    %312 = vector.broadcast %311 : vector<1x64xf32> to vector<8x64xf32>
    %313 = arith.addf %309, %312 : vector<8x64xf32>
    %cst_205 = arith.constant 0.000000e+00 : f32
    %314 = vector.broadcast %cst_205 : f32 to vector<8x64xf32>
    %315 = arith.maximumf %313, %314 : vector<8x64xf32>
    %316 = arith.truncf %315 : vector<8x64xf32> to vector<8x64xbf16>
    %c1_206 = arith.constant 1 : index
    %c1_207 = arith.constant 1 : index
    %c0_208 = arith.constant 0 : index
    %317 = vector.load %arg19[%c1_206, %c1_207, %c0_208] : memref<2x10x64xbf16, #tpu.memory_space<vmem>>, vector<1x8x64xbf16>
    %318 = vector.shape_cast %317 : vector<1x8x64xbf16> to vector<8x64xbf16>
    %319 = vector.shape_cast %316 : vector<8x64xbf16> to vector<1x8x64xbf16>
    tpu.vector_store %arg19[%c1_206, %c1_207, %c0_208], %319 {strides = array<i32>} : memref<2x10x64xbf16, #tpu.memory_space<vmem>>, vector<1x8x64xbf16>,
    %c1_209 = arith.constant 1 : index
    %c0_210 = arith.constant 0 : index
    %c0_211 = arith.constant 0 : index
    %320 = vector.load %arg19[%c1_209, %c0_210, %c0_211] : memref<2x10x64xbf16, #tpu.memory_space<vmem>>, vector<1x8x64xbf16>
    %321 = vector.shape_cast %320 : vector<1x8x64xbf16> to vector<8x64xbf16>
    %c0_212 = arith.constant 0 : index
    %c0_213 = arith.constant 0 : index
    %c0_214 = arith.constant 0 : index
    %c0_215 = arith.constant 0 : index
    %322 = vector.load %arg12[%c0_212, %c0_213, %c0_214, %c0_215] : memref<1x3x64x32xbf16, #tpu.memory_space<vmem>>, vector<1x1x64x32xbf16>
    %323 = vector.shape_cast %322 : vector<1x1x64x32xbf16> to vector<64x32xbf16>
    %cst_216 = arith.constant dense<0.000000e+00> : vector<8x32xf32>
    %324 = tpu.matmul %321, %323, %cst_216 {dimension_numbers = #tpu.dot_dimension_numbers<[1], [0], [0], [1], [0, 0, 1, 1], [], []>} : vector<8x64xbf16>, vector<64x32xbf16>, vector<8x32xf32> -> vector<8x32xf32>
    %c1_217 = arith.constant 1 : index
    %c1_218 = arith.constant 1 : index
    %c0_219 = arith.constant 0 : index
    %325 = vector.load %arg19[%c1_217, %c1_218, %c0_219] : memref<2x10x64xbf16, #tpu.memory_space<vmem>>, vector<1x8x64xbf16>
    %326 = vector.shape_cast %325 : vector<1x8x64xbf16> to vector<8x64xbf16>
    %c0_220 = arith.constant 0 : index
    %c1_221 = arith.constant 1 : index
    %c0_222 = arith.constant 0 : index
    %c0_223 = arith.constant 0 : index
    %327 = vector.load %arg12[%c0_220, %c1_221, %c0_222, %c0_223] : memref<1x3x64x32xbf16, #tpu.memory_space<vmem>>, vector<1x1x64x32xbf16>
    %328 = vector.shape_cast %327 : vector<1x1x64x32xbf16> to vector<64x32xbf16>
    %cst_224 = arith.constant dense<0.000000e+00> : vector<8x32xf32>
    %329 = tpu.matmul %326, %328, %cst_224 {dimension_numbers = #tpu.dot_dimension_numbers<[1], [0], [0], [1], [0, 0, 1, 1], [], []>} : vector<8x64xbf16>, vector<64x32xbf16>, vector<8x32xf32> -> vector<8x32xf32>
    %330 = arith.addf %324, %329 : vector<8x32xf32>
    %c1_225 = arith.constant 1 : index
    %c2_226 = arith.constant 2 : index
    %c0_227 = arith.constant 0 : index
    %331 = vector.load %arg19[%c1_225, %c2_226, %c0_227] : memref<2x10x64xbf16, #tpu.memory_space<vmem>>, vector<1x8x64xbf16>
    %332 = vector.shape_cast %331 : vector<1x8x64xbf16> to vector<8x64xbf16>
    %c0_228 = arith.constant 0 : index
    %c2_229 = arith.constant 2 : index
    %c0_230 = arith.constant 0 : index
    %c0_231 = arith.constant 0 : index
    %333 = vector.load %arg12[%c0_228, %c2_229, %c0_230, %c0_231] : memref<1x3x64x32xbf16, #tpu.memory_space<vmem>>, vector<1x1x64x32xbf16>
    %334 = vector.shape_cast %333 : vector<1x1x64x32xbf16> to vector<64x32xbf16>
    %cst_232 = arith.constant dense<0.000000e+00> : vector<8x32xf32>
    %335 = tpu.matmul %332, %334, %cst_232 {dimension_numbers = #tpu.dot_dimension_numbers<[1], [0], [0], [1], [0, 0, 1, 1], [], []>} : vector<8x64xbf16>, vector<64x32xbf16>, vector<8x32xf32> -> vector<8x32xf32>
    %336 = arith.addf %330, %335 : vector<8x32xf32>
    %c0_233 = arith.constant 0 : index
    %c0_234 = arith.constant 0 : index
    %c0_235 = arith.constant 0 : index
    %337 = vector.load %arg13[%c0_233, %c0_234, %c0_235] : memref<1x1x32xf32, #tpu.memory_space<vmem>>, vector<1x1x32xf32>
    %338 = vector.shape_cast %337 : vector<1x1x32xf32> to vector<1x32xf32>
    %339 = vector.broadcast %338 : vector<1x32xf32> to vector<8x32xf32>
    %340 = arith.addf %336, %339 : vector<8x32xf32>
    %cst_236 = arith.constant dense<0.000000e+00> : vector<8xf32>
    %341 = vector.multi_reduction <add>, %340, %cst_236 [1] : vector<8x32xf32> to vector<8xf32>
    %342 = vector.shape_cast %341 : vector<8xf32> to vector<8x1xf32>
    %cst_237 = arith.constant 3.200000e+01 : f32
    %343 = vector.broadcast %cst_237 : f32 to vector<8x1xf32>
    %344 = arith.divf %342, %343 : vector<8x1xf32>
    %345 = vector.broadcast %344 : vector<8x1xf32> to vector<8x32xf32>
    %346 = arith.subf %340, %345 : vector<8x32xf32>
    %347 = arith.mulf %346, %346 : vector<8x32xf32>
    %cst_238 = arith.constant dense<0.000000e+00> : vector<8xf32>
    %348 = vector.multi_reduction <add>, %347, %cst_238 [1] : vector<8x32xf32> to vector<8xf32>
    %349 = vector.shape_cast %348 : vector<8xf32> to vector<8x1xf32>
    %cst_239 = arith.constant 3.200000e+01 : f32
    %350 = vector.broadcast %cst_239 : f32 to vector<8x1xf32>
    %351 = arith.divf %349, %350 : vector<8x1xf32>
    %352 = vector.broadcast %344 : vector<8x1xf32> to vector<8x32xf32>
    %353 = arith.subf %340, %352 : vector<8x32xf32>
    %cst_240 = arith.constant 9.99999974E-6 : f32
    %354 = vector.broadcast %cst_240 : f32 to vector<8x1xf32>
    %355 = arith.addf %351, %354 : vector<8x1xf32>
    %356 = math.rsqrt %355 : vector<8x1xf32>
    %357 = vector.broadcast %356 : vector<8x1xf32> to vector<8x32xf32>
    %358 = arith.mulf %353, %357 : vector<8x32xf32>
    %c0_241 = arith.constant 0 : index
    %c0_242 = arith.constant 0 : index
    %c0_243 = arith.constant 0 : index
    %359 = vector.load %arg14[%c0_241, %c0_242, %c0_243] : memref<1x1x32xf32, #tpu.memory_space<vmem>>, vector<1x1x32xf32>
    %360 = vector.shape_cast %359 : vector<1x1x32xf32> to vector<1x32xf32>
    %361 = vector.broadcast %360 : vector<1x32xf32> to vector<8x32xf32>
    %362 = arith.mulf %358, %361 : vector<8x32xf32>
    %c0_244 = arith.constant 0 : index
    %c0_245 = arith.constant 0 : index
    %c0_246 = arith.constant 0 : index
    %363 = vector.load %arg15[%c0_244, %c0_245, %c0_246] : memref<1x1x32xf32, #tpu.memory_space<vmem>>, vector<1x1x32xf32>
    %364 = vector.shape_cast %363 : vector<1x1x32xf32> to vector<1x32xf32>
    %365 = vector.broadcast %364 : vector<1x32xf32> to vector<8x32xf32>
    %366 = arith.addf %362, %365 : vector<8x32xf32>
    %367 = arith.addf %288, %366 : vector<8x32xf32>
    %c1_247 = arith.constant 1 : index
    %c0_248 = arith.constant 0 : index
    %c0_249 = arith.constant 0 : index
    %368 = vector.load %arg16[%c1_247, %c0_248, %c0_249] : memref<2x8x32xf32, #tpu.memory_space<vmem>>, vector<1x8x32xf32>
    %369 = vector.shape_cast %368 : vector<1x8x32xf32> to vector<8x32xf32>
    %370 = vector.shape_cast %367 : vector<8x32xf32> to vector<1x8x32xf32>
    tpu.vector_store %arg16[%c1_247, %c0_248, %c0_249], %370 {strides = array<i32>} : memref<2x8x32xf32, #tpu.memory_space<vmem>>, vector<1x8x32xf32>,
    return
  }
  func.func @transform_0(%arg0: i32, %arg1: i32) -> (i32, i32, i32) {
    %c0_i32 = arith.constant 0 : i32
    %c0_i32_0 = arith.constant 0 : i32
    %c0_i32_1 = arith.constant 0 : i32
    return %arg0, %c0_i32, %c0_i32_0 : i32, i32, i32
  }
  func.func @transform_1(%arg0: i32, %arg1: i32) -> (i32, i32, i32, i32) {
    %c0_i32 = arith.constant 0 : i32
    %c0_i32_0 = arith.constant 0 : i32
    %c0_i32_1 = arith.constant 0 : i32
    %c0_i32_2 = arith.constant 0 : i32
    return %arg0, %c0_i32, %c0_i32_0, %c0_i32_1 : i32, i32, i32, i32
  }
  func.func @transform_2(%arg0: i32, %arg1: i32) -> (i32, i32, i32) {
    %c0_i32 = arith.constant 0 : i32
    %c0_i32_0 = arith.constant 0 : i32
    %c0_i32_1 = arith.constant 0 : i32
    return %arg1, %c0_i32, %c0_i32_0 : i32, i32, i32
  }
  func.func @transform_3(%arg0: i32, %arg1: i32) -> (i32, i32, i32) {
    %c0_i32 = arith.constant 0 : i32
    %c0_i32_0 = arith.constant 0 : i32
    %c0_i32_1 = arith.constant 0 : i32
    return %arg1, %c0_i32, %c0_i32_0 : i32, i32, i32
  }
  func.func @transform_4(%arg0: i32, %arg1: i32) -> (i32, i32, i32) {
    %c0_i32 = arith.constant 0 : i32
    %c0_i32_0 = arith.constant 0 : i32
    %c0_i32_1 = arith.constant 0 : i32
    return %arg1, %c0_i32, %c0_i32_0 : i32, i32, i32
  }
  func.func @transform_5(%arg0: i32, %arg1: i32) -> (i32, i32, i32) {
    %c0_i32 = arith.constant 0 : i32
    %c0_i32_0 = arith.constant 0 : i32
    %c0_i32_1 = arith.constant 0 : i32
    return %arg1, %c0_i32, %c0_i32_0 : i32, i32, i32
  }
  func.func @transform_6(%arg0: i32, %arg1: i32) -> (i32, i32, i32) {
    %c0_i32 = arith.constant 0 : i32
    %c0_i32_0 = arith.constant 0 : i32
    %c0_i32_1 = arith.constant 0 : i32
    return %arg1, %c0_i32, %c0_i32_0 : i32, i32, i32
  }
  func.func @transform_7(%arg0: i32, %arg1: i32) -> (i32, i32, i32) {
    %c0_i32 = arith.constant 0 : i32
    %c0_i32_0 = arith.constant 0 : i32
    %c0_i32_1 = arith.constant 0 : i32
    return %arg1, %c0_i32, %c0_i32_0 : i32, i32, i32
  }
  func.func @transform_8(%arg0: i32, %arg1: i32) -> (i32, i32, i32, i32) {
    %c0_i32 = arith.constant 0 : i32
    %c0_i32_0 = arith.constant 0 : i32
    %c0_i32_1 = arith.constant 0 : i32
    %c0_i32_2 = arith.constant 0 : i32
    return %arg1, %c0_i32, %c0_i32_0, %c0_i32_1 : i32, i32, i32, i32
  }
  func.func @transform_9(%arg0: i32, %arg1: i32) -> (i32, i32, i32) {
    %c0_i32 = arith.constant 0 : i32
    %c0_i32_0 = arith.constant 0 : i32
    %c0_i32_1 = arith.constant 0 : i32
    return %arg1, %c0_i32, %c0_i32_0 : i32, i32, i32
  }
  func.func @transform_10(%arg0: i32, %arg1: i32) -> (i32, i32, i32, i32) {
    %c0_i32 = arith.constant 0 : i32
    %c0_i32_0 = arith.constant 0 : i32
    %c0_i32_1 = arith.constant 0 : i32
    %c0_i32_2 = arith.constant 0 : i32
    return %arg1, %c0_i32, %c0_i32_0, %c0_i32_1 : i32, i32, i32, i32
  }
  func.func @transform_11(%arg0: i32, %arg1: i32) -> (i32, i32, i32) {
    %c0_i32 = arith.constant 0 : i32
    %c0_i32_0 = arith.constant 0 : i32
    %c0_i32_1 = arith.constant 0 : i32
    return %arg1, %c0_i32, %c0_i32_0 : i32, i32, i32
  }
  func.func @transform_12(%arg0: i32, %arg1: i32) -> (i32, i32, i32) {
    %c0_i32 = arith.constant 0 : i32
    %c0_i32_0 = arith.constant 0 : i32
    %c0_i32_1 = arith.constant 0 : i32
    return %arg1, %c0_i32, %c0_i32_0 : i32, i32, i32
  }
  func.func @transform_13(%arg0: i32, %arg1: i32) -> (i32, i32, i32) {
    %c0_i32 = arith.constant 0 : i32
    %c0_i32_0 = arith.constant 0 : i32
    %c0_i32_1 = arith.constant 0 : i32
    return %arg1, %c0_i32, %c0_i32_0 : i32, i32, i32
  }
  func.func @transform_14(%arg0: i32, %arg1: i32) -> (i32, i32, i32) {
    %c0_i32 = arith.constant 0 : i32
    %c0_i32_0 = arith.constant 0 : i32
    %c0_i32_1 = arith.constant 0 : i32
    return %arg0, %c0_i32, %c0_i32_0 : i32, i32, i32
  }
}

</mosaic_0001>

<llo_original>
// kernel: tpu_custom_call.1
$region0: #{tpu_custom_call.1}
  #allocation0 [shape = 'u32[]', space=smem, size = 0x4, offset = 0x4, fixed_abs, tag = 'smem constant byte address 0x4 - core index']
  #allocation1 [shape = 'u32[144,128]{1,0:T(1,128)}', space=vmem, size = 0x12000, scoped, tag = 'internal scratch']
  #allocation2 [shape = 'bf16[2,8,32]{2,1,0:T(8,128)(2,1)}', space=vmem, size = 0x1000, scoped, tag = 'scratch operand']
  #allocation3 [shape = 'bf16[2,10,32]{2,1,0:T(8,128)(2,1)}', space=vmem, size = 0x2000, scoped, tag = 'scratch operand']
  #allocation4 [shape = 'bf16[2,10,64]{2,1,0:T(8,128)(2,1)}', space=vmem, size = 0x2000, scoped, tag = 'scratch operand']
  %s0 = inlined_call_operand.vmem [shape: f32[2,8,32], index: 0, kind: input, shape index: {}]
  %s1 = inlined_call_operand.vmem [shape: f32[2,2,1,8], index: 1, kind: input, shape index: {}]
  %s2 = inlined_call_operand.vmem [shape: bf16[2,32,96], index: 2, kind: input, shape index: {}]
  %s3 = inlined_call_operand.vmem [shape: f32[2,1,96], index: 3, kind: input, shape index: {}]
  %s4 = inlined_call_operand.vmem [shape: bf16[2,32,32], index: 4, kind: input, shape index: {}]
  %s5 = inlined_call_operand.vmem [shape: f32[2,1,32], index: 5, kind: input, shape index: {}]
  %s6 = inlined_call_operand.vmem [shape: f32[2,1,32], index: 6, kind: input, shape index: {}]
  %s7 = inlined_call_operand.vmem [shape: f32[2,1,32], index: 7, kind: input, shape index: {}]
  %s8 = inlined_call_operand.vmem [shape: bf16[2,3,32,64], index: 8, kind: input, shape index: {}]
  %s9 = inlined_call_operand.vmem [shape: f32[2,1,64], index: 9, kind: input, shape index: {}]
  %s10 = inlined_call_operand.vmem [shape: bf16[2,3,64,32], index: 10, kind: input, shape index: {}]
  %s11 = inlined_call_operand.vmem [shape: f32[2,1,32], index: 11, kind: input, shape index: {}]
  %s12 = inlined_call_operand.vmem [shape: f32[2,1,32], index: 12, kind: input, shape index: {}]
  %s13 = inlined_call_operand.vmem [shape: f32[2,1,32], index: 13, kind: input, shape index: {}]
  %s14 = inlined_call_operand.hbm [shape: f32[2,8,32], index: 14, kind: output, shape index: {}]
  %s15 = sld [smem:[#allocation0]]
  $region93: #{tpu_custom_call.1} parent=0
    _
  %s17 = ssub.s32 1, %s15
  %s18 = scalar_select 0, %s17, %s15
  $region1: #{tpu_custom_call.1} parent=0
    #allocation5 [shape = 'u8[8192]{0}', space=vmem, size = 0x2000, scoped, tag = 'output window, operand 0, single buffered']
    #allocation6 [shape = 's32[2]{0}', space=sflag, size = 0x8, scoped, tag = 'scoped memory for tpu_custom_call.1']
    %19 = vsyncpa [#allocation6], 0
    loop: start=0, step=1, limit=4
    $region2: #{tpu_custom_call.1} parent=1 // loop_pre_header
      _
    $region3: #{tpu_custom_call.1} parent=1 // loop_header
      %s21 = sphi 0, %s25
      %p22 = scmp.ge.s32.totalorder %s21, 4
      %s28 = sphi 0, %s40
      %s29 = sphi 0, %s36
      %s30 = sphi 0, %s28
      %s31 = sphi 0, %s29
      %s32 = sphi 0, %s30
      %s33 = sphi 0, %s31
      %s43 = sphi 0, %s45
      %s46 = sphi 0, %s43
      %s47 = sphi 0, %s46
      %s63 = sphi 0, %s47
      %s69 = sphi 0, %s71
      %s72 = sphi 0, %s69
      %s73 = sphi 0, %s72
      %s89 = sphi 0, %s73
      %s95 = sphi 0, %s97
      %s98 = sphi 0, %s95
      %s99 = sphi 0, %s98
      %s115 = sphi 0, %s99
      %s121 = sphi 0, %s123
      %s124 = sphi 0, %s121
      %s125 = sphi 0, %s124
      %s141 = sphi 0, %s125
      %s147 = sphi 0, %s149
      %s150 = sphi 0, %s147
      %s151 = sphi 0, %s150
      %s167 = sphi 0, %s151
      %s173 = sphi 0, %s175
      %s176 = sphi 0, %s173
      %s177 = sphi 0, %s176
      %s193 = sphi 0, %s177
      %s199 = sphi 0, %s201
      %s202 = sphi 0, %s199
      %s203 = sphi 0, %s202
      %s219 = sphi 0, %s203
      %s225 = sphi 0, %s227
      %s228 = sphi 0, %s225
      %s229 = sphi 0, %s228
      %s245 = sphi 0, %s229
      %s251 = sphi 0, %s253
      %s254 = sphi 0, %s251
      %s255 = sphi 0, %s254
      %s271 = sphi 0, %s255
      %s277 = sphi 0, %s279
      %s280 = sphi 0, %s277
      %s281 = sphi 0, %s280
      %s297 = sphi 0, %s281
      %s303 = sphi 0, %s305
      %s306 = sphi 0, %s303
      %s307 = sphi 0, %s306
      %s323 = sphi 0, %s307
      %s329 = sphi 0, %s331
      %s332 = sphi 0, %s329
      %s333 = sphi 0, %s332
      %s349 = sphi 0, %s333
      %s355 = sphi 0, %s357
      %s358 = sphi 0, %s355
      %s359 = sphi 0, %s358
      %s375 = sphi 0, %s359
      %s381 = sphi 0, %s383
      %s384 = sphi 0, %s381
      %s385 = sphi 0, %s384
      %s401 = sphi 0, %s385
      %s407 = sphi 0, %s409
      %s410 = sphi 0, %s407
      %s411 = sphi 0, %s410
      %s427 = sphi 0, %s411
    $region4: #{tpu_custom_call.1} parent=1 // loop_header_branch
      %24 = sbr.rel (%p22) target = $region8
    $region5: #{tpu_custom_call.1} parent=1 // loop_body
      %s26 = ssub.s32 %s21, 1
      %s27 = ssub.s32 %s21, 2
      %s34 = sadd.s32 1, %s29
      %p35 = scmp.ge.s32.totalorder %s34, 2
      %s36 = scalar_select %p35, 0, %s34
      %s37 = sadd.s32 1, %s28
      %s38 = scalar_select %p35, %s37, %s28
      %p39 = scmp.ge.s32.totalorder %s38, 1
      %s40 = scalar_select %p39, 0, %s38
      %s41 = ssub.s32 %s28, %s40
      %p42 = scmp.eq.s32.totalorder %s41, 0
      %s44 = sadd.s32 %s43, 1
      %s45 = scalar_select %p42, %s43, %s44
      %p48 = pneg %p42
      %p49 = scmp.eq.s32.totalorder %s21, 1
      %p50 = por %p48, %p49
      %p51 = scmp.ne.s32.totalorder %s43, %s46
      %p52 = scmp.eq.s32.totalorder %s21, 0
      %p53 = por %p51, %p52
      %p54 = scmp.ne.s32.totalorder %s43, %s46
      %p55 = scmp.eq.s32.totalorder %s26, 1
      %p56 = por %p54, %p55
      %p57 = scmp.ne.s32.totalorder %s46, %s47
      %p58 = scmp.eq.s32.totalorder %s26, 0
      %p59 = por %p57, %p58
      %p60 = scmp.ne.s32.totalorder %s46, %s47
      %p61 = scmp.eq.s32.totalorder %s27, 1
      %p62 = por %p60, %p61
      %p64 = scmp.ne.s32.totalorder %s47, %s63
      %p65 = scmp.eq.s32.totalorder %s27, 0
      %p66 = por %p64, %p65
      %s67 = ssub.s32 %s28, %s40
      %p68 = scmp.eq.s32.totalorder %s67, 0
      %s70 = sadd.s32 %s69, 1
      %s71 = scalar_select %p68, %s69, %s70
      %p74 = pneg %p68
      %p75 = scmp.eq.s32.totalorder %s21, 1
      %p76 = por %p74, %p75
      %p77 = scmp.ne.s32.totalorder %s69, %s72
      %p78 = scmp.eq.s32.totalorder %s21, 0
      %p79 = por %p77, %p78
      %p80 = scmp.ne.s32.totalorder %s69, %s72
      %p81 = scmp.eq.s32.totalorder %s26, 1
      %p82 = por %p80, %p81
      %p83 = scmp.ne.s32.totalorder %s72, %s73
      %p84 = scmp.eq.s32.totalorder %s26, 0
      %p85 = por %p83, %p84
      %p86 = scmp.ne.s32.totalorder %s72, %s73
      %p87 = scmp.eq.s32.totalorder %s27, 1
      %p88 = por %p86, %p87
      %p90 = scmp.ne.s32.totalorder %s73, %s89
      %p91 = scmp.eq.s32.totalorder %s27, 0
      %p92 = por %p90, %p91
      %s93 = ssub.s32 %s29, %s36
      %p94 = scmp.eq.s32.totalorder %s93, 0
      %s96 = sadd.s32 %s95, 1
      %s97 = scalar_select %p94, %s95, %s96
      %p100 = pneg %p94
      %p101 = scmp.eq.s32.totalorder %s21, 1
      %p102 = por %p100, %p101
      %p103 = scmp.ne.s32.totalorder %s95, %s98
      %p104 = scmp.eq.s32.totalorder %s21, 0
      %p105 = por %p103, %p104
      %p106 = scmp.ne.s32.totalorder %s95, %s98
      %p107 = scmp.eq.s32.totalorder %s26, 1
      %p108 = por %p106, %p107
      %p109 = scmp.ne.s32.totalorder %s98, %s99
      %p110 = scmp.eq.s32.totalorder %s26, 0
      %p111 = por %p109, %p110
      %p112 = scmp.ne.s32.totalorder %s98, %s99
      %p113 = scmp.eq.s32.totalorder %s27, 1
      %p114 = por %p112, %p113
      %p116 = scmp.ne.s32.totalorder %s99, %s115
      %p117 = scmp.eq.s32.totalorder %s27, 0
      %p118 = por %p116, %p117
      %s119 = ssub.s32 %s29, %s36
      %p120 = scmp.eq.s32.totalorder %s119, 0
      %s122 = sadd.s32 %s121, 1
      %s123 = scalar_select %p120, %s121, %s122
      %p126 = pneg %p120
      %p127 = scmp.eq.s32.totalorder %s21, 1
      %p128 = por %p126, %p127
      %p129 = scmp.ne.s32.totalorder %s121, %s124
      %p130 = scmp.eq.s32.totalorder %s21, 0
      %p131 = por %p129, %p130
      %p132 = scmp.ne.s32.totalorder %s121, %s124
      %p133 = scmp.eq.s32.totalorder %s26, 1
      %p134 = por %p132, %p133
      %p135 = scmp.ne.s32.totalorder %s124, %s125
      %p136 = scmp.eq.s32.totalorder %s26, 0
      %p137 = por %p135, %p136
      %p138 = scmp.ne.s32.totalorder %s124, %s125
      %p139 = scmp.eq.s32.totalorder %s27, 1
      %p140 = por %p138, %p139
      %p142 = scmp.ne.s32.totalorder %s125, %s141
      %p143 = scmp.eq.s32.totalorder %s27, 0
      %p144 = por %p142, %p143
      %s145 = ssub.s32 %s29, %s36
      %p146 = scmp.eq.s32.totalorder %s145, 0
      %s148 = sadd.s32 %s147, 1
      %s149 = scalar_select %p146, %s147, %s148
      %p152 = pneg %p146
      %p153 = scmp.eq.s32.totalorder %s21, 1
      %p154 = por %p152, %p153
      %p155 = scmp.ne.s32.totalorder %s147, %s150
      %p156 = scmp.eq.s32.totalorder %s21, 0
      %p157 = por %p155, %p156
      %p158 = scmp.ne.s32.totalorder %s147, %s150
      %p159 = scmp.eq.s32.totalorder %s26, 1
      %p160 = por %p158, %p159
      %p161 = scmp.ne.s32.totalorder %s150, %s151
      %p162 = scmp.eq.s32.totalorder %s26, 0
      %p163 = por %p161, %p162
      %p164 = scmp.ne.s32.totalorder %s150, %s151
      %p165 = scmp.eq.s32.totalorder %s27, 1
      %p166 = por %p164, %p165
      %p168 = scmp.ne.s32.totalorder %s151, %s167
      %p169 = scmp.eq.s32.totalorder %s27, 0
      %p170 = por %p168, %p169
      %s171 = ssub.s32 %s29, %s36
      %p172 = scmp.eq.s32.totalorder %s171, 0
      %s174 = sadd.s32 %s173, 1
      %s175 = scalar_select %p172, %s173, %s174
      %p178 = pneg %p172
      %p179 = scmp.eq.s32.totalorder %s21, 1
      %p180 = por %p178, %p179
      %p181 = scmp.ne.s32.totalorder %s173, %s176
      %p182 = scmp.eq.s32.totalorder %s21, 0
      %p183 = por %p181, %p182
      %p184 = scmp.ne.s32.totalorder %s173, %s176
      %p185 = scmp.eq.s32.totalorder %s26, 1
      %p186 = por %p184, %p185
      %p187 = scmp.ne.s32.totalorder %s176, %s177
      %p188 = scmp.eq.s32.totalorder %s26, 0
      %p189 = por %p187, %p188
      %p190 = scmp.ne.s32.totalorder %s176, %s177
      %p191 = scmp.eq.s32.totalorder %s27, 1
      %p192 = por %p190, %p191
      %p194 = scmp.ne.s32.totalorder %s177, %s193
      %p195 = scmp.eq.s32.totalorder %s27, 0
      %p196 = por %p194, %p195
      %s197 = ssub.s32 %s29, %s36
      %p198 = scmp.eq.s32.totalorder %s197, 0
      %s200 = sadd.s32 %s199, 1
      %s201 = scalar_select %p198, %s199, %s200
      %p204 = pneg %p198
      %p205 = scmp.eq.s32.totalorder %s21, 1
      %p206 = por %p204, %p205
      %p207 = scmp.ne.s32.totalorder %s199, %s202
      %p208 = scmp.eq.s32.totalorder %s21, 0
      %p209 = por %p207, %p208
      %p210 = scmp.ne.s32.totalorder %s199, %s202
      %p211 = scmp.eq.s32.totalorder %s26, 1
      %p212 = por %p210, %p211
      %p213 = scmp.ne.s32.totalorder %s202, %s203
      %p214 = scmp.eq.s32.totalorder %s26, 0
      %p215 = por %p213, %p214
      %p216 = scmp.ne.s32.totalorder %s202, %s203
      %p217 = scmp.eq.s32.totalorder %s27, 1
      %p218 = por %p216, %p217
      %p220 = scmp.ne.s32.totalorder %s203, %s219
      %p221 = scmp.eq.s32.totalorder %s27, 0
      %p222 = por %p220, %p221
      %s223 = ssub.s32 %s29, %s36
      %p224 = scmp.eq.s32.totalorder %s223, 0
      %s226 = sadd.s32 %s225, 1
      %s227 = scalar_select %p224, %s225, %s226
      %p230 = pneg %p224
      %p231 = scmp.eq.s32.totalorder %s21, 1
      %p232 = por %p230, %p231
      %p233 = scmp.ne.s32.totalorder %s225, %s228
      %p234 = scmp.eq.s32.totalorder %s21, 0
      %p235 = por %p233, %p234
      %p236 = scmp.ne.s32.totalorder %s225, %s228
      %p237 = scmp.eq.s32.totalorder %s26, 1
      %p238 = por %p236, %p237
      %p239 = scmp.ne.s32.totalorder %s228, %s229
      %p240 = scmp.eq.s32.totalorder %s26, 0
      %p241 = por %p239, %p240
      %p242 = scmp.ne.s32.totalorder %s228, %s229
      %p243 = scmp.eq.s32.totalorder %s27, 1
      %p244 = por %p242, %p243
      %p246 = scmp.ne.s32.totalorder %s229, %s245
      %p247 = scmp.eq.s32.totalorder %s27, 0
      %p248 = por %p246, %p247
      %s249 = ssub.s32 %s29, %s36
      %p250 = scmp.eq.s32.totalorder %s249, 0
      %s252 = sadd.s32 %s251, 1
      %s253 = scalar_select %p250, %s251, %s252
      %p256 = pneg %p250
      %p257 = scmp.eq.s32.totalorder %s21, 1
      %p258 = por %p256, %p257
      %p259 = scmp.ne.s32.totalorder %s251, %s254
      %p260 = scmp.eq.s32.totalorder %s21, 0
      %p261 = por %p259, %p260
      %p262 = scmp.ne.s32.totalorder %s251, %s254
      %p263 = scmp.eq.s32.totalorder %s26, 1
      %p264 = por %p262, %p263
      %p265 = scmp.ne.s32.totalorder %s254, %s255
      %p266 = scmp.eq.s32.totalorder %s26, 0
      %p267 = por %p265, %p266
      %p268 = scmp.ne.s32.totalorder %s254, %s255
      %p269 = scmp.eq.s32.totalorder %s27, 1
      %p270 = por %p268, %p269
      %p272 = scmp.ne.s32.totalorder %s255, %s271
      %p273 = scmp.eq.s32.totalorder %s27, 0
      %p274 = por %p272, %p273
      %s275 = ssub.s32 %s29, %s36
      %p276 = scmp.eq.s32.totalorder %s275, 0
      %s278 = sadd.s32 %s277, 1
      %s279 = scalar_select %p276, %s277, %s278
      %p282 = pneg %p276
      %p283 = scmp.eq.s32.totalorder %s21, 1
      %p284 = por %p282, %p283
      %p285 = scmp.ne.s32.totalorder %s277, %s280
      %p286 = scmp.eq.s32.totalorder %s21, 0
      %p287 = por %p285, %p286
      %p288 = scmp.ne.s32.totalorder %s277, %s280
      %p289 = scmp.eq.s32.totalorder %s26, 1
      %p290 = por %p288, %p289
      %p291 = scmp.ne.s32.totalorder %s280, %s281
      %p292 = scmp.eq.s32.totalorder %s26, 0
      %p293 = por %p291, %p292
      %p294 = scmp.ne.s32.totalorder %s280, %s281
      %p295 = scmp.eq.s32.totalorder %s27, 1
      %p296 = por %p294, %p295
      %p298 = scmp.ne.s32.totalorder %s281, %s297
      %p299 = scmp.eq.s32.totalorder %s27, 0
      %p300 = por %p298, %p299
      %s301 = ssub.s32 %s29, %s36
      %p302 = scmp.eq.s32.totalorder %s301, 0
      %s304 = sadd.s32 %s303, 1
      %s305 = scalar_select %p302, %s303, %s304
      %p308 = pneg %p302
      %p309 = scmp.eq.s32.totalorder %s21, 1
      %p310 = por %p308, %p309
      %p311 = scmp.ne.s32.totalorder %s303, %s306
      %p312 = scmp.eq.s32.totalorder %s21, 0
      %p313 = por %p311, %p312
      %p314 = scmp.ne.s32.totalorder %s303, %s306
      %p315 = scmp.eq.s32.totalorder %s26, 1
      %p316 = por %p314, %p315
      %p317 = scmp.ne.s32.totalorder %s306, %s307
      %p318 = scmp.eq.s32.totalorder %s26, 0
      %p319 = por %p317, %p318
      %p320 = scmp.ne.s32.totalorder %s306, %s307
      %p321 = scmp.eq.s32.totalorder %s27, 1
      %p322 = por %p320, %p321
      %p324 = scmp.ne.s32.totalorder %s307, %s323
      %p325 = scmp.eq.s32.totalorder %s27, 0
      %p326 = por %p324, %p325
      %s327 = ssub.s32 %s29, %s36
      %p328 = scmp.eq.s32.totalorder %s327, 0
      %s330 = sadd.s32 %s329, 1
      %s331 = scalar_select %p328, %s329, %s330
      %p334 = pneg %p328
      %p335 = scmp.eq.s32.totalorder %s21, 1
      %p336 = por %p334, %p335
      %p337 = scmp.ne.s32.totalorder %s329, %s332
      %p338 = scmp.eq.s32.totalorder %s21, 0
      %p339 = por %p337, %p338
      %p340 = scmp.ne.s32.totalorder %s329, %s332
      %p341 = scmp.eq.s32.totalorder %s26, 1
      %p342 = por %p340, %p341
      %p343 = scmp.ne.s32.totalorder %s332, %s333
      %p344 = scmp.eq.s32.totalorder %s26, 0
      %p345 = por %p343, %p344
      %p346 = scmp.ne.s32.totalorder %s332, %s333
      %p347 = scmp.eq.s32.totalorder %s27, 1
      %p348 = por %p346, %p347
      %p350 = scmp.ne.s32.totalorder %s333, %s349
      %p351 = scmp.eq.s32.totalorder %s27, 0
      %p352 = por %p350, %p351
      %s353 = ssub.s32 %s29, %s36
      %p354 = scmp.eq.s32.totalorder %s353, 0
      %s356 = sadd.s32 %s355, 1
      %s357 = scalar_select %p354, %s355, %s356
      %p360 = pneg %p354
      %p361 = scmp.eq.s32.totalorder %s21, 1
      %p362 = por %p360, %p361
      %p363 = scmp.ne.s32.totalorder %s355, %s358
      %p364 = scmp.eq.s32.totalorder %s21, 0
      %p365 = por %p363, %p364
      %p366 = scmp.ne.s32.totalorder %s355, %s358
      %p367 = scmp.eq.s32.totalorder %s26, 1
      %p368 = por %p366, %p367
      %p369 = scmp.ne.s32.totalorder %s358, %s359
      %p370 = scmp.eq.s32.totalorder %s26, 0
      %p371 = por %p369, %p370
      %p372 = scmp.ne.s32.totalorder %s358, %s359
      %p373 = scmp.eq.s32.totalorder %s27, 1
      %p374 = por %p372, %p373
      %p376 = scmp.ne.s32.totalorder %s359, %s375
      %p377 = scmp.eq.s32.totalorder %s27, 0
      %p378 = por %p376, %p377
      %s379 = ssub.s32 %s29, %s36
      %p380 = scmp.eq.s32.totalorder %s379, 0
      %s382 = sadd.s32 %s381, 1
      %s383 = scalar_select %p380, %s381, %s382
      %p386 = pneg %p380
      %p387 = scmp.eq.s32.totalorder %s21, 1
      %p388 = por %p386, %p387
      %p389 = scmp.ne.s32.totalorder %s381, %s384
      %p390 = scmp.eq.s32.totalorder %s21, 0
      %p391 = por %p389, %p390
      %p392 = scmp.ne.s32.totalorder %s381, %s384
      %p393 = scmp.eq.s32.totalorder %s26, 1
      %p394 = por %p392, %p393
      %p395 = scmp.ne.s32.totalorder %s384, %s385
      %p396 = scmp.eq.s32.totalorder %s26, 0
      %p397 = por %p395, %p396
      %p398 = scmp.ne.s32.totalorder %s384, %s385
      %p399 = scmp.eq.s32.totalorder %s27, 1
      %p400 = por %p398, %p399
      %p402 = scmp.ne.s32.totalorder %s385, %s401
      %p403 = scmp.eq.s32.totalorder %s27, 0
      %p404 = por %p402, %p403
      %s405 = ssub.s32 %s28, %s40
      %p406 = scmp.eq.s32.totalorder %s405, 0
      %s408 = sadd.s32 %s407, 1
      %s409 = scalar_select %p406, %s407, %s408
      %p412 = pneg %p406
      %p413 = scmp.eq.s32.totalorder %s21, 1
      %p414 = por %p412, %p413
      %p415 = scmp.ne.s32.totalorder %s407, %s410
      %p416 = scmp.eq.s32.totalorder %s21, 0
      %p417 = por %p415, %p416
      %p418 = scmp.ne.s32.totalorder %s407, %s410
      %p419 = scmp.eq.s32.totalorder %s26, 1
      %p420 = por %p418, %p419
      %p421 = scmp.ne.s32.totalorder %s410, %s411
      %p422 = scmp.eq.s32.totalorder %s26, 0
      %p423 = por %p421, %p422
      %p424 = scmp.ne.s32.totalorder %s410, %s411
      %p425 = scmp.eq.s32.totalorder %s27, 1
      %p426 = por %p424, %p425
      %p428 = scmp.ne.s32.totalorder %s411, %s427
      %p429 = scmp.eq.s32.totalorder %s27, 0
      %p430 = por %p428, %p429
      %p431 = scmp.le.s32.totalorder 1, %s21
      %p432 = scmp.lt.s32.totalorder %s21, 3
      %p433 = pnand %p431, %p432
      %p434 = pneg %p433
      // Predicated region
      $region9: #{tpu_custom_call.1} parent=5 // pred_check
        _
      $region10: #{tpu_custom_call.1} parent=5 // pred_check_branch
        %436 = sbr.rel (%p433) target = $region12
      $region11: #{tpu_custom_call.1} parent=5 // pred_region
        %s437 = ssub.s32 %s21, 1
        // Predicated region
        $region13: #{tpu_custom_call.1} parent=11 // pred_check
          %p438 = pneg %p59
        $region14: #{tpu_custom_call.1} parent=11 // pred_check_branch
          %440 = sbr.rel (%p438) target = $region16
        $region15: #{tpu_custom_call.1} parent=11 // pred_region
          %s441 = smul.u32 2, %s30
          %p442 = scmp.lt.s32.totalorder %s441, 1
          %s443 = scalar_select %p442, %s441, 1
          %s444 = smul.addr %s443, 8
          %s445 = scalar_lea.vmem %s0, %s444
          %s446 = smul.u32 2, %s30
        $region16: #{tpu_custom_call.1} parent=11 // pred_fallthru
          _
        // Predicated region
        $region17: #{tpu_custom_call.1} parent=11 // pred_check
          %p447 = pneg %p85
        $region18: #{tpu_custom_call.1} parent=11 // pred_check_branch
          %449 = sbr.rel (%p447) target = $region20
        $region19: #{tpu_custom_call.1} parent=11 // pred_region
          %s450 = smul.u32 2, %s30
          %p451 = scmp.lt.s32.totalorder %s450, 1
          %s452 = scalar_select %p451, %s450, 1
          %s453 = smul.addr %s452, 2
          %s454 = scalar_lea.vmem %s1, %s453
          %s455 = smul.u32 2, %s30
        $region20: #{tpu_custom_call.1} parent=11 // pred_fallthru
          _
      $region12: #{tpu_custom_call.1} parent=5 // pred_fallthru
        _
      %p456 = scmp.lt.s32.totalorder %s21, 2
      // Predicated region
      $region21: #{tpu_custom_call.1} parent=5 // pred_check
        %p457 = pneg %p456
      $region22: #{tpu_custom_call.1} parent=5 // pred_check_branch
        %459 = sbr.rel (%p457) target = $region24
      $region23: #{tpu_custom_call.1} parent=5 // pred_region
        // Predicated region
        $region25: #{tpu_custom_call.1} parent=23 // pred_check
          %p460 = pneg %p105
        $region26: #{tpu_custom_call.1} parent=23 // pred_check_branch
          %462 = sbr.rel (%p460) target = $region28
        $region27: #{tpu_custom_call.1} parent=23 // pred_region
          %p463 = scmp.lt.s32.totalorder %s29, 1
          %s464 = scalar_select %p463, %s29, 1
          %s465 = smul.addr %s464, 4
          %s466 = smul.addr %s465, 4
          %s467 = scalar_lea.vmem %s2, %s466
        $region28: #{tpu_custom_call.1} parent=23 // pred_fallthru
          _
        // Predicated region
        $region29: #{tpu_custom_call.1} parent=23 // pred_check
          %p468 = pneg %p131
        $region30: #{tpu_custom_call.1} parent=23 // pred_check_branch
          %470 = sbr.rel (%p468) target = $region32
        $region31: #{tpu_custom_call.1} parent=23 // pred_region
          %p471 = scmp.lt.s32.totalorder %s29, 1
          %s472 = scalar_select %p471, %s29, 1
          %s473 = scalar_lea.vmem %s3, %s472
        $region32: #{tpu_custom_call.1} parent=23 // pred_fallthru
          _
        // Predicated region
        $region33: #{tpu_custom_call.1} parent=23 // pred_check
          %p474 = pneg %p157
        $region34: #{tpu_custom_call.1} parent=23 // pred_check_branch
          %476 = sbr.rel (%p474) target = $region36
        $region35: #{tpu_custom_call.1} parent=23 // pred_region
          %p477 = scmp.lt.s32.totalorder %s29, 1
          %s478 = scalar_select %p477, %s29, 1
          %s479 = smul.addr %s478, 4
          %s480 = smul.addr %s479, 4
          %s481 = scalar_lea.vmem %s4, %s480
        $region36: #{tpu_custom_call.1} parent=23 // pred_fallthru
          _
        // Predicated region
        $region37: #{tpu_custom_call.1} parent=23 // pred_check
          %p482 = pneg %p183
        $region38: #{tpu_custom_call.1} parent=23 // pred_check_branch
          %484 = sbr.rel (%p482) target = $region40
        $region39: #{tpu_custom_call.1} parent=23 // pred_region
          %p485 = scmp.lt.s32.totalorder %s29, 1
          %s486 = scalar_select %p485, %s29, 1
          %s487 = scalar_lea.vmem %s5, %s486
        $region40: #{tpu_custom_call.1} parent=23 // pred_fallthru
          _
        // Predicated region
        $region41: #{tpu_custom_call.1} parent=23 // pred_check
          %p488 = pneg %p209
        $region42: #{tpu_custom_call.1} parent=23 // pred_check_branch
          %490 = sbr.rel (%p488) target = $region44
        $region43: #{tpu_custom_call.1} parent=23 // pred_region
          %p491 = scmp.lt.s32.totalorder %s29, 1
          %s492 = scalar_select %p491, %s29, 1
          %s493 = scalar_lea.vmem %s6, %s492
        $region44: #{tpu_custom_call.1} parent=23 // pred_fallthru
          _
        // Predicated region
        $region45: #{tpu_custom_call.1} parent=23 // pred_check
          %p494 = pneg %p235
        $region46: #{tpu_custom_call.1} parent=23 // pred_check_branch
          %496 = sbr.rel (%p494) target = $region48
        $region47: #{tpu_custom_call.1} parent=23 // pred_region
          %p497 = scmp.lt.s32.totalorder %s29, 1
          %s498 = scalar_select %p497, %s29, 1
          %s499 = scalar_lea.vmem %s7, %s498
        $region48: #{tpu_custom_call.1} parent=23 // pred_fallthru
          _
        // Predicated region
        $region49: #{tpu_custom_call.1} parent=23 // pred_check
          %p500 = pneg %p261
        $region50: #{tpu_custom_call.1} parent=23 // pred_check_branch
          %502 = sbr.rel (%p500) target = $region52
        $region51: #{tpu_custom_call.1} parent=23 // pred_region
          %p503 = scmp.lt.s32.totalorder %s29, 1
          %s504 = scalar_select %p503, %s29, 1
          %s505 = smul.addr %s504, 12
          %s506 = smul.addr %s505, 4
          %s507 = scalar_lea.vmem %s8, %s506
        $region52: #{tpu_custom_call.1} parent=23 // pred_fallthru
          _
        // Predicated region
        $region53: #{tpu_custom_call.1} parent=23 // pred_check
          %p508 = pneg %p287
        $region54: #{tpu_custom_call.1} parent=23 // pred_check_branch
          %510 = sbr.rel (%p508) target = $region56
        $region55: #{tpu_custom_call.1} parent=23 // pred_region
          %p511 = scmp.lt.s32.totalorder %s29, 1
          %s512 = scalar_select %p511, %s29, 1
          %s513 = scalar_lea.vmem %s9, %s512
        $region56: #{tpu_custom_call.1} parent=23 // pred_fallthru
          _
        // Predicated region
        $region57: #{tpu_custom_call.1} parent=23 // pred_check
          %p514 = pneg %p313
        $region58: #{tpu_custom_call.1} parent=23 // pred_check_branch
          %516 = sbr.rel (%p514) target = $region60
        $region59: #{tpu_custom_call.1} parent=23 // pred_region
          %p517 = scmp.lt.s32.totalorder %s29, 1
          %s518 = scalar_select %p517, %s29, 1
          %s519 = smul.addr %s518, 24
          %s520 = smul.addr %s519, 4
          %s521 = scalar_lea.vmem %s10, %s520
        $region60: #{tpu_custom_call.1} parent=23 // pred_fallthru
          _
        // Predicated region
        $region61: #{tpu_custom_call.1} parent=23 // pred_check
          %p522 = pneg %p339
        $region62: #{tpu_custom_call.1} parent=23 // pred_check_branch
          %524 = sbr.rel (%p522) target = $region64
        $region63: #{tpu_custom_call.1} parent=23 // pred_region
          %p525 = scmp.lt.s32.totalorder %s29, 1
          %s526 = scalar_select %p525, %s29, 1
          %s527 = scalar_lea.vmem %s11, %s526
        $region64: #{tpu_custom_call.1} parent=23 // pred_fallthru
          _
        // Predicated region
        $region65: #{tpu_custom_call.1} parent=23 // pred_check
          %p528 = pneg %p365
        $region66: #{tpu_custom_call.1} parent=23 // pred_check_branch
          %530 = sbr.rel (%p528) target = $region68
        $region67: #{tpu_custom_call.1} parent=23 // pred_region
          %p531 = scmp.lt.s32.totalorder %s29, 1
          %s532 = scalar_select %p531, %s29, 1
          %s533 = scalar_lea.vmem %s12, %s532
        $region68: #{tpu_custom_call.1} parent=23 // pred_fallthru
          _
        // Predicated region
        $region69: #{tpu_custom_call.1} parent=23 // pred_check
          %p534 = pneg %p391
        $region70: #{tpu_custom_call.1} parent=23 // pred_check_branch
          %536 = sbr.rel (%p534) target = $region72
        $region71: #{tpu_custom_call.1} parent=23 // pred_region
          %p537 = scmp.lt.s32.totalorder %s29, 1
          %s538 = scalar_select %p537, %s29, 1
          %s539 = scalar_lea.vmem %s13, %s538
        $region72: #{tpu_custom_call.1} parent=23 // pred_fallthru
          _
      $region24: #{tpu_custom_call.1} parent=5 // pred_fallthru
        _
      %p540 = scmp.le.s32.totalorder 1, %s21
      %p541 = scmp.lt.s32.totalorder %s21, 3
      %p542 = pnand %p540, %p541
      %p543 = pneg %p542
      // Predicated region
      $region73: #{tpu_custom_call.1} parent=5 // pred_check
        _
      $region74: #{tpu_custom_call.1} parent=5 // pred_check_branch
        %545 = sbr.rel (%p542) target = $region76
      $region75: #{tpu_custom_call.1} parent=5 // pred_region
        %s546 = ssub.s32 %s21, 1
        %s547 = smul.u32 2, %s30
        %p548 = scmp.lt.s32.totalorder %s547, 1
        %s549 = scalar_select %p548, %s547, 1
        %s550 = smul.addr %s549, 8
        %s551 = scalar_lea.vmem %s0, %s550
        %p552 = pneg %p59
        %p553 = pneg %p56
        %s554 = smul.u32 2, %s30
        %p555 = scmp.lt.s32.totalorder %s554, 1
        %s556 = scalar_select %p555, %s554, 1
        %s557 = smul.addr %s556, 2
        %s558 = scalar_lea.vmem %s1, %s557
        %p559 = pneg %p85
        %p560 = pneg %p82
        %p561 = scmp.lt.s32.totalorder %s31, 1
        %s562 = scalar_select %p561, %s31, 1
        %s563 = smul.addr %s562, 4
        %s564 = smul.addr %s563, 4
        %s565 = scalar_lea.vmem %s2, %s564
        %p566 = pneg %p111
        %p567 = pneg %p108
        %p568 = scmp.lt.s32.totalorder %s31, 1
        %s569 = scalar_select %p568, %s31, 1
        %s570 = scalar_lea.vmem %s3, %s569
        %p571 = pneg %p137
        %p572 = pneg %p134
        %p573 = scmp.lt.s32.totalorder %s31, 1
        %s574 = scalar_select %p573, %s31, 1
        %s575 = smul.addr %s574, 4
        %s576 = smul.addr %s575, 4
        %s577 = scalar_lea.vmem %s4, %s576
        %p578 = pneg %p163
        %p579 = pneg %p160
        %p580 = scmp.lt.s32.totalorder %s31, 1
        %s581 = scalar_select %p580, %s31, 1
        %s582 = scalar_lea.vmem %s5, %s581
        %p583 = pneg %p189
        %p584 = pneg %p186
        %p585 = scmp.lt.s32.totalorder %s31, 1
        %s586 = scalar_select %p585, %s31, 1
        %s587 = scalar_lea.vmem %s6, %s586
        %p588 = pneg %p215
        %p589 = pneg %p212
        %p590 = scmp.lt.s32.totalorder %s31, 1
        %s591 = scalar_select %p590, %s31, 1
        %s592 = scalar_lea.vmem %s7, %s591
        %p593 = pneg %p241
        %p594 = pneg %p238
        %p595 = scmp.lt.s32.totalorder %s31, 1
        %s596 = scalar_select %p595, %s31, 1
        %s597 = smul.addr %s596, 12
        %s598 = smul.addr %s597, 4
        %s599 = scalar_lea.vmem %s8, %s598
        %p600 = pneg %p267
        %p601 = pneg %p264
        %p602 = scmp.lt.s32.totalorder %s31, 1
        %s603 = scalar_select %p602, %s31, 1
        %s604 = scalar_lea.vmem %s9, %s603
        %p605 = pneg %p293
        %p606 = pneg %p290
        %p607 = scmp.lt.s32.totalorder %s31, 1
        %s608 = scalar_select %p607, %s31, 1
        %s609 = smul.addr %s608, 24
        %s610 = smul.addr %s609, 4
        %s611 = scalar_lea.vmem %s10, %s610
        %p612 = pneg %p319
        %p613 = pneg %p316
        %p614 = scmp.lt.s32.totalorder %s31, 1
        %s615 = scalar_select %p614, %s31, 1
        %s616 = scalar_lea.vmem %s11, %s615
        %p617 = pneg %p345
        %p618 = pneg %p342
        %p619 = scmp.lt.s32.totalorder %s31, 1
        %s620 = scalar_select %p619, %s31, 1
        %s621 = scalar_lea.vmem %s12, %s620
        %p622 = pneg %p371
        %p623 = pneg %p368
        %p624 = scmp.lt.s32.totalorder %s31, 1
        %s625 = scalar_select %p624, %s31, 1
        %s626 = scalar_lea.vmem %s13, %s625
        %p627 = pneg %p397
        %p628 = pneg %p394
        %p629 = pneg %p423
        %p630 = pneg %p420
        %s631 = smul.u32 2, %s30
        %p632 = scmp.lt.s32.totalorder %s631, 1
        %s633 = scalar_select %p632, %s631, 1
        %s634 = smul.addr %s633, 8
        %s635 = scalar_lea.vmem %s0, %s634
        %s636 = smul.u32 2, %s30
        %s637 = smul.u32 2, %s30
        %p638 = scmp.lt.s32.totalorder %s637, 1
        %s639 = scalar_select %p638, %s637, 1
        %s640 = smul.addr %s639, 2
        %s641 = scalar_lea.vmem %s1, %s640
        %s642 = smul.u32 2, %s30
        %p643 = scmp.lt.s32.totalorder %s31, 1
        %s644 = scalar_select %p643, %s31, 1
        %s645 = smul.addr %s644, 4
        %s646 = smul.addr %s645, 4
        %s647 = scalar_lea.vmem %s2, %s646
        %p648 = scmp.lt.s32.totalorder %s31, 1
        %s649 = scalar_select %p648, %s31, 1
        %s650 = scalar_lea.vmem %s3, %s649
        %p651 = scmp.lt.s32.totalorder %s31, 1
        %s652 = scalar_select %p651, %s31, 1
        %s653 = smul.addr %s652, 4
        %s654 = smul.addr %s653, 4
        %s655 = scalar_lea.vmem %s4, %s654
        %p656 = scmp.lt.s32.totalorder %s31, 1
        %s657 = scalar_select %p656, %s31, 1
        %s658 = scalar_lea.vmem %s5, %s657
        %p659 = scmp.lt.s32.totalorder %s31, 1
        %s660 = scalar_select %p659, %s31, 1
        %s661 = scalar_lea.vmem %s6, %s660
        %p662 = scmp.lt.s32.totalorder %s31, 1
        %s663 = scalar_select %p662, %s31, 1
        %s664 = scalar_lea.vmem %s7, %s663
        %p665 = scmp.lt.s32.totalorder %s31, 1
        %s666 = scalar_select %p665, %s31, 1
        %s667 = smul.addr %s666, 12
        %s668 = smul.addr %s667, 4
        %s669 = scalar_lea.vmem %s8, %s668
        %p670 = scmp.lt.s32.totalorder %s31, 1
        %s671 = scalar_select %p670, %s31, 1
        %s672 = scalar_lea.vmem %s9, %s671
        %p673 = scmp.lt.s32.totalorder %s31, 1
        %s674 = scalar_select %p673, %s31, 1
        %s675 = smul.addr %s674, 24
        %s676 = smul.addr %s675, 4
        %s677 = scalar_lea.vmem %s10, %s676
        %p678 = scmp.lt.s32.totalorder %s31, 1
        %s679 = scalar_select %p678, %s31, 1
        %s680 = scalar_lea.vmem %s11, %s679
        %p681 = scmp.lt.s32.totalorder %s31, 1
        %s682 = scalar_select %p681, %s31, 1
        %s683 = scalar_lea.vmem %s12, %s682
        %p684 = scmp.lt.s32.totalorder %s31, 1
        %s685 = scalar_select %p684, %s31, 1
        %s686 = scalar_lea.vmem %s13, %s685
        %s687 = smul.u32 2, %s30
        %p689 = scmp.eq.s32.totalorder %s31, 0
        // Predicated region
        $region77: #{tpu_custom_call.1} parent=75 // pred_check
          %p690 = pneg %p689
        $region78: #{tpu_custom_call.1} parent=75 // pred_check_branch
          %692 = sbr.rel (%p690) target = $region80
        $region79: #{tpu_custom_call.1} parent=75 // pred_region
          %v693 = vld [vmem:[%s635] sm:$0xff]
          %v694 = vld [vmem:[%s635 + $0x8] sm:$0xff]
          %vm695 = vcmask 261120
          %696 = vst.msk [vmem:[#allocation5] sm:$0xff] %vm695, %v693
          %697 = vst.msk [vmem:[#allocation5 + $0x8] sm:$0xff] %vm695, %v694
          %vm698 = vcmask 253952
          %vm699 = vsmask.f32 256
          %vm700 = vmand %vm698, %vm699
          %v701 = vld [vmem:[#allocation3] sm:$0x1]
          %v702 = vsel %vm700, 0, %v701
          %703 = vst [vmem:[#allocation3] sm:$0x1] %v702
          %vm704 = vsmask.f32 7938
          %vm705 = vmand %vm698, %vm704
          %v706 = vld [vmem:[#allocation3 + $0x4] sm:$0x1]
          %v707 = vsel %vm705, 0, %v706
          %708 = vst [vmem:[#allocation3 + $0x4] sm:$0x1] %v707
          %vm709 = vcmask 516096
          %vm710 = vmand %vm709, %vm699
          %v711 = vld [vmem:[#allocation4] sm:$0x1]
          %v712 = vsel %vm710, 0, %v711
          %713 = vst [vmem:[#allocation4] sm:$0x1] %v712
          %vm714 = vmand %vm709, %vm704
          %v715 = vld [vmem:[#allocation4 + $0x4] sm:$0x1]
          %v716 = vsel %vm714, 0, %v715
          %717 = vst [vmem:[#allocation4 + $0x4] sm:$0x1] %v716
          %s718 = scalar_lea.vmem [#allocation3], 8
          %v719 = vld [vmem:[%s718] sm:$0x1]
          %v720 = vsel %vm700, 0, %v719
          %721 = vst [vmem:[%s718] sm:$0x1] %v720
          %v722 = vld [vmem:[%s718 + $0x4] sm:$0x1]
          %v723 = vsel %vm705, 0, %v722
          %724 = vst [vmem:[%s718 + $0x4] sm:$0x1] %v723
          %s725 = scalar_lea.vmem [#allocation4], 8
          %v726 = vld [vmem:[%s725] sm:$0x1]
          %v727 = vsel %vm710, 0, %v726
          %728 = vst [vmem:[%s725] sm:$0x1] %v727
          %v729 = vld [vmem:[%s725 + $0x4] sm:$0x1]
          %v730 = vsel %vm714, 0, %v729
          %731 = vst [vmem:[%s725 + $0x4] sm:$0x1] %v730
        $region80: #{tpu_custom_call.1} parent=75 // pred_fallthru
          _
        %v732 = vld [vmem:[%s647] sm:$0xf]
        %v733 = vld [vmem:[%s647 + $0x4] sm:$0xf]
        %v734 = vld [vmem:[%s647 + $0x8] sm:$0xf]
        %v735 = vld [vmem:[%s647 + $0xc] sm:$0xf]
        %v736 = vld [vmem:[%s655] sm:$0xf]
        %v737 = vld [vmem:[%s655 + $0x4] sm:$0xf]
        %v738 = vld [vmem:[%s655 + $0x8] sm:$0xf]
        %v739 = vld [vmem:[%s655 + $0xc] sm:$0xf]
        %v740 = vld [vmem:[#allocation5] sm:$0xff]
        %v741 = vpack.c.bf16 %v740, %v740
        %v742 = vld [vmem:[%s650] sm:$0x1]
        %v744 = vlaneseq
        %v745 = vshrl.u32 %v744, 7
        %v746 = vsub.s32 0, %v745
        %v747 = vrot.slane %v742, %v746
        %v753 = vunpack.c.l.b16 %v732
        %v754 = vunpack.c.l.b16 %v733
        %v755 = vunpack.c.l.b16 %v734
        %v756 = vunpack.c.l.b16 %v735
        %v757 = vpack.c.b16 %v754, %v753
        %v758 = vpack.c.b16 %v756, %v755
        %vm761 = vcmask 261120
        %v763 = vsel %vm761, %v741, 0
        %765 = vmatprep.subr.bf16.mxu0 0
        %766 = vmatpush1.bf16.msra.mxu0 %v757
        %767 = vmatprep.subr.bf16.mxu0 0
        %768 = vmatpush1.bf16.msra.mxu0 %v758
        %769 = vmatprep.subr.bf16.mxu0 0
        %770 = vmatpush1.bf16.msra.mxu0 0
        %771 = vmatprep.subr.bf16.mxu0 0
        %772 = vmatpush1.bf16.msra.mxu0 0
        %773 = vmatprep.subr.bf16.mxu0 0
        %774 = vmatpush1.bf16.msra.mxu0 0
        %775 = vmatprep.subr.bf16.mxu0 0
        %776 = vmatpush1.bf16.msra.mxu0 0
        %777 = vmatprep.subr.bf16.mxu0 0
        %778 = vmatpush1.bf16.msra.mxu0 0
        %779 = vmatprep.subr.bf16.mxu0 0
        %780 = vmatpush1.bf16.msra.mxu0 0
        %781 = vmatprep.subr.bf16.mxu0 0
        %782 = vmatpush1.bf16.msra.mxu0 0
        %783 = vmatprep.subr.bf16.mxu0 0
        %784 = vmatpush1.bf16.msra.mxu0 0
        %785 = vmatprep.subr.bf16.mxu0 0
        %786 = vmatpush1.bf16.msra.mxu0 0
        %787 = vmatprep.subr.bf16.mxu0 0
        %788 = vmatpush1.bf16.msra.mxu0 0
        %789 = vmatprep.subr.bf16.mxu0 0
        %790 = vmatpush1.bf16.msra.mxu0 0
        %791 = vmatprep.subr.bf16.mxu0 0
        %792 = vmatpush1.bf16.msra.mxu0 0
        %793 = vmatprep.subr.bf16.mxu0 0
        %794 = vmatpush1.bf16.msra.mxu0 0
        %795 = vmatprep.subr.bf16.mxu0 0
        %796 = vmatpush1.bf16.msra.mxu0 0
        %797 = vmatprep.mubr.bf16.mxu0 0
        %798 = vmatmul.mubr.bf16.gmra.mrb[0].mxu0 %v763
        %v799 = vpop.f32.mrb[0].mxu0
        %v800 = vadd.f32 %v747, %v799
        %v801 = vpop.f32.mrb[0].mxu0
        %v802 = vpop.f32.mrb[0].mxu0
        %v803 = vpop.f32.mrb[0].mxu0
        %804 = vdwg.mxu0
        %v805 = vpack.c.bf16 %v800, %v800
        %807 = vrot.lane.b32.xlu0 %v805, 96
        %v808 = vpop.permute.xlu0 %807
        %vm809 = vcmask 130048
        %v811 = vsel %vm809, %v805, 0
        %v814 = vsel %vm809, %v808, 0
        %816 = vmatprep.subr.bf16.mxu0 0
        %817 = vmatpush1.bf16.xpose.msra.mxu0 %v814
        %818 = vmatprep.subr.bf16.mxu0 0
        %819 = vmatpush1.bf16.xpose.msra.mxu0 0
        %820 = vmatprep.subr.bf16.mxu0 0
        %821 = vmatpush1.bf16.xpose.msra.mxu0 0
        %822 = vmatprep.subr.bf16.mxu0 0
        %823 = vmatpush1.bf16.xpose.msra.mxu0 0
        %824 = vmatprep.subr.bf16.mxu0 0
        %825 = vmatpush1.bf16.xpose.msra.mxu0 0
        %826 = vmatprep.subr.bf16.mxu0 0
        %827 = vmatpush1.bf16.xpose.msra.mxu0 0
        %828 = vmatprep.subr.bf16.mxu0 0
        %829 = vmatpush1.bf16.xpose.msra.mxu0 0
        %830 = vmatprep.subr.bf16.mxu0 0
        %831 = vmatpush1.bf16.xpose.msra.mxu0 0
        %832 = vmatprep.subr.bf16.mxu0 0
        %833 = vmatpush1.bf16.xpose.msra.mxu0 0
        %834 = vmatprep.subr.bf16.mxu0 0
        %835 = vmatpush1.bf16.xpose.msra.mxu0 0
        %836 = vmatprep.subr.bf16.mxu0 0
        %837 = vmatpush1.bf16.xpose.msra.mxu0 0
        %838 = vmatprep.subr.bf16.mxu0 0
        %839 = vmatpush1.bf16.xpose.msra.mxu0 0
        %840 = vmatprep.subr.bf16.mxu0 0
        %841 = vmatpush1.bf16.xpose.msra.mxu0 0
        %842 = vmatprep.subr.bf16.mxu0 0
        %843 = vmatpush1.bf16.xpose.msra.mxu0 0
        %844 = vmatprep.subr.bf16.mxu0 0
        %845 = vmatpush1.bf16.xpose.msra.mxu0 0
        %846 = vmatprep.subr.bf16.mxu0 0
        %847 = vmatpush1.bf16.xpose.msra.mxu0 0
        %848 = vmatprep.mubr.bf16.mxu0 0
        %849 = vmatmul.mubr.bf16.gmra.mrb[0].mxu0 %v811
        %v850 = vpop.f32.mrb[0].mxu0
        %v851 = vadd.f32 0.0, %v850
        %v852 = vpop.f32.mrb[0].mxu0
        %v853 = vpop.f32.mrb[0].mxu0
        %v854 = vpop.f32.mrb[0].mxu0
        %855 = vdwg.mxu0
        %v856 = vmul.f32 %v851, 0.25
        %v857 = vld [vmem:[%s641] sm:$0x1]
        %v859 = vlaneseq
        %v860 = vshrl.u32 %v859, 7
        %v861 = vsub.s32 0, %v860
        %v862 = vrot.slane %v857, %v861
        %v864 = vadd.f32 %v856, %v862
        %vm865 = vcmask 64512
        %v866 = vsel %vm865, %v864, -inf
        %867 = vmax.xlane.f32.xlu0 %v866
        %v868 = vpop.xlane.xlu0 %867
        %v869 = vsub.f32 %v864, %v868
        %v870 = vmul.f32 %v869, 1.442695
        %v871 = vpow.pop %v870
        %v872 = vsel %vm865, %v871, 0.0
        %873 = vadd.xlane.f32.xlu0 %v872
        %v874 = vpop.xlane.xlu0 %873
        %v875 = vrcp.pop %v874
        %v876 = vmul.f32 %v871, %v875
        %v877 = vpack.c.bf16 %v876, %v876
        %878 = vrot.lane.b32.xlu0 %v805, 64
        %v879 = vpop.permute.xlu0 %878
        %v881 = vsel %vm865, %v877, 0
        %vm883 = vcmask 1043456
        %v885 = vsel %vm883, %v879, 0
        %887 = vmatprep.subr.bf16.mxu0 0
        %888 = vmatpush1.bf16.msra.mxu0 %v885
        %889 = vmatprep.subr.bf16.mxu0 0
        %890 = vmatpush1.bf16.msra.mxu0 0
        %891 = vmatprep.subr.bf16.mxu0 0
        %892 = vmatpush1.bf16.msra.mxu0 0
        %893 = vmatprep.subr.bf16.mxu0 0
        %894 = vmatpush1.bf16.msra.mxu0 0
        %895 = vmatprep.subr.bf16.mxu0 0
        %896 = vmatpush1.bf16.msra.mxu0 0
        %897 = vmatprep.subr.bf16.mxu0 0
        %898 = vmatpush1.bf16.msra.mxu0 0
        %899 = vmatprep.subr.bf16.mxu0 0
        %900 = vmatpush1.bf16.msra.mxu0 0
        %901 = vmatprep.subr.bf16.mxu0 0
        %902 = vmatpush1.bf16.msra.mxu0 0
        %903 = vmatprep.subr.bf16.mxu0 0
        %904 = vmatpush1.bf16.msra.mxu0 0
        %905 = vmatprep.subr.bf16.mxu0 0
        %906 = vmatpush1.bf16.msra.mxu0 0
        %907 = vmatprep.subr.bf16.mxu0 0
        %908 = vmatpush1.bf16.msra.mxu0 0
        %909 = vmatprep.subr.bf16.mxu0 0
        %910 = vmatpush1.bf16.msra.mxu0 0
        %911 = vmatprep.subr.bf16.mxu0 0
        %912 = vmatpush1.bf16.msra.mxu0 0
        %913 = vmatprep.subr.bf16.mxu0 0
        %914 = vmatpush1.bf16.msra.mxu0 0
        %915 = vmatprep.subr.bf16.mxu0 0
        %916 = vmatpush1.bf16.msra.mxu0 0
        %917 = vmatprep.subr.bf16.mxu0 0
        %918 = vmatpush1.bf16.msra.mxu0 0
        %919 = vmatprep.mubr.bf16.mxu0 0
        %920 = vmatmul.mubr.bf16.gmra.mrb[0].mxu0 %v881
        %v921 = vpop.f32.mrb[0].mxu0
        %v922 = vadd.f32 0.0, %v921
        %v923 = vpop.f32.mrb[0].mxu0
        %v924 = vpop.f32.mrb[0].mxu0
        %v925 = vpop.f32.mrb[0].mxu0
        %926 = vdwg.mxu0
        %v927 = vpack.c.bf16 %v922, %v922
        %vm928 = vcmask 125952
        %929 = vst.msk [vmem:[#allocation2] sm:$0xf] %vm928, %v927
        %930 = vrot.lane.b32.xlu0 %v805, 112
        %v931 = vpop.permute.xlu0 %930
        %932 = vrot.lane.b32.xlu0 %v805, 80
        %v933 = vpop.permute.xlu0 %932
        %v935 = vsel %vm809, %v931, 0
        %v938 = vsel %vm809, %v933, 0
        %940 = vmatprep.subr.bf16.mxu0 0
        %941 = vmatpush1.bf16.xpose.msra.mxu0 %v938
        %942 = vmatprep.subr.bf16.mxu0 0
        %943 = vmatpush1.bf16.xpose.msra.mxu0 0
        %944 = vmatprep.subr.bf16.mxu0 0
        %945 = vmatpush1.bf16.xpose.msra.mxu0 0
        %946 = vmatprep.subr.bf16.mxu0 0
        %947 = vmatpush1.bf16.xpose.msra.mxu0 0
        %948 = vmatprep.subr.bf16.mxu0 0
        %949 = vmatpush1.bf16.xpose.msra.mxu0 0
        %950 = vmatprep.subr.bf16.mxu0 0
        %951 = vmatpush1.bf16.xpose.msra.mxu0 0
        %952 = vmatprep.subr.bf16.mxu0 0
        %953 = vmatpush1.bf16.xpose.msra.mxu0 0
        %954 = vmatprep.subr.bf16.mxu0 0
        %955 = vmatpush1.bf16.xpose.msra.mxu0 0
        %956 = vmatprep.subr.bf16.mxu0 0
        %957 = vmatpush1.bf16.xpose.msra.mxu0 0
        %958 = vmatprep.subr.bf16.mxu0 0
        %959 = vmatpush1.bf16.xpose.msra.mxu0 0
        %960 = vmatprep.subr.bf16.mxu0 0
        %961 = vmatpush1.bf16.xpose.msra.mxu0 0
        %962 = vmatprep.subr.bf16.mxu0 0
        %963 = vmatpush1.bf16.xpose.msra.mxu0 0
        %964 = vmatprep.subr.bf16.mxu0 0
        %965 = vmatpush1.bf16.xpose.msra.mxu0 0
        %966 = vmatprep.subr.bf16.mxu0 0
        %967 = vmatpush1.bf16.xpose.msra.mxu0 0
        %968 = vmatprep.subr.bf16.mxu0 0
        %969 = vmatpush1.bf16.xpose.msra.mxu0 0
        %970 = vmatprep.subr.bf16.mxu0 0
        %971 = vmatpush1.bf16.xpose.msra.mxu0 0
        %972 = vmatprep.mubr.bf16.mxu0 0
        %973 = vmatmul.mubr.bf16.gmra.mrb[0].mxu0 %v935
        %v974 = vpop.f32.mrb[0].mxu0
        %v975 = vadd.f32 0.0, %v974
        %v976 = vpop.f32.mrb[0].mxu0
        %v977 = vpop.f32.mrb[0].mxu0
        %v978 = vpop.f32.mrb[0].mxu0
        %979 = vdwg.mxu0
        %v980 = vmul.f32 %v975, 0.25
        %s981 = scalar_lea.vmem %s641, 1
        %v982 = vld [vmem:[%s981] sm:$0x1]
        %v984 = vlaneseq
        %v985 = vshrl.u32 %v984, 7
        %v986 = vsub.s32 0, %v985
        %v987 = vrot.slane %v982, %v986
        %v989 = vadd.f32 %v980, %v987
        %v990 = vsel %vm865, %v989, -inf
        %991 = vmax.xlane.f32.xlu0 %v990
        %v992 = vpop.xlane.xlu0 %991
        %v993 = vsub.f32 %v989, %v992
        %v994 = vmul.f32 %v993, 1.442695
        %v995 = vpow.pop %v994
        %v996 = vsel %vm865, %v995, 0.0
        %997 = vadd.xlane.f32.xlu0 %v996
        %v998 = vpop.xlane.xlu0 %997
        %v999 = vrcp.pop %v998
        %v1000 = vmul.f32 %v995, %v999
        %v1001 = vpack.c.bf16 %v1000, %v1000
        %1002 = vrot.lane.b32.xlu0 %v805, 48
        %v1003 = vpop.permute.xlu0 %1002
        %v1005 = vsel %vm865, %v1001, 0
        %v1008 = vsel %vm883, %v1003, 0
        %1010 = vmatprep.subr.bf16.mxu0 0
        %1011 = vmatpush1.bf16.msra.mxu0 %v1008
        %1012 = vmatprep.subr.bf16.mxu0 0
        %1013 = vmatpush1.bf16.msra.mxu0 0
        %1014 = vmatprep.subr.bf16.mxu0 0
        %1015 = vmatpush1.bf16.msra.mxu0 0
        %1016 = vmatprep.subr.bf16.mxu0 0
        %1017 = vmatpush1.bf16.msra.mxu0 0
        %1018 = vmatprep.subr.bf16.mxu0 0
        %1019 = vmatpush1.bf16.msra.mxu0 0
        %1020 = vmatprep.subr.bf16.mxu0 0
        %1021 = vmatpush1.bf16.msra.mxu0 0
        %1022 = vmatprep.subr.bf16.mxu0 0
        %1023 = vmatpush1.bf16.msra.mxu0 0
        %1024 = vmatprep.subr.bf16.mxu0 0
        %1025 = vmatpush1.bf16.msra.mxu0 0
        %1026 = vmatprep.subr.bf16.mxu0 0
        %1027 = vmatpush1.bf16.msra.mxu0 0
        %1028 = vmatprep.subr.bf16.mxu0 0
        %1029 = vmatpush1.bf16.msra.mxu0 0
        %1030 = vmatprep.subr.bf16.mxu0 0
        %1031 = vmatpush1.bf16.msra.mxu0 0
        %1032 = vmatprep.subr.bf16.mxu0 0
        %1033 = vmatpush1.bf16.msra.mxu0 0
        %1034 = vmatprep.subr.bf16.mxu0 0
        %1035 = vmatpush1.bf16.msra.mxu0 0
        %1036 = vmatprep.subr.bf16.mxu0 0
        %1037 = vmatpush1.bf16.msra.mxu0 0
        %1038 = vmatprep.subr.bf16.mxu0 0
        %1039 = vmatpush1.bf16.msra.mxu0 0
        %1040 = vmatprep.subr.bf16.mxu0 0
        %1041 = vmatpush1.bf16.msra.mxu0 0
        %1042 = vmatprep.mubr.bf16.mxu0 0
        %1043 = vmatmul.mubr.bf16.gmra.mrb[0].mxu0 %v1005
        %v1044 = vpop.f32.mrb[0].mxu0
        %v1045 = vadd.f32 0.0, %v1044
        %v1046 = vpop.f32.mrb[0].mxu0
        %v1047 = vpop.f32.mrb[0].mxu0
        %v1048 = vpop.f32.mrb[0].mxu0
        %1049 = vdwg.mxu0
        %v1050 = vpack.c.bf16 %v1045, %v1045
        %v1052 = vunpack.c.l.b16 %v1050
        %v1053 = vpack.c.b16 %v1052, %v1052
        %1054 = vrot.lane.b32.xlu0 %v1053, 16
        %v1055 = vpop.permute.xlu0 %1054
        %vm1057 = vcmask 257152
        %1058 = vst.msk [vmem:[#allocation2] sm:$0xf] %vm1057, %v1055
        %v1059 = vld [vmem:[#allocation2] sm:$0xf]
        %v1060 = vld [vmem:[%s658] sm:$0x1]
        %v1062 = vlaneseq
        %v1063 = vshrl.u32 %v1062, 7
        %v1064 = vsub.s32 0, %v1063
        %v1065 = vrot.slane %v1060, %v1064
        %v1071 = vunpack.c.l.b16 %v736
        %v1072 = vunpack.c.l.b16 %v737
        %v1073 = vunpack.c.l.b16 %v738
        %v1074 = vunpack.c.l.b16 %v739
        %v1075 = vpack.c.b16 %v1072, %v1071
        %v1076 = vpack.c.b16 %v1074, %v1073
        %v1080 = vsel %vm761, %v1059, 0
        %1082 = vmatprep.subr.bf16.mxu0 0
        %1083 = vmatpush1.bf16.msra.mxu0 %v1075
        %1084 = vmatprep.subr.bf16.mxu0 0
        %1085 = vmatpush1.bf16.msra.mxu0 %v1076
        %1086 = vmatprep.subr.bf16.mxu0 0
        %1087 = vmatpush1.bf16.msra.mxu0 0
        %1088 = vmatprep.subr.bf16.mxu0 0
        %1089 = vmatpush1.bf16.msra.mxu0 0
        %1090 = vmatprep.subr.bf16.mxu0 0
        %1091 = vmatpush1.bf16.msra.mxu0 0
        %1092 = vmatprep.subr.bf16.mxu0 0
        %1093 = vmatpush1.bf16.msra.mxu0 0
        %1094 = vmatprep.subr.bf16.mxu0 0
        %1095 = vmatpush1.bf16.msra.mxu0 0
        %1096 = vmatprep.subr.bf16.mxu0 0
        %1097 = vmatpush1.bf16.msra.mxu0 0
        %1098 = vmatprep.subr.bf16.mxu0 0
        %1099 = vmatpush1.bf16.msra.mxu0 0
        %1100 = vmatprep.subr.bf16.mxu0 0
        %1101 = vmatpush1.bf16.msra.mxu0 0
        %1102 = vmatprep.subr.bf16.mxu0 0
        %1103 = vmatpush1.bf16.msra.mxu0 0
        %1104 = vmatprep.subr.bf16.mxu0 0
        %1105 = vmatpush1.bf16.msra.mxu0 0
        %1106 = vmatprep.subr.bf16.mxu0 0
        %1107 = vmatpush1.bf16.msra.mxu0 0
        %1108 = vmatprep.subr.bf16.mxu0 0
        %1109 = vmatpush1.bf16.msra.mxu0 0
        %1110 = vmatprep.subr.bf16.mxu0 0
        %1111 = vmatpush1.bf16.msra.mxu0 0
        %1112 = vmatprep.subr.bf16.mxu0 0
        %1113 = vmatpush1.bf16.msra.mxu0 0
        %1114 = vmatprep.mubr.bf16.mxu0 0
        %1115 = vmatmul.mubr.bf16.gmra.mrb[0].mxu0 %v1080
        %v1116 = vpop.f32.mrb[0].mxu0
        %v1117 = vadd.f32 %v1065, %v1116
        %v1118 = vpop.f32.mrb[0].mxu0
        %v1119 = vpop.f32.mrb[0].mxu0
        %v1120 = vpop.f32.mrb[0].mxu0
        %1121 = vdwg.mxu0
        %v1122 = vsel %vm761, %v1117, 0.0
        %1123 = vadd.xlane.f32.xlu0 %v1122
        %v1124 = vpop.xlane.xlu0 %1123
        %v1125 = vrcp.pop 32.0
        %v1126 = vmul.f32 %v1124, %v1125
        %v1127 = vsub.f32 %v1117, %v1126
        %v1128 = vmul.f32 %v1127, %v1127
        %v1129 = vsel %vm761, %v1128, 0.0
        %1130 = vadd.xlane.f32.xlu0 %v1129
        %v1131 = vpop.xlane.xlu0 %1130
        %v1132 = vmul.f32 %v1131, %v1125
        %v1133 = vadd.f32 %v1132, 1e-05
        %v1134 = vrsqrt.pop %v1133
        %v1135 = vmul.f32 %v1127, %v1134
        %v1136 = vld [vmem:[%s661] sm:$0x1]
        %v1138 = vlaneseq
        %v1139 = vshrl.u32 %v1138, 7
        %v1140 = vsub.s32 0, %v1139
        %v1141 = vrot.slane %v1136, %v1140
        %v1143 = vmul.f32 %v1135, %v1141
        %v1144 = vld [vmem:[%s664] sm:$0x1]
        %v1146 = vlaneseq
        %v1147 = vshrl.u32 %v1146, 7
        %v1148 = vsub.s32 0, %v1147
        %v1149 = vrot.slane %v1144, %v1148
        %v1151 = vadd.f32 %v1143, %v1149
        %v1152 = vadd.f32 %v740, %v1151
        %v1153 = vpack.c.bf16 %v1152, %v1152
        %v1155 = vunpack.c.l.b16 %v1153
        %v1156 = vpack.c.b16 %v1155, %v1155
        %v1158 = vshrl.u32 %v1156, 16
        %v1160 = vrot.slane %v1158, 7
        %v1161 = vshll.u32 %v1156, 16
        %v1163 = vor.u32 %v1160, %v1161
        %v1164 = vrot.slane %v1160, 4
        %vm1167 = vcmask 257024
        %vm1168 = vsmask.f32 7938
        %vm1169 = vmand %vm1167, %vm1168
        %v1170 = vld [vmem:[#allocation3] sm:$0xf]
        %v1171 = vsel %vm1169, %v1163, %v1170
        %1172 = vst [vmem:[#allocation3] sm:$0xf] %v1171
        %vm1173 = vcmask 253952
        %vm1174 = vsmask.f32 256
        %vm1175 = vmand %vm1173, %vm1174
        %v1176 = vld [vmem:[#allocation3 + $0x4] sm:$0x1]
        %v1177 = vsel %vm1175, %v1164, %v1176
        %1178 = vst [vmem:[#allocation3 + $0x4] sm:$0x1] %v1177
        %v1179 = vld [vmem:[#allocation3] sm:$0xf]
        %v1180 = vld [vmem:[%s669] sm:$0xf]
        %v1181 = vld [vmem:[%s669 + $0x4] sm:$0xf]
        %v1182 = vld [vmem:[%s669 + $0x8] sm:$0xf]
        %v1183 = vld [vmem:[%s669 + $0xc] sm:$0xf]
        %v1184 = vld [vmem:[#allocation3 + $0x4] sm:$0x1]
        %s1185 = scalar_lea.vmem %s669, 16
        %v1186 = vld [vmem:[%s1185] sm:$0xf]
        %v1187 = vld [vmem:[%s1185 + $0x4] sm:$0xf]
        %v1188 = vld [vmem:[%s1185 + $0x8] sm:$0xf]
        %v1189 = vld [vmem:[%s1185 + $0xc] sm:$0xf]
        %v1192 = vunpack.c.l.b16 %v1179
        %v1193 = vunpack.c.l.b16 %v1184
        %v1194 = vpack.c.b16 %v1193, %v1192
        %v1196 = vshrl.u32 %v1194, 16
        %v1198 = vshll.u32 %v1194, 16
        %v1200 = vrot.slane %v1198, 1
        %v1201 = vor.u32 %v1196, %v1200
        %v1206 = vunpack.c.l.b16 %v1186
        %v1207 = vunpack.c.l.b16 %v1187
        %v1208 = vunpack.c.l.b16 %v1188
        %v1209 = vunpack.c.l.b16 %v1189
        %v1210 = vpack.c.b16 %v1207, %v1206
        %v1211 = vpack.c.b16 %v1209, %v1208
        %v1215 = vsel %vm761, %v1201, 0
        %1217 = vmatprep.subr.bf16.mxu0 0
        %1218 = vmatpush1.bf16.msra.mxu0 %v1210
        %1219 = vmatprep.subr.bf16.mxu0 0
        %1220 = vmatpush1.bf16.msra.mxu0 %v1211
        %1221 = vmatprep.subr.bf16.mxu0 0
        %1222 = vmatpush1.bf16.msra.mxu0 0
        %1223 = vmatprep.subr.bf16.mxu0 0
        %1224 = vmatpush1.bf16.msra.mxu0 0
        %1225 = vmatprep.subr.bf16.mxu0 0
        %1226 = vmatpush1.bf16.msra.mxu0 0
        %1227 = vmatprep.subr.bf16.mxu0 0
        %1228 = vmatpush1.bf16.msra.mxu0 0
        %1229 = vmatprep.subr.bf16.mxu0 0
        %1230 = vmatpush1.bf16.msra.mxu0 0
        %1231 = vmatprep.subr.bf16.mxu0 0
        %1232 = vmatpush1.bf16.msra.mxu0 0
        %1233 = vmatprep.subr.bf16.mxu0 0
        %1234 = vmatpush1.bf16.msra.mxu0 0
        %1235 = vmatprep.subr.bf16.mxu0 0
        %1236 = vmatpush1.bf16.msra.mxu0 0
        %1237 = vmatprep.subr.bf16.mxu0 0
        %1238 = vmatpush1.bf16.msra.mxu0 0
        %1239 = vmatprep.subr.bf16.mxu0 0
        %1240 = vmatpush1.bf16.msra.mxu0 0
        %1241 = vmatprep.subr.bf16.mxu0 0
        %1242 = vmatpush1.bf16.msra.mxu0 0
        %1243 = vmatprep.subr.bf16.mxu0 0
        %1244 = vmatpush1.bf16.msra.mxu0 0
        %1245 = vmatprep.subr.bf16.mxu0 0
        %1246 = vmatpush1.bf16.msra.mxu0 0
        %1247 = vmatprep.subr.bf16.mxu0 0
        %1248 = vmatpush1.bf16.msra.mxu0 0
        %1249 = vmatprep.mubr.bf16.mxu0 0
        %1250 = vmatmul.mubr.bf16.gmra.mrb[0].mxu0 %v1215
        %v1251 = vpop.f32.mrb[0].mxu0
        %v1252 = vadd.f32 0.0, %v1251
        %v1253 = vpop.f32.mrb[0].mxu0
        %v1254 = vpop.f32.mrb[0].mxu0
        %v1255 = vpop.f32.mrb[0].mxu0
        %1256 = vdwg.mxu0
        %v1261 = vunpack.c.l.b16 %v1180
        %v1262 = vunpack.c.l.b16 %v1181
        %v1263 = vunpack.c.l.b16 %v1182
        %v1264 = vunpack.c.l.b16 %v1183
        %v1265 = vpack.c.b16 %v1262, %v1261
        %v1266 = vpack.c.b16 %v1264, %v1263
        %v1270 = vsel %vm761, %v1179, 0
        %1272 = vmatprep.subr.bf16.mxu0 0
        %1273 = vmatpush1.bf16.msra.mxu0 %v1265
        %1274 = vmatprep.subr.bf16.mxu0 0
        %1275 = vmatpush1.bf16.msra.mxu0 %v1266
        %1276 = vmatprep.subr.bf16.mxu0 0
        %1277 = vmatpush1.bf16.msra.mxu0 0
        %1278 = vmatprep.subr.bf16.mxu0 0
        %1279 = vmatpush1.bf16.msra.mxu0 0
        %1280 = vmatprep.subr.bf16.mxu0 0
        %1281 = vmatpush1.bf16.msra.mxu0 0
        %1282 = vmatprep.subr.bf16.mxu0 0
        %1283 = vmatpush1.bf16.msra.mxu0 0
        %1284 = vmatprep.subr.bf16.mxu0 0
        %1285 = vmatpush1.bf16.msra.mxu0 0
        %1286 = vmatprep.subr.bf16.mxu0 0
        %1287 = vmatpush1.bf16.msra.mxu0 0
        %1288 = vmatprep.subr.bf16.mxu0 0
        %1289 = vmatpush1.bf16.msra.mxu0 0
        %1290 = vmatprep.subr.bf16.mxu0 0
        %1291 = vmatpush1.bf16.msra.mxu0 0
        %1292 = vmatprep.subr.bf16.mxu0 0
        %1293 = vmatpush1.bf16.msra.mxu0 0
        %1294 = vmatprep.subr.bf16.mxu0 0
        %1295 = vmatpush1.bf16.msra.mxu0 0
        %1296 = vmatprep.subr.bf16.mxu0 0
        %1297 = vmatpush1.bf16.msra.mxu0 0
        %1298 = vmatprep.subr.bf16.mxu0 0
        %1299 = vmatpush1.bf16.msra.mxu0 0
        %1300 = vmatprep.subr.bf16.mxu0 0
        %1301 = vmatpush1.bf16.msra.mxu0 0
        %1302 = vmatprep.subr.bf16.mxu0 0
        %1303 = vmatpush1.bf16.msra.mxu0 0
        %1304 = vmatprep.mubr.bf16.mxu0 0
        %1305 = vmatmul.mubr.bf16.gmra.mrb[0].mxu0 %v1270
        %v1306 = vpop.f32.mrb[0].mxu0
        %v1307 = vadd.f32 %v1252, %v1306
        %v1308 = vpop.f32.mrb[0].mxu0
        %v1309 = vpop.f32.mrb[0].mxu0
        %v1310 = vpop.f32.mrb[0].mxu0
        %1311 = vdwg.mxu0
        %v1312 = vld [vmem:[#allocation3] sm:$0xe]
        %s1313 = scalar_lea.vmem %s669, 32
        %v1314 = vld [vmem:[%s1313] sm:$0xf]
        %v1315 = vld [vmem:[%s1313 + $0x4] sm:$0xf]
        %v1316 = vld [vmem:[%s1313 + $0x8] sm:$0xf]
        %v1317 = vld [vmem:[%s1313 + $0xc] sm:$0xf]
        %v1319 = vunpack.c.l.b16 %v1312
        %v1320 = vpack.c.b16 %v1193, %v1319
        %v1321 = vrot.slane %v1320, 1
        %v1326 = vunpack.c.l.b16 %v1314
        %v1327 = vunpack.c.l.b16 %v1315
        %v1328 = vunpack.c.l.b16 %v1316
        %v1329 = vunpack.c.l.b16 %v1317
        %v1330 = vpack.c.b16 %v1327, %v1326
        %v1331 = vpack.c.b16 %v1329, %v1328
        %v1335 = vsel %vm761, %v1321, 0
        %1337 = vmatprep.subr.bf16.mxu0 0
        %1338 = vmatpush1.bf16.msra.mxu0 %v1330
        %1339 = vmatprep.subr.bf16.mxu0 0
        %1340 = vmatpush1.bf16.msra.mxu0 %v1331
        %1341 = vmatprep.subr.bf16.mxu0 0
        %1342 = vmatpush1.bf16.msra.mxu0 0
        %1343 = vmatprep.subr.bf16.mxu0 0
        %1344 = vmatpush1.bf16.msra.mxu0 0
        %1345 = vmatprep.subr.bf16.mxu0 0
        %1346 = vmatpush1.bf16.msra.mxu0 0
        %1347 = vmatprep.subr.bf16.mxu0 0
        %1348 = vmatpush1.bf16.msra.mxu0 0
        %1349 = vmatprep.subr.bf16.mxu0 0
        %1350 = vmatpush1.bf16.msra.mxu0 0
        %1351 = vmatprep.subr.bf16.mxu0 0
        %1352 = vmatpush1.bf16.msra.mxu0 0
        %1353 = vmatprep.subr.bf16.mxu0 0
        %1354 = vmatpush1.bf16.msra.mxu0 0
        %1355 = vmatprep.subr.bf16.mxu0 0
        %1356 = vmatpush1.bf16.msra.mxu0 0
        %1357 = vmatprep.subr.bf16.mxu0 0
        %1358 = vmatpush1.bf16.msra.mxu0 0
        %1359 = vmatprep.subr.bf16.mxu0 0
        %1360 = vmatpush1.bf16.msra.mxu0 0
        %1361 = vmatprep.subr.bf16.mxu0 0
        %1362 = vmatpush1.bf16.msra.mxu0 0
        %1363 = vmatprep.subr.bf16.mxu0 0
        %1364 = vmatpush1.bf16.msra.mxu0 0
        %1365 = vmatprep.subr.bf16.mxu0 0
        %1366 = vmatpush1.bf16.msra.mxu0 0
        %1367 = vmatprep.subr.bf16.mxu0 0
        %1368 = vmatpush1.bf16.msra.mxu0 0
        %1369 = vmatprep.mubr.bf16.mxu0 0
        %1370 = vmatmul.mubr.bf16.gmra.mrb[0].mxu0 %v1335
        %v1371 = vpop.f32.mrb[0].mxu0
        %v1372 = vadd.f32 0.0, %v1371
        %v1373 = vpop.f32.mrb[0].mxu0
        %v1374 = vpop.f32.mrb[0].mxu0
        %v1375 = vpop.f32.mrb[0].mxu0
        %1376 = vdwg.mxu0
        %v1377 = vadd.f32 %v1307, %v1372
        %v1378 = vld [vmem:[%s672] sm:$0x1]
        %v1380 = vlaneseq
        %v1381 = vshrl.u32 %v1380, 7
        %v1382 = vsub.s32 0, %v1381
        %v1383 = vrot.slane %v1378, %v1382
        %v1385 = vadd.f32 %v1377, %v1383
        %v1386 = vmax.f32 %v1385, 0.0
        %v1387 = vpack.c.bf16 %v1386, %v1386
        %v1389 = vunpack.c.l.b16 %v1387
        %v1390 = vpack.c.b16 %v1389, %v1389
        %v1392 = vshrl.u32 %v1390, 16
        %v1394 = vrot.slane %v1392, 7
        %v1395 = vshll.u32 %v1390, 16
        %v1397 = vor.u32 %v1394, %v1395
        %v1398 = vrot.slane %v1394, 4
        %vm1401 = vcmask 519168
        %vm1402 = vmand %vm1401, %vm1168
        %v1403 = vld [vmem:[#allocation4] sm:$0xf]
        %v1404 = vsel %vm1402, %v1397, %v1403
        %1405 = vst [vmem:[#allocation4] sm:$0xf] %v1404
        %vm1406 = vcmask 516096
        %vm1407 = vmand %vm1406, %vm1174
        %v1408 = vld [vmem:[#allocation4 + $0x4] sm:$0x1]
        %v1409 = vsel %vm1407, %v1398, %v1408
        %1410 = vst [vmem:[#allocation4 + $0x4] sm:$0x1] %v1409
        %v1411 = vld [vmem:[#allocation4] sm:$0xf]
        %v1412 = vld [vmem:[%s677] sm:$0xf]
        %v1413 = vld [vmem:[%s677 + $0x4] sm:$0xf]
        %v1414 = vld [vmem:[%s677 + $0x8] sm:$0xf]
        %v1415 = vld [vmem:[%s677 + $0xc] sm:$0xf]
        %v1416 = vld [vmem:[%s677 + $0x10] sm:$0xf]
        %v1417 = vld [vmem:[%s677 + $0x14] sm:$0xf]
        %v1418 = vld [vmem:[%s677 + $0x18] sm:$0xf]
        %v1419 = vld [vmem:[%s677 + $0x1c] sm:$0xf]
        %v1420 = vld [vmem:[#allocation4 + $0x4] sm:$0x1]
        %s1421 = scalar_lea.vmem %s677, 32
        %v1422 = vld [vmem:[%s1421] sm:$0xf]
        %v1423 = vld [vmem:[%s1421 + $0x4] sm:$0xf]
        %v1424 = vld [vmem:[%s1421 + $0x8] sm:$0xf]
        %v1425 = vld [vmem:[%s1421 + $0xc] sm:$0xf]
        %v1426 = vld [vmem:[%s1421 + $0x10] sm:$0xf]
        %v1427 = vld [vmem:[%s1421 + $0x14] sm:$0xf]
        %v1428 = vld [vmem:[%s1421 + $0x18] sm:$0xf]
        %v1429 = vld [vmem:[%s1421 + $0x1c] sm:$0xf]
        %v1432 = vunpack.c.l.b16 %v1411
        %v1433 = vunpack.c.l.b16 %v1420
        %v1434 = vpack.c.b16 %v1433, %v1432
        %v1436 = vshrl.u32 %v1434, 16
        %v1438 = vshll.u32 %v1434, 16
        %v1440 = vrot.slane %v1438, 1
        %v1441 = vor.u32 %v1436, %v1440
        %v1450 = vunpack.c.l.b16 %v1422
        %v1451 = vunpack.c.l.b16 %v1423
        %v1452 = vunpack.c.l.b16 %v1424
        %v1453 = vunpack.c.l.b16 %v1425
        %v1454 = vunpack.c.l.b16 %v1426
        %v1455 = vunpack.c.l.b16 %v1427
        %v1456 = vunpack.c.l.b16 %v1428
        %v1457 = vunpack.c.l.b16 %v1429
        %v1458 = vpack.c.b16 %v1451, %v1450
        %v1459 = vpack.c.b16 %v1453, %v1452
        %v1460 = vpack.c.b16 %v1455, %v1454
        %v1461 = vpack.c.b16 %v1457, %v1456
        %vm1466 = vcmask 523264
        %v1468 = vsel %vm1466, %v1441, 0
        %1470 = vmatprep.subr.bf16.mxu0 0
        %1471 = vmatpush1.bf16.msra.mxu0 %v1458
        %1472 = vmatprep.subr.bf16.mxu0 0
        %1473 = vmatpush1.bf16.msra.mxu0 %v1459
        %1474 = vmatprep.subr.bf16.mxu0 0
        %1475 = vmatpush1.bf16.msra.mxu0 %v1460
        %1476 = vmatprep.subr.bf16.mxu0 0
        %1477 = vmatpush1.bf16.msra.mxu0 %v1461
        %1478 = vmatprep.subr.bf16.mxu0 0
        %1479 = vmatpush1.bf16.msra.mxu0 0
        %1480 = vmatprep.subr.bf16.mxu0 0
        %1481 = vmatpush1.bf16.msra.mxu0 0
        %1482 = vmatprep.subr.bf16.mxu0 0
        %1483 = vmatpush1.bf16.msra.mxu0 0
        %1484 = vmatprep.subr.bf16.mxu0 0
        %1485 = vmatpush1.bf16.msra.mxu0 0
        %1486 = vmatprep.subr.bf16.mxu0 0
        %1487 = vmatpush1.bf16.msra.mxu0 0
        %1488 = vmatprep.subr.bf16.mxu0 0
        %1489 = vmatpush1.bf16.msra.mxu0 0
        %1490 = vmatprep.subr.bf16.mxu0 0
        %1491 = vmatpush1.bf16.msra.mxu0 0
        %1492 = vmatprep.subr.bf16.mxu0 0
        %1493 = vmatpush1.bf16.msra.mxu0 0
        %1494 = vmatprep.subr.bf16.mxu0 0
        %1495 = vmatpush1.bf16.msra.mxu0 0
        %1496 = vmatprep.subr.bf16.mxu0 0
        %1497 = vmatpush1.bf16.msra.mxu0 0
        %1498 = vmatprep.subr.bf16.mxu0 0
        %1499 = vmatpush1.bf16.msra.mxu0 0
        %1500 = vmatprep.subr.bf16.mxu0 0
        %1501 = vmatpush1.bf16.msra.mxu0 0
        %1502 = vmatprep.mubr.bf16.mxu0 0
        %1503 = vmatmul.mubr.bf16.gmra.mrb[0].mxu0 %v1468
        %v1504 = vpop.f32.mrb[0].mxu0
        %v1505 = vadd.f32 0.0, %v1504
        %v1506 = vpop.f32.mrb[0].mxu0
        %v1507 = vpop.f32.mrb[0].mxu0
        %v1508 = vpop.f32.mrb[0].mxu0
        %1509 = vdwg.mxu0
        %v1518 = vunpack.c.l.b16 %v1412
        %v1519 = vunpack.c.l.b16 %v1413
        %v1520 = vunpack.c.l.b16 %v1414
        %v1521 = vunpack.c.l.b16 %v1415
        %v1522 = vunpack.c.l.b16 %v1416
        %v1523 = vunpack.c.l.b16 %v1417
        %v1524 = vunpack.c.l.b16 %v1418
        %v1525 = vunpack.c.l.b16 %v1419
        %v1526 = vpack.c.b16 %v1519, %v1518
        %v1527 = vpack.c.b16 %v1521, %v1520
        %v1528 = vpack.c.b16 %v1523, %v1522
        %v1529 = vpack.c.b16 %v1525, %v1524
        %v1535 = vsel %vm1466, %v1411, 0
        %1537 = vmatprep.subr.bf16.mxu0 0
        %1538 = vmatpush1.bf16.msra.mxu0 %v1526
        %1539 = vmatprep.subr.bf16.mxu0 0
        %1540 = vmatpush1.bf16.msra.mxu0 %v1527
        %1541 = vmatprep.subr.bf16.mxu0 0
        %1542 = vmatpush1.bf16.msra.mxu0 %v1528
        %1543 = vmatprep.subr.bf16.mxu0 0
        %1544 = vmatpush1.bf16.msra.mxu0 %v1529
        %1545 = vmatprep.subr.bf16.mxu0 0
        %1546 = vmatpush1.bf16.msra.mxu0 0
        %1547 = vmatprep.subr.bf16.mxu0 0
        %1548 = vmatpush1.bf16.msra.mxu0 0
        %1549 = vmatprep.subr.bf16.mxu0 0
        %1550 = vmatpush1.bf16.msra.mxu0 0
        %1551 = vmatprep.subr.bf16.mxu0 0
        %1552 = vmatpush1.bf16.msra.mxu0 0
        %1553 = vmatprep.subr.bf16.mxu0 0
        %1554 = vmatpush1.bf16.msra.mxu0 0
        %1555 = vmatprep.subr.bf16.mxu0 0
        %1556 = vmatpush1.bf16.msra.mxu0 0
        %1557 = vmatprep.subr.bf16.mxu0 0
        %1558 = vmatpush1.bf16.msra.mxu0 0
        %1559 = vmatprep.subr.bf16.mxu0 0
        %1560 = vmatpush1.bf16.msra.mxu0 0
        %1561 = vmatprep.subr.bf16.mxu0 0
        %1562 = vmatpush1.bf16.msra.mxu0 0
        %1563 = vmatprep.subr.bf16.mxu0 0
        %1564 = vmatpush1.bf16.msra.mxu0 0
        %1565 = vmatprep.subr.bf16.mxu0 0
        %1566 = vmatpush1.bf16.msra.mxu0 0
        %1567 = vmatprep.subr.bf16.mxu0 0
        %1568 = vmatpush1.bf16.msra.mxu0 0
        %1569 = vmatprep.mubr.bf16.mxu0 0
        %1570 = vmatmul.mubr.bf16.gmra.mrb[0].mxu0 %v1535
        %v1571 = vpop.f32.mrb[0].mxu0
        %v1572 = vadd.f32 %v1505, %v1571
        %v1573 = vpop.f32.mrb[0].mxu0
        %v1574 = vpop.f32.mrb[0].mxu0
        %v1575 = vpop.f32.mrb[0].mxu0
        %1576 = vdwg.mxu0
        %v1577 = vld [vmem:[#allocation4] sm:$0xe]
        %s1578 = scalar_lea.vmem %s677, 64
        %v1579 = vld [vmem:[%s1578] sm:$0xf]
        %v1580 = vld [vmem:[%s1578 + $0x4] sm:$0xf]
        %v1581 = vld [vmem:[%s1578 + $0x8] sm:$0xf]
        %v1582 = vld [vmem:[%s1578 + $0xc] sm:$0xf]
        %v1583 = vld [vmem:[%s1578 + $0x10] sm:$0xf]
        %v1584 = vld [vmem:[%s1578 + $0x14] sm:$0xf]
        %v1585 = vld [vmem:[%s1578 + $0x18] sm:$0xf]
        %v1586 = vld [vmem:[%s1578 + $0x1c] sm:$0xf]
        %v1588 = vunpack.c.l.b16 %v1577
        %v1589 = vpack.c.b16 %v1433, %v1588
        %v1590 = vrot.slane %v1589, 1
        %v1599 = vunpack.c.l.b16 %v1579
        %v1600 = vunpack.c.l.b16 %v1580
        %v1601 = vunpack.c.l.b16 %v1581
        %v1602 = vunpack.c.l.b16 %v1582
        %v1603 = vunpack.c.l.b16 %v1583
        %v1604 = vunpack.c.l.b16 %v1584
        %v1605 = vunpack.c.l.b16 %v1585
        %v1606 = vunpack.c.l.b16 %v1586
        %v1607 = vpack.c.b16 %v1600, %v1599
        %v1608 = vpack.c.b16 %v1602, %v1601
        %v1609 = vpack.c.b16 %v1604, %v1603
        %v1610 = vpack.c.b16 %v1606, %v1605
        %v1616 = vsel %vm1466, %v1590, 0
        %1618 = vmatprep.subr.bf16.mxu0 0
        %1619 = vmatpush1.bf16.msra.mxu0 %v1607
        %1620 = vmatprep.subr.bf16.mxu0 0
        %1621 = vmatpush1.bf16.msra.mxu0 %v1608
        %1622 = vmatprep.subr.bf16.mxu0 0
        %1623 = vmatpush1.bf16.msra.mxu0 %v1609
        %1624 = vmatprep.subr.bf16.mxu0 0
        %1625 = vmatpush1.bf16.msra.mxu0 %v1610
        %1626 = vmatprep.subr.bf16.mxu0 0
        %1627 = vmatpush1.bf16.msra.mxu0 0
        %1628 = vmatprep.subr.bf16.mxu0 0
        %1629 = vmatpush1.bf16.msra.mxu0 0
        %1630 = vmatprep.subr.bf16.mxu0 0
        %1631 = vmatpush1.bf16.msra.mxu0 0
        %1632 = vmatprep.subr.bf16.mxu0 0
        %1633 = vmatpush1.bf16.msra.mxu0 0
        %1634 = vmatprep.subr.bf16.mxu0 0
        %1635 = vmatpush1.bf16.msra.mxu0 0
        %1636 = vmatprep.subr.bf16.mxu0 0
        %1637 = vmatpush1.bf16.msra.mxu0 0
        %1638 = vmatprep.subr.bf16.mxu0 0
        %1639 = vmatpush1.bf16.msra.mxu0 0
        %1640 = vmatprep.subr.bf16.mxu0 0
        %1641 = vmatpush1.bf16.msra.mxu0 0
        %1642 = vmatprep.subr.bf16.mxu0 0
        %1643 = vmatpush1.bf16.msra.mxu0 0
        %1644 = vmatprep.subr.bf16.mxu0 0
        %1645 = vmatpush1.bf16.msra.mxu0 0
        %1646 = vmatprep.subr.bf16.mxu0 0
        %1647 = vmatpush1.bf16.msra.mxu0 0
        %1648 = vmatprep.subr.bf16.mxu0 0
        %1649 = vmatpush1.bf16.msra.mxu0 0
        %1650 = vmatprep.mubr.bf16.mxu0 0
        %1651 = vmatmul.mubr.bf16.gmra.mrb[0].mxu0 %v1616
        %v1652 = vpop.f32.mrb[0].mxu0
        %v1653 = vadd.f32 0.0, %v1652
        %v1654 = vpop.f32.mrb[0].mxu0
        %v1655 = vpop.f32.mrb[0].mxu0
        %v1656 = vpop.f32.mrb[0].mxu0
        %1657 = vdwg.mxu0
        %v1658 = vadd.f32 %v1572, %v1653
        %v1659 = vld [vmem:[%s680] sm:$0x1]
        %v1661 = vlaneseq
        %v1662 = vshrl.u32 %v1661, 7
        %v1663 = vsub.s32 0, %v1662
        %v1664 = vrot.slane %v1659, %v1663
        %v1666 = vadd.f32 %v1658, %v1664
        %v1667 = vsel %vm761, %v1666, 0.0
        %1668 = vadd.xlane.f32.xlu0 %v1667
        %v1669 = vpop.xlane.xlu0 %1668
        %v1670 = vmul.f32 %v1669, %v1125
        %v1671 = vsub.f32 %v1666, %v1670
        %v1672 = vmul.f32 %v1671, %v1671
        %v1673 = vsel %vm761, %v1672, 0.0
        %1674 = vadd.xlane.f32.xlu0 %v1673
        %v1675 = vpop.xlane.xlu0 %1674
        %v1676 = vmul.f32 %v1675, %v1125
        %v1677 = vadd.f32 %v1676, 1e-05
        %v1678 = vrsqrt.pop %v1677
        %v1679 = vmul.f32 %v1671, %v1678
        %v1680 = vld [vmem:[%s683] sm:$0x1]
        %v1682 = vlaneseq
        %v1683 = vshrl.u32 %v1682, 7
        %v1684 = vsub.s32 0, %v1683
        %v1685 = vrot.slane %v1680, %v1684
        %v1687 = vmul.f32 %v1679, %v1685
        %v1688 = vld [vmem:[%s686] sm:$0x1]
        %v1690 = vlaneseq
        %v1691 = vshrl.u32 %v1690, 7
        %v1692 = vsub.s32 0, %v1691
        %v1693 = vrot.slane %v1688, %v1692
        %v1695 = vadd.f32 %v1687, %v1693
        %v1696 = vadd.f32 %v1152, %v1695
        %1697 = vst.msk [vmem:[#allocation5] sm:$0xff] %vm761, %v1696
        %s1698 = scalar_lea.vmem [#allocation5], 8
        %v1699 = vld [vmem:[%s1698] sm:$0xff]
        %v1700 = vpack.c.bf16 %v1699, %v1699
        %v1701 = vld [vmem:[%s650] sm:$0x1]
        %v1703 = vlaneseq
        %v1704 = vshrl.u32 %v1703, 7
        %v1705 = vsub.s32 0, %v1704
        %v1706 = vrot.slane %v1701, %v1705
        %v1709 = vsel %vm761, %v1700, 0
        %1711 = vmatprep.subr.bf16.mxu0 0
        %1712 = vmatpush1.bf16.msra.mxu0 %v757
        %1713 = vmatprep.subr.bf16.mxu0 0
        %1714 = vmatpush1.bf16.msra.mxu0 %v758
        %1715 = vmatprep.subr.bf16.mxu0 0
        %1716 = vmatpush1.bf16.msra.mxu0 0
        %1717 = vmatprep.subr.bf16.mxu0 0
        %1718 = vmatpush1.bf16.msra.mxu0 0
        %1719 = vmatprep.subr.bf16.mxu0 0
        %1720 = vmatpush1.bf16.msra.mxu0 0
        %1721 = vmatprep.subr.bf16.mxu0 0
        %1722 = vmatpush1.bf16.msra.mxu0 0
        %1723 = vmatprep.subr.bf16.mxu0 0
        %1724 = vmatpush1.bf16.msra.mxu0 0
        %1725 = vmatprep.subr.bf16.mxu0 0
        %1726 = vmatpush1.bf16.msra.mxu0 0
        %1727 = vmatprep.subr.bf16.mxu0 0
        %1728 = vmatpush1.bf16.msra.mxu0 0
        %1729 = vmatprep.subr.bf16.mxu0 0
        %1730 = vmatpush1.bf16.msra.mxu0 0
        %1731 = vmatprep.subr.bf16.mxu0 0
        %1732 = vmatpush1.bf16.msra.mxu0 0
        %1733 = vmatprep.subr.bf16.mxu0 0
        %1734 = vmatpush1.bf16.msra.mxu0 0
        %1735 = vmatprep.subr.bf16.mxu0 0
        %1736 = vmatpush1.bf16.msra.mxu0 0
        %1737 = vmatprep.subr.bf16.mxu0 0
        %1738 = vmatpush1.bf16.msra.mxu0 0
        %1739 = vmatprep.subr.bf16.mxu0 0
        %1740 = vmatpush1.bf16.msra.mxu0 0
        %1741 = vmatprep.subr.bf16.mxu0 0
        %1742 = vmatpush1.bf16.msra.mxu0 0
        %1743 = vmatprep.mubr.bf16.mxu0 0
        %1744 = vmatmul.mubr.bf16.gmra.mrb[0].mxu0 %v1709
        %v1745 = vpop.f32.mrb[0].mxu0
        %v1746 = vadd.f32 %v1706, %v1745
        %v1747 = vpop.f32.mrb[0].mxu0
        %v1748 = vpop.f32.mrb[0].mxu0
        %v1749 = vpop.f32.mrb[0].mxu0
        %1750 = vdwg.mxu0
        %v1751 = vpack.c.bf16 %v1746, %v1746
        %1753 = vrot.lane.b32.xlu0 %v1751, 96
        %v1754 = vpop.permute.xlu0 %1753
        %v1756 = vsel %vm809, %v1751, 0
        %v1759 = vsel %vm809, %v1754, 0
        %1761 = vmatprep.subr.bf16.mxu0 0
        %1762 = vmatpush1.bf16.xpose.msra.mxu0 %v1759
        %1763 = vmatprep.subr.bf16.mxu0 0
        %1764 = vmatpush1.bf16.xpose.msra.mxu0 0
        %1765 = vmatprep.subr.bf16.mxu0 0
        %1766 = vmatpush1.bf16.xpose.msra.mxu0 0
        %1767 = vmatprep.subr.bf16.mxu0 0
        %1768 = vmatpush1.bf16.xpose.msra.mxu0 0
        %1769 = vmatprep.subr.bf16.mxu0 0
        %1770 = vmatpush1.bf16.xpose.msra.mxu0 0
        %1771 = vmatprep.subr.bf16.mxu0 0
        %1772 = vmatpush1.bf16.xpose.msra.mxu0 0
        %1773 = vmatprep.subr.bf16.mxu0 0
        %1774 = vmatpush1.bf16.xpose.msra.mxu0 0
        %1775 = vmatprep.subr.bf16.mxu0 0
        %1776 = vmatpush1.bf16.xpose.msra.mxu0 0
        %1777 = vmatprep.subr.bf16.mxu0 0
        %1778 = vmatpush1.bf16.xpose.msra.mxu0 0
        %1779 = vmatprep.subr.bf16.mxu0 0
        %1780 = vmatpush1.bf16.xpose.msra.mxu0 0
        %1781 = vmatprep.subr.bf16.mxu0 0
        %1782 = vmatpush1.bf16.xpose.msra.mxu0 0
        %1783 = vmatprep.subr.bf16.mxu0 0
        %1784 = vmatpush1.bf16.xpose.msra.mxu0 0
        %1785 = vmatprep.subr.bf16.mxu0 0
        %1786 = vmatpush1.bf16.xpose.msra.mxu0 0
        %1787 = vmatprep.subr.bf16.mxu0 0
        %1788 = vmatpush1.bf16.xpose.msra.mxu0 0
        %1789 = vmatprep.subr.bf16.mxu0 0
        %1790 = vmatpush1.bf16.xpose.msra.mxu0 0
        %1791 = vmatprep.subr.bf16.mxu0 0
        %1792 = vmatpush1.bf16.xpose.msra.mxu0 0
        %1793 = vmatprep.mubr.bf16.mxu0 0
        %1794 = vmatmul.mubr.bf16.gmra.mrb[0].mxu0 %v1756
        %v1795 = vpop.f32.mrb[0].mxu0
        %v1796 = vadd.f32 0.0, %v1795
        %v1797 = vpop.f32.mrb[0].mxu0
        %v1798 = vpop.f32.mrb[0].mxu0
        %v1799 = vpop.f32.mrb[0].mxu0
        %1800 = vdwg.mxu0
        %v1801 = vmul.f32 %v1796, 0.25
        %s1802 = scalar_lea.vmem %s641, 2
        %v1803 = vld [vmem:[%s1802] sm:$0x1]
        %v1805 = vlaneseq
        %v1806 = vshrl.u32 %v1805, 7
        %v1807 = vsub.s32 0, %v1806
        %v1808 = vrot.slane %v1803, %v1807
        %v1810 = vadd.f32 %v1801, %v1808
        %v1811 = vsel %vm865, %v1810, -inf
        %1812 = vmax.xlane.f32.xlu0 %v1811
        %v1813 = vpop.xlane.xlu0 %1812
        %v1814 = vsub.f32 %v1810, %v1813
        %v1815 = vmul.f32 %v1814, 1.442695
        %v1816 = vpow.pop %v1815
        %v1817 = vsel %vm865, %v1816, 0.0
        %1818 = vadd.xlane.f32.xlu0 %v1817
        %v1819 = vpop.xlane.xlu0 %1818
        %v1820 = vrcp.pop %v1819
        %v1821 = vmul.f32 %v1816, %v1820
        %v1822 = vpack.c.bf16 %v1821, %v1821
        %1823 = vrot.lane.b32.xlu0 %v1751, 64
        %v1824 = vpop.permute.xlu0 %1823
        %v1826 = vsel %vm865, %v1822, 0
        %v1829 = vsel %vm883, %v1824, 0
        %1831 = vmatprep.subr.bf16.mxu0 0
        %1832 = vmatpush1.bf16.msra.mxu0 %v1829
        %1833 = vmatprep.subr.bf16.mxu0 0
        %1834 = vmatpush1.bf16.msra.mxu0 0
        %1835 = vmatprep.subr.bf16.mxu0 0
        %1836 = vmatpush1.bf16.msra.mxu0 0
        %1837 = vmatprep.subr.bf16.mxu0 0
        %1838 = vmatpush1.bf16.msra.mxu0 0
        %1839 = vmatprep.subr.bf16.mxu0 0
        %1840 = vmatpush1.bf16.msra.mxu0 0
        %1841 = vmatprep.subr.bf16.mxu0 0
        %1842 = vmatpush1.bf16.msra.mxu0 0
        %1843 = vmatprep.subr.bf16.mxu0 0
        %1844 = vmatpush1.bf16.msra.mxu0 0
        %1845 = vmatprep.subr.bf16.mxu0 0
        %1846 = vmatpush1.bf16.msra.mxu0 0
        %1847 = vmatprep.subr.bf16.mxu0 0
        %1848 = vmatpush1.bf16.msra.mxu0 0
        %1849 = vmatprep.subr.bf16.mxu0 0
        %1850 = vmatpush1.bf16.msra.mxu0 0
        %1851 = vmatprep.subr.bf16.mxu0 0
        %1852 = vmatpush1.bf16.msra.mxu0 0
        %1853 = vmatprep.subr.bf16.mxu0 0
        %1854 = vmatpush1.bf16.msra.mxu0 0
        %1855 = vmatprep.subr.bf16.mxu0 0
        %1856 = vmatpush1.bf16.msra.mxu0 0
        %1857 = vmatprep.subr.bf16.mxu0 0
        %1858 = vmatpush1.bf16.msra.mxu0 0
        %1859 = vmatprep.subr.bf16.mxu0 0
        %1860 = vmatpush1.bf16.msra.mxu0 0
        %1861 = vmatprep.subr.bf16.mxu0 0
        %1862 = vmatpush1.bf16.msra.mxu0 0
        %1863 = vmatprep.mubr.bf16.mxu0 0
        %1864 = vmatmul.mubr.bf16.gmra.mrb[0].mxu0 %v1826
        %v1865 = vpop.f32.mrb[0].mxu0
        %v1866 = vadd.f32 0.0, %v1865
        %v1867 = vpop.f32.mrb[0].mxu0
        %v1868 = vpop.f32.mrb[0].mxu0
        %v1869 = vpop.f32.mrb[0].mxu0
        %1870 = vdwg.mxu0
        %v1871 = vpack.c.bf16 %v1866, %v1866
        %s1872 = scalar_lea.vmem [#allocation2], 4
        %1873 = vst.msk [vmem:[%s1872] sm:$0xf] %vm928, %v1871
        %1874 = vrot.lane.b32.xlu0 %v1751, 112
        %v1875 = vpop.permute.xlu0 %1874
        %1876 = vrot.lane.b32.xlu0 %v1751, 80
        %v1877 = vpop.permute.xlu0 %1876
        %v1879 = vsel %vm809, %v1875, 0
        %v1882 = vsel %vm809, %v1877, 0
        %1884 = vmatprep.subr.bf16.mxu0 0
        %1885 = vmatpush1.bf16.xpose.msra.mxu0 %v1882
        %1886 = vmatprep.subr.bf16.mxu0 0
        %1887 = vmatpush1.bf16.xpose.msra.mxu0 0
        %1888 = vmatprep.subr.bf16.mxu0 0
        %1889 = vmatpush1.bf16.xpose.msra.mxu0 0
        %1890 = vmatprep.subr.bf16.mxu0 0
        %1891 = vmatpush1.bf16.xpose.msra.mxu0 0
        %1892 = vmatprep.subr.bf16.mxu0 0
        %1893 = vmatpush1.bf16.xpose.msra.mxu0 0
        %1894 = vmatprep.subr.bf16.mxu0 0
        %1895 = vmatpush1.bf16.xpose.msra.mxu0 0
        %1896 = vmatprep.subr.bf16.mxu0 0
        %1897 = vmatpush1.bf16.xpose.msra.mxu0 0
        %1898 = vmatprep.subr.bf16.mxu0 0
        %1899 = vmatpush1.bf16.xpose.msra.mxu0 0
        %1900 = vmatprep.subr.bf16.mxu0 0
        %1901 = vmatpush1.bf16.xpose.msra.mxu0 0
        %1902 = vmatprep.subr.bf16.mxu0 0
        %1903 = vmatpush1.bf16.xpose.msra.mxu0 0
        %1904 = vmatprep.subr.bf16.mxu0 0
        %1905 = vmatpush1.bf16.xpose.msra.mxu0 0
        %1906 = vmatprep.subr.bf16.mxu0 0
        %1907 = vmatpush1.bf16.xpose.msra.mxu0 0
        %1908 = vmatprep.subr.bf16.mxu0 0
        %1909 = vmatpush1.bf16.xpose.msra.mxu0 0
        %1910 = vmatprep.subr.bf16.mxu0 0
        %1911 = vmatpush1.bf16.xpose.msra.mxu0 0
        %1912 = vmatprep.subr.bf16.mxu0 0
        %1913 = vmatpush1.bf16.xpose.msra.mxu0 0
        %1914 = vmatprep.subr.bf16.mxu0 0
        %1915 = vmatpush1.bf16.xpose.msra.mxu0 0
        %1916 = vmatprep.mubr.bf16.mxu0 0
        %1917 = vmatmul.mubr.bf16.gmra.mrb[0].mxu0 %v1879
        %v1918 = vpop.f32.mrb[0].mxu0
        %v1919 = vadd.f32 0.0, %v1918
        %v1920 = vpop.f32.mrb[0].mxu0
        %v1921 = vpop.f32.mrb[0].mxu0
        %v1922 = vpop.f32.mrb[0].mxu0
        %1923 = vdwg.mxu0
        %v1924 = vmul.f32 %v1919, 0.25
        %s1925 = scalar_lea.vmem %s641, 3
        %v1926 = vld [vmem:[%s1925] sm:$0x1]
        %v1928 = vlaneseq
        %v1929 = vshrl.u32 %v1928, 7
        %v1930 = vsub.s32 0, %v1929
        %v1931 = vrot.slane %v1926, %v1930
        %v1933 = vadd.f32 %v1924, %v1931
        %v1934 = vsel %vm865, %v1933, -inf
        %1935 = vmax.xlane.f32.xlu0 %v1934
        %v1936 = vpop.xlane.xlu0 %1935
        %v1937 = vsub.f32 %v1933, %v1936
        %v1938 = vmul.f32 %v1937, 1.442695
        %v1939 = vpow.pop %v1938
        %v1940 = vsel %vm865, %v1939, 0.0
        %1941 = vadd.xlane.f32.xlu0 %v1940
        %v1942 = vpop.xlane.xlu0 %1941
        %v1943 = vrcp.pop %v1942
        %v1944 = vmul.f32 %v1939, %v1943
        %v1945 = vpack.c.bf16 %v1944, %v1944
        %1946 = vrot.lane.b32.xlu0 %v1751, 48
        %v1947 = vpop.permute.xlu0 %1946
        %v1949 = vsel %vm865, %v1945, 0
        %v1952 = vsel %vm883, %v1947, 0
        %1954 = vmatprep.subr.bf16.mxu0 0
        %1955 = vmatpush1.bf16.msra.mxu0 %v1952
        %1956 = vmatprep.subr.bf16.mxu0 0
        %1957 = vmatpush1.bf16.msra.mxu0 0
        %1958 = vmatprep.subr.bf16.mxu0 0
        %1959 = vmatpush1.bf16.msra.mxu0 0
        %1960 = vmatprep.subr.bf16.mxu0 0
        %1961 = vmatpush1.bf16.msra.mxu0 0
        %1962 = vmatprep.subr.bf16.mxu0 0
        %1963 = vmatpush1.bf16.msra.mxu0 0
        %1964 = vmatprep.subr.bf16.mxu0 0
        %1965 = vmatpush1.bf16.msra.mxu0 0
        %1966 = vmatprep.subr.bf16.mxu0 0
        %1967 = vmatpush1.bf16.msra.mxu0 0
        %1968 = vmatprep.subr.bf16.mxu0 0
        %1969 = vmatpush1.bf16.msra.mxu0 0
        %1970 = vmatprep.subr.bf16.mxu0 0
        %1971 = vmatpush1.bf16.msra.mxu0 0
        %1972 = vmatprep.subr.bf16.mxu0 0
        %1973 = vmatpush1.bf16.msra.mxu0 0
        %1974 = vmatprep.subr.bf16.mxu0 0
        %1975 = vmatpush1.bf16.msra.mxu0 0
        %1976 = vmatprep.subr.bf16.mxu0 0
        %1977 = vmatpush1.bf16.msra.mxu0 0
        %1978 = vmatprep.subr.bf16.mxu0 0
        %1979 = vmatpush1.bf16.msra.mxu0 0
        %1980 = vmatprep.subr.bf16.mxu0 0
        %1981 = vmatpush1.bf16.msra.mxu0 0
        %1982 = vmatprep.subr.bf16.mxu0 0
        %1983 = vmatpush1.bf16.msra.mxu0 0
        %1984 = vmatprep.subr.bf16.mxu0 0
        %1985 = vmatpush1.bf16.msra.mxu0 0
        %1986 = vmatprep.mubr.bf16.mxu0 0
        %1987 = vmatmul.mubr.bf16.gmra.mrb[0].mxu0 %v1949
        %v1988 = vpop.f32.mrb[0].mxu0
        %v1989 = vadd.f32 0.0, %v1988
        %v1990 = vpop.f32.mrb[0].mxu0
        %v1991 = vpop.f32.mrb[0].mxu0
        %v1992 = vpop.f32.mrb[0].mxu0
        %1993 = vdwg.mxu0
        %v1994 = vpack.c.bf16 %v1989, %v1989
        %v1996 = vunpack.c.l.b16 %v1994
        %v1997 = vpack.c.b16 %v1996, %v1996
        %1998 = vrot.lane.b32.xlu0 %v1997, 16
        %v1999 = vpop.permute.xlu0 %1998
        %2001 = vst.msk [vmem:[%s1872] sm:$0xf] %vm1057, %v1999
        %v2002 = vld [vmem:[%s1872] sm:$0xf]
        %v2003 = vld [vmem:[%s658] sm:$0x1]
        %v2005 = vlaneseq
        %v2006 = vshrl.u32 %v2005, 7
        %v2007 = vsub.s32 0, %v2006
        %v2008 = vrot.slane %v2003, %v2007
        %v2011 = vsel %vm761, %v2002, 0
        %2013 = vmatprep.subr.bf16.mxu0 0
        %2014 = vmatpush1.bf16.msra.mxu0 %v1075
        %2015 = vmatprep.subr.bf16.mxu0 0
        %2016 = vmatpush1.bf16.msra.mxu0 %v1076
        %2017 = vmatprep.subr.bf16.mxu0 0
        %2018 = vmatpush1.bf16.msra.mxu0 0
        %2019 = vmatprep.subr.bf16.mxu0 0
        %2020 = vmatpush1.bf16.msra.mxu0 0
        %2021 = vmatprep.subr.bf16.mxu0 0
        %2022 = vmatpush1.bf16.msra.mxu0 0
        %2023 = vmatprep.subr.bf16.mxu0 0
        %2024 = vmatpush1.bf16.msra.mxu0 0
        %2025 = vmatprep.subr.bf16.mxu0 0
        %2026 = vmatpush1.bf16.msra.mxu0 0
        %2027 = vmatprep.subr.bf16.mxu0 0
        %2028 = vmatpush1.bf16.msra.mxu0 0
        %2029 = vmatprep.subr.bf16.mxu0 0
        %2030 = vmatpush1.bf16.msra.mxu0 0
        %2031 = vmatprep.subr.bf16.mxu0 0
        %2032 = vmatpush1.bf16.msra.mxu0 0
        %2033 = vmatprep.subr.bf16.mxu0 0
        %2034 = vmatpush1.bf16.msra.mxu0 0
        %2035 = vmatprep.subr.bf16.mxu0 0
        %2036 = vmatpush1.bf16.msra.mxu0 0
        %2037 = vmatprep.subr.bf16.mxu0 0
        %2038 = vmatpush1.bf16.msra.mxu0 0
        %2039 = vmatprep.subr.bf16.mxu0 0
        %2040 = vmatpush1.bf16.msra.mxu0 0
        %2041 = vmatprep.subr.bf16.mxu0 0
        %2042 = vmatpush1.bf16.msra.mxu0 0
        %2043 = vmatprep.subr.bf16.mxu0 0
        %2044 = vmatpush1.bf16.msra.mxu0 0
        %2045 = vmatprep.mubr.bf16.mxu0 0
        %2046 = vmatmul.mubr.bf16.gmra.mrb[0].mxu0 %v2011
        %v2047 = vpop.f32.mrb[0].mxu0
        %v2048 = vadd.f32 %v2008, %v2047
        %v2049 = vpop.f32.mrb[0].mxu0
        %v2050 = vpop.f32.mrb[0].mxu0
        %v2051 = vpop.f32.mrb[0].mxu0
        %2052 = vdwg.mxu0
        %v2053 = vsel %vm761, %v2048, 0.0
        %2054 = vadd.xlane.f32.xlu0 %v2053
        %v2055 = vpop.xlane.xlu0 %2054
        %v2056 = vmul.f32 %v2055, %v1125
        %v2057 = vsub.f32 %v2048, %v2056
        %v2058 = vmul.f32 %v2057, %v2057
        %v2059 = vsel %vm761, %v2058, 0.0
        %2060 = vadd.xlane.f32.xlu0 %v2059
        %v2061 = vpop.xlane.xlu0 %2060
        %v2062 = vmul.f32 %v2061, %v1125
        %v2063 = vadd.f32 %v2062, 1e-05
        %v2064 = vrsqrt.pop %v2063
        %v2065 = vmul.f32 %v2057, %v2064
        %v2066 = vld [vmem:[%s661] sm:$0x1]
        %v2068 = vlaneseq
        %v2069 = vshrl.u32 %v2068, 7
        %v2070 = vsub.s32 0, %v2069
        %v2071 = vrot.slane %v2066, %v2070
        %v2073 = vmul.f32 %v2065, %v2071
        %v2074 = vld [vmem:[%s664] sm:$0x1]
        %v2076 = vlaneseq
        %v2077 = vshrl.u32 %v2076, 7
        %v2078 = vsub.s32 0, %v2077
        %v2079 = vrot.slane %v2074, %v2078
        %v2081 = vadd.f32 %v2073, %v2079
        %v2082 = vadd.f32 %v1699, %v2081
        %v2083 = vpack.c.bf16 %v2082, %v2082
        %v2085 = vunpack.c.l.b16 %v2083
        %v2086 = vpack.c.b16 %v2085, %v2085
        %v2088 = vshrl.u32 %v2086, 16
        %v2090 = vrot.slane %v2088, 7
        %v2091 = vshll.u32 %v2086, 16
        %v2093 = vor.u32 %v2090, %v2091
        %v2094 = vrot.slane %v2090, 4
        %s2097 = scalar_lea.vmem [#allocation3], 8
        %v2098 = vld [vmem:[%s2097] sm:$0xf]
        %v2099 = vsel %vm1169, %v2093, %v2098
        %2100 = vst [vmem:[%s2097] sm:$0xf] %v2099
        %v2101 = vld [vmem:[%s2097 + $0x4] sm:$0x1]
        %v2102 = vsel %vm1175, %v2094, %v2101
        %2103 = vst [vmem:[%s2097 + $0x4] sm:$0x1] %v2102
        %v2104 = vld [vmem:[%s2097] sm:$0xf]
        %v2105 = vld [vmem:[%s669] sm:$0xf]
        %v2106 = vld [vmem:[%s669 + $0x4] sm:$0xf]
        %v2107 = vld [vmem:[%s669 + $0x8] sm:$0xf]
        %v2108 = vld [vmem:[%s669 + $0xc] sm:$0xf]
        %v2109 = vld [vmem:[%s2097 + $0x4] sm:$0x1]
        %v2110 = vld [vmem:[%s1185] sm:$0xf]
        %v2111 = vld [vmem:[%s1185 + $0x4] sm:$0xf]
        %v2112 = vld [vmem:[%s1185 + $0x8] sm:$0xf]
        %v2113 = vld [vmem:[%s1185 + $0xc] sm:$0xf]
        %v2116 = vunpack.c.l.b16 %v2104
        %v2117 = vunpack.c.l.b16 %v2109
        %v2118 = vpack.c.b16 %v2117, %v2116
        %v2120 = vshrl.u32 %v2118, 16
        %v2122 = vshll.u32 %v2118, 16
        %v2124 = vrot.slane %v2122, 1
        %v2125 = vor.u32 %v2120, %v2124
        %v2130 = vunpack.c.l.b16 %v2110
        %v2131 = vunpack.c.l.b16 %v2111
        %v2132 = vunpack.c.l.b16 %v2112
        %v2133 = vunpack.c.l.b16 %v2113
        %v2134 = vpack.c.b16 %v2131, %v2130
        %v2135 = vpack.c.b16 %v2133, %v2132
        %v2139 = vsel %vm761, %v2125, 0
        %2141 = vmatprep.subr.bf16.mxu0 0
        %2142 = vmatpush1.bf16.msra.mxu0 %v2134
        %2143 = vmatprep.subr.bf16.mxu0 0
        %2144 = vmatpush1.bf16.msra.mxu0 %v2135
        %2145 = vmatprep.subr.bf16.mxu0 0
        %2146 = vmatpush1.bf16.msra.mxu0 0
        %2147 = vmatprep.subr.bf16.mxu0 0
        %2148 = vmatpush1.bf16.msra.mxu0 0
        %2149 = vmatprep.subr.bf16.mxu0 0
        %2150 = vmatpush1.bf16.msra.mxu0 0
        %2151 = vmatprep.subr.bf16.mxu0 0
        %2152 = vmatpush1.bf16.msra.mxu0 0
        %2153 = vmatprep.subr.bf16.mxu0 0
        %2154 = vmatpush1.bf16.msra.mxu0 0
        %2155 = vmatprep.subr.bf16.mxu0 0
        %2156 = vmatpush1.bf16.msra.mxu0 0
        %2157 = vmatprep.subr.bf16.mxu0 0
        %2158 = vmatpush1.bf16.msra.mxu0 0
        %2159 = vmatprep.subr.bf16.mxu0 0
        %2160 = vmatpush1.bf16.msra.mxu0 0
        %2161 = vmatprep.subr.bf16.mxu0 0
        %2162 = vmatpush1.bf16.msra.mxu0 0
        %2163 = vmatprep.subr.bf16.mxu0 0
        %2164 = vmatpush1.bf16.msra.mxu0 0
        %2165 = vmatprep.subr.bf16.mxu0 0
        %2166 = vmatpush1.bf16.msra.mxu0 0
        %2167 = vmatprep.subr.bf16.mxu0 0
        %2168 = vmatpush1.bf16.msra.mxu0 0
        %2169 = vmatprep.subr.bf16.mxu0 0
        %2170 = vmatpush1.bf16.msra.mxu0 0
        %2171 = vmatprep.subr.bf16.mxu0 0
        %2172 = vmatpush1.bf16.msra.mxu0 0
        %2173 = vmatprep.mubr.bf16.mxu0 0
        %2174 = vmatmul.mubr.bf16.gmra.mrb[0].mxu0 %v2139
        %v2175 = vpop.f32.mrb[0].mxu0
        %v2176 = vadd.f32 0.0, %v2175
        %v2177 = vpop.f32.mrb[0].mxu0
        %v2178 = vpop.f32.mrb[0].mxu0
        %v2179 = vpop.f32.mrb[0].mxu0
        %2180 = vdwg.mxu0
        %v2185 = vunpack.c.l.b16 %v2105
        %v2186 = vunpack.c.l.b16 %v2106
        %v2187 = vunpack.c.l.b16 %v2107
        %v2188 = vunpack.c.l.b16 %v2108
        %v2189 = vpack.c.b16 %v2186, %v2185
        %v2190 = vpack.c.b16 %v2188, %v2187
        %v2194 = vsel %vm761, %v2104, 0
        %2196 = vmatprep.subr.bf16.mxu0 0
        %2197 = vmatpush1.bf16.msra.mxu0 %v2189
        %2198 = vmatprep.subr.bf16.mxu0 0
        %2199 = vmatpush1.bf16.msra.mxu0 %v2190
        %2200 = vmatprep.subr.bf16.mxu0 0
        %2201 = vmatpush1.bf16.msra.mxu0 0
        %2202 = vmatprep.subr.bf16.mxu0 0
        %2203 = vmatpush1.bf16.msra.mxu0 0
        %2204 = vmatprep.subr.bf16.mxu0 0
        %2205 = vmatpush1.bf16.msra.mxu0 0
        %2206 = vmatprep.subr.bf16.mxu0 0
        %2207 = vmatpush1.bf16.msra.mxu0 0
        %2208 = vmatprep.subr.bf16.mxu0 0
        %2209 = vmatpush1.bf16.msra.mxu0 0
        %2210 = vmatprep.subr.bf16.mxu0 0
        %2211 = vmatpush1.bf16.msra.mxu0 0
        %2212 = vmatprep.subr.bf16.mxu0 0
        %2213 = vmatpush1.bf16.msra.mxu0 0
        %2214 = vmatprep.subr.bf16.mxu0 0
        %2215 = vmatpush1.bf16.msra.mxu0 0
        %2216 = vmatprep.subr.bf16.mxu0 0
        %2217 = vmatpush1.bf16.msra.mxu0 0
        %2218 = vmatprep.subr.bf16.mxu0 0
        %2219 = vmatpush1.bf16.msra.mxu0 0
        %2220 = vmatprep.subr.bf16.mxu0 0
        %2221 = vmatpush1.bf16.msra.mxu0 0
        %2222 = vmatprep.subr.bf16.mxu0 0
        %2223 = vmatpush1.bf16.msra.mxu0 0
        %2224 = vmatprep.subr.bf16.mxu0 0
        %2225 = vmatpush1.bf16.msra.mxu0 0
        %2226 = vmatprep.subr.bf16.mxu0 0
        %2227 = vmatpush1.bf16.msra.mxu0 0
        %2228 = vmatprep.mubr.bf16.mxu0 0
        %2229 = vmatmul.mubr.bf16.gmra.mrb[0].mxu0 %v2194
        %v2230 = vpop.f32.mrb[0].mxu0
        %v2231 = vadd.f32 %v2176, %v2230
        %v2232 = vpop.f32.mrb[0].mxu0
        %v2233 = vpop.f32.mrb[0].mxu0
        %v2234 = vpop.f32.mrb[0].mxu0
        %2235 = vdwg.mxu0
        %v2236 = vld [vmem:[%s2097] sm:$0xe]
        %v2237 = vld [vmem:[%s1313] sm:$0xf]
        %v2238 = vld [vmem:[%s1313 + $0x4] sm:$0xf]
        %v2239 = vld [vmem:[%s1313 + $0x8] sm:$0xf]
        %v2240 = vld [vmem:[%s1313 + $0xc] sm:$0xf]
        %v2242 = vunpack.c.l.b16 %v2236
        %v2243 = vpack.c.b16 %v2117, %v2242
        %v2244 = vrot.slane %v2243, 1
        %v2249 = vunpack.c.l.b16 %v2237
        %v2250 = vunpack.c.l.b16 %v2238
        %v2251 = vunpack.c.l.b16 %v2239
        %v2252 = vunpack.c.l.b16 %v2240
        %v2253 = vpack.c.b16 %v2250, %v2249
        %v2254 = vpack.c.b16 %v2252, %v2251
        %v2258 = vsel %vm761, %v2244, 0
        %2260 = vmatprep.subr.bf16.mxu0 0
        %2261 = vmatpush1.bf16.msra.mxu0 %v2253
        %2262 = vmatprep.subr.bf16.mxu0 0
        %2263 = vmatpush1.bf16.msra.mxu0 %v2254
        %2264 = vmatprep.subr.bf16.mxu0 0
        %2265 = vmatpush1.bf16.msra.mxu0 0
        %2266 = vmatprep.subr.bf16.mxu0 0
        %2267 = vmatpush1.bf16.msra.mxu0 0
        %2268 = vmatprep.subr.bf16.mxu0 0
        %2269 = vmatpush1.bf16.msra.mxu0 0
        %2270 = vmatprep.subr.bf16.mxu0 0
        %2271 = vmatpush1.bf16.msra.mxu0 0
        %2272 = vmatprep.subr.bf16.mxu0 0
        %2273 = vmatpush1.bf16.msra.mxu0 0
        %2274 = vmatprep.subr.bf16.mxu0 0
        %2275 = vmatpush1.bf16.msra.mxu0 0
        %2276 = vmatprep.subr.bf16.mxu0 0
        %2277 = vmatpush1.bf16.msra.mxu0 0
        %2278 = vmatprep.subr.bf16.mxu0 0
        %2279 = vmatpush1.bf16.msra.mxu0 0
        %2280 = vmatprep.subr.bf16.mxu0 0
        %2281 = vmatpush1.bf16.msra.mxu0 0
        %2282 = vmatprep.subr.bf16.mxu0 0
        %2283 = vmatpush1.bf16.msra.mxu0 0
        %2284 = vmatprep.subr.bf16.mxu0 0
        %2285 = vmatpush1.bf16.msra.mxu0 0
        %2286 = vmatprep.subr.bf16.mxu0 0
        %2287 = vmatpush1.bf16.msra.mxu0 0
        %2288 = vmatprep.subr.bf16.mxu0 0
        %2289 = vmatpush1.bf16.msra.mxu0 0
        %2290 = vmatprep.subr.bf16.mxu0 0
        %2291 = vmatpush1.bf16.msra.mxu0 0
        %2292 = vmatprep.mubr.bf16.mxu0 0
        %2293 = vmatmul.mubr.bf16.gmra.mrb[0].mxu0 %v2258
        %v2294 = vpop.f32.mrb[0].mxu0
        %v2295 = vadd.f32 0.0, %v2294
        %v2296 = vpop.f32.mrb[0].mxu0
        %v2297 = vpop.f32.mrb[0].mxu0
        %v2298 = vpop.f32.mrb[0].mxu0
        %2299 = vdwg.mxu0
        %v2300 = vadd.f32 %v2231, %v2295
        %v2301 = vld [vmem:[%s672] sm:$0x1]
        %v2303 = vlaneseq
        %v2304 = vshrl.u32 %v2303, 7
        %v2305 = vsub.s32 0, %v2304
        %v2306 = vrot.slane %v2301, %v2305
        %v2308 = vadd.f32 %v2300, %v2306
        %v2309 = vmax.f32 %v2308, 0.0
        %v2310 = vpack.c.bf16 %v2309, %v2309
        %v2312 = vunpack.c.l.b16 %v2310
        %v2313 = vpack.c.b16 %v2312, %v2312
        %v2315 = vshrl.u32 %v2313, 16
        %v2317 = vrot.slane %v2315, 7
        %v2318 = vshll.u32 %v2313, 16
        %v2320 = vor.u32 %v2317, %v2318
        %v2321 = vrot.slane %v2317, 4
        %s2324 = scalar_lea.vmem [#allocation4], 8
        %v2325 = vld [vmem:[%s2324] sm:$0xf]
        %v2326 = vsel %vm1402, %v2320, %v2325
        %2327 = vst [vmem:[%s2324] sm:$0xf] %v2326
        %v2328 = vld [vmem:[%s2324 + $0x4] sm:$0x1]
        %v2329 = vsel %vm1407, %v2321, %v2328
        %2330 = vst [vmem:[%s2324 + $0x4] sm:$0x1] %v2329
        %v2331 = vld [vmem:[%s2324] sm:$0xf]
        %v2332 = vld [vmem:[%s677] sm:$0xf]
        %v2333 = vld [vmem:[%s677 + $0x4] sm:$0xf]
        %v2334 = vld [vmem:[%s677 + $0x8] sm:$0xf]
        %v2335 = vld [vmem:[%s677 + $0xc] sm:$0xf]
        %v2336 = vld [vmem:[%s677 + $0x10] sm:$0xf]
        %v2337 = vld [vmem:[%s677 + $0x14] sm:$0xf]
        %v2338 = vld [vmem:[%s677 + $0x18] sm:$0xf]
        %v2339 = vld [vmem:[%s677 + $0x1c] sm:$0xf]
        %v2340 = vld [vmem:[%s2324 + $0x4] sm:$0x1]
        %v2341 = vld [vmem:[%s1421] sm:$0xf]
        %v2342 = vld [vmem:[%s1421 + $0x4] sm:$0xf]
        %v2343 = vld [vmem:[%s1421 + $0x8] sm:$0xf]
        %v2344 = vld [vmem:[%s1421 + $0xc] sm:$0xf]
        %v2345 = vld [vmem:[%s1421 + $0x10] sm:$0xf]
        %v2346 = vld [vmem:[%s1421 + $0x14] sm:$0xf]
        %v2347 = vld [vmem:[%s1421 + $0x18] sm:$0xf]
        %v2348 = vld [vmem:[%s1421 + $0x1c] sm:$0xf]
        %v2351 = vunpack.c.l.b16 %v2331
        %v2352 = vunpack.c.l.b16 %v2340
        %v2353 = vpack.c.b16 %v2352, %v2351
        %v2355 = vshrl.u32 %v2353, 16
        %v2357 = vshll.u32 %v2353, 16
        %v2359 = vrot.slane %v2357, 1
        %v2360 = vor.u32 %v2355, %v2359
        %v2369 = vunpack.c.l.b16 %v2341
        %v2370 = vunpack.c.l.b16 %v2342
        %v2371 = vunpack.c.l.b16 %v2343
        %v2372 = vunpack.c.l.b16 %v2344
        %v2373 = vunpack.c.l.b16 %v2345
        %v2374 = vunpack.c.l.b16 %v2346
        %v2375 = vunpack.c.l.b16 %v2347
        %v2376 = vunpack.c.l.b16 %v2348
        %v2377 = vpack.c.b16 %v2370, %v2369
        %v2378 = vpack.c.b16 %v2372, %v2371
        %v2379 = vpack.c.b16 %v2374, %v2373
        %v2380 = vpack.c.b16 %v2376, %v2375
        %v2386 = vsel %vm1466, %v2360, 0
        %2388 = vmatprep.subr.bf16.mxu0 0
        %2389 = vmatpush1.bf16.msra.mxu0 %v2377
        %2390 = vmatprep.subr.bf16.mxu0 0
        %2391 = vmatpush1.bf16.msra.mxu0 %v2378
        %2392 = vmatprep.subr.bf16.mxu0 0
        %2393 = vmatpush1.bf16.msra.mxu0 %v2379
        %2394 = vmatprep.subr.bf16.mxu0 0
        %2395 = vmatpush1.bf16.msra.mxu0 %v2380
        %2396 = vmatprep.subr.bf16.mxu0 0
        %2397 = vmatpush1.bf16.msra.mxu0 0
        %2398 = vmatprep.subr.bf16.mxu0 0
        %2399 = vmatpush1.bf16.msra.mxu0 0
        %2400 = vmatprep.subr.bf16.mxu0 0
        %2401 = vmatpush1.bf16.msra.mxu0 0
        %2402 = vmatprep.subr.bf16.mxu0 0
        %2403 = vmatpush1.bf16.msra.mxu0 0
        %2404 = vmatprep.subr.bf16.mxu0 0
        %2405 = vmatpush1.bf16.msra.mxu0 0
        %2406 = vmatprep.subr.bf16.mxu0 0
        %2407 = vmatpush1.bf16.msra.mxu0 0
        %2408 = vmatprep.subr.bf16.mxu0 0
        %2409 = vmatpush1.bf16.msra.mxu0 0
        %2410 = vmatprep.subr.bf16.mxu0 0
        %2411 = vmatpush1.bf16.msra.mxu0 0
        %2412 = vmatprep.subr.bf16.mxu0 0
        %2413 = vmatpush1.bf16.msra.mxu0 0
        %2414 = vmatprep.subr.bf16.mxu0 0
        %2415 = vmatpush1.bf16.msra.mxu0 0
        %2416 = vmatprep.subr.bf16.mxu0 0
        %2417 = vmatpush1.bf16.msra.mxu0 0
        %2418 = vmatprep.subr.bf16.mxu0 0
        %2419 = vmatpush1.bf16.msra.mxu0 0
        %2420 = vmatprep.mubr.bf16.mxu0 0
        %2421 = vmatmul.mubr.bf16.gmra.mrb[0].mxu0 %v2386
        %v2422 = vpop.f32.mrb[0].mxu0
        %v2423 = vadd.f32 0.0, %v2422
        %v2424 = vpop.f32.mrb[0].mxu0
        %v2425 = vpop.f32.mrb[0].mxu0
        %v2426 = vpop.f32.mrb[0].mxu0
        %2427 = vdwg.mxu0
        %v2436 = vunpack.c.l.b16 %v2332
        %v2437 = vunpack.c.l.b16 %v2333
        %v2438 = vunpack.c.l.b16 %v2334
        %v2439 = vunpack.c.l.b16 %v2335
        %v2440 = vunpack.c.l.b16 %v2336
        %v2441 = vunpack.c.l.b16 %v2337
        %v2442 = vunpack.c.l.b16 %v2338
        %v2443 = vunpack.c.l.b16 %v2339
        %v2444 = vpack.c.b16 %v2437, %v2436
        %v2445 = vpack.c.b16 %v2439, %v2438
        %v2446 = vpack.c.b16 %v2441, %v2440
        %v2447 = vpack.c.b16 %v2443, %v2442
        %v2453 = vsel %vm1466, %v2331, 0
        %2455 = vmatprep.subr.bf16.mxu0 0
        %2456 = vmatpush1.bf16.msra.mxu0 %v2444
        %2457 = vmatprep.subr.bf16.mxu0 0
        %2458 = vmatpush1.bf16.msra.mxu0 %v2445
        %2459 = vmatprep.subr.bf16.mxu0 0
        %2460 = vmatpush1.bf16.msra.mxu0 %v2446
        %2461 = vmatprep.subr.bf16.mxu0 0
        %2462 = vmatpush1.bf16.msra.mxu0 %v2447
        %2463 = vmatprep.subr.bf16.mxu0 0
        %2464 = vmatpush1.bf16.msra.mxu0 0
        %2465 = vmatprep.subr.bf16.mxu0 0
        %2466 = vmatpush1.bf16.msra.mxu0 0
        %2467 = vmatprep.subr.bf16.mxu0 0
        %2468 = vmatpush1.bf16.msra.mxu0 0
        %2469 = vmatprep.subr.bf16.mxu0 0
        %2470 = vmatpush1.bf16.msra.mxu0 0
        %2471 = vmatprep.subr.bf16.mxu0 0
        %2472 = vmatpush1.bf16.msra.mxu0 0
        %2473 = vmatprep.subr.bf16.mxu0 0
        %2474 = vmatpush1.bf16.msra.mxu0 0
        %2475 = vmatprep.subr.bf16.mxu0 0
        %2476 = vmatpush1.bf16.msra.mxu0 0
        %2477 = vmatprep.subr.bf16.mxu0 0
        %2478 = vmatpush1.bf16.msra.mxu0 0
        %2479 = vmatprep.subr.bf16.mxu0 0
        %2480 = vmatpush1.bf16.msra.mxu0 0
        %2481 = vmatprep.subr.bf16.mxu0 0
        %2482 = vmatpush1.bf16.msra.mxu0 0
        %2483 = vmatprep.subr.bf16.mxu0 0
        %2484 = vmatpush1.bf16.msra.mxu0 0
        %2485 = vmatprep.subr.bf16.mxu0 0
        %2486 = vmatpush1.bf16.msra.mxu0 0
        %2487 = vmatprep.mubr.bf16.mxu0 0
        %2488 = vmatmul.mubr.bf16.gmra.mrb[0].mxu0 %v2453
        %v2489 = vpop.f32.mrb[0].mxu0
        %v2490 = vadd.f32 %v2423, %v2489
        %v2491 = vpop.f32.mrb[0].mxu0
        %v2492 = vpop.f32.mrb[0].mxu0
        %v2493 = vpop.f32.mrb[0].mxu0
        %2494 = vdwg.mxu0
        %v2495 = vld [vmem:[%s2324] sm:$0xe]
        %v2496 = vld [vmem:[%s1578] sm:$0xf]
        %v2497 = vld [vmem:[%s1578 + $0x4] sm:$0xf]
        %v2498 = vld [vmem:[%s1578 + $0x8] sm:$0xf]
        %v2499 = vld [vmem:[%s1578 + $0xc] sm:$0xf]
        %v2500 = vld [vmem:[%s1578 + $0x10] sm:$0xf]
        %v2501 = vld [vmem:[%s1578 + $0x14] sm:$0xf]
        %v2502 = vld [vmem:[%s1578 + $0x18] sm:$0xf]
        %v2503 = vld [vmem:[%s1578 + $0x1c] sm:$0xf]
        %v2505 = vunpack.c.l.b16 %v2495
        %v2506 = vpack.c.b16 %v2352, %v2505
        %v2507 = vrot.slane %v2506, 1
        %v2516 = vunpack.c.l.b16 %v2496
        %v2517 = vunpack.c.l.b16 %v2497
        %v2518 = vunpack.c.l.b16 %v2498
        %v2519 = vunpack.c.l.b16 %v2499
        %v2520 = vunpack.c.l.b16 %v2500
        %v2521 = vunpack.c.l.b16 %v2501
        %v2522 = vunpack.c.l.b16 %v2502
        %v2523 = vunpack.c.l.b16 %v2503
        %v2524 = vpack.c.b16 %v2517, %v2516
        %v2525 = vpack.c.b16 %v2519, %v2518
        %v2526 = vpack.c.b16 %v2521, %v2520
        %v2527 = vpack.c.b16 %v2523, %v2522
        %v2533 = vsel %vm1466, %v2507, 0
        %2535 = vmatprep.subr.bf16.mxu0 0
        %2536 = vmatpush1.bf16.msra.mxu0 %v2524
        %2537 = vmatprep.subr.bf16.mxu0 0
        %2538 = vmatpush1.bf16.msra.mxu0 %v2525
        %2539 = vmatprep.subr.bf16.mxu0 0
        %2540 = vmatpush1.bf16.msra.mxu0 %v2526
        %2541 = vmatprep.subr.bf16.mxu0 0
        %2542 = vmatpush1.bf16.msra.mxu0 %v2527
        %2543 = vmatprep.subr.bf16.mxu0 0
        %2544 = vmatpush1.bf16.msra.mxu0 0
        %2545 = vmatprep.subr.bf16.mxu0 0
        %2546 = vmatpush1.bf16.msra.mxu0 0
        %2547 = vmatprep.subr.bf16.mxu0 0
        %2548 = vmatpush1.bf16.msra.mxu0 0
        %2549 = vmatprep.subr.bf16.mxu0 0
        %2550 = vmatpush1.bf16.msra.mxu0 0
        %2551 = vmatprep.subr.bf16.mxu0 0
        %2552 = vmatpush1.bf16.msra.mxu0 0
        %2553 = vmatprep.subr.bf16.mxu0 0
        %2554 = vmatpush1.bf16.msra.mxu0 0
        %2555 = vmatprep.subr.bf16.mxu0 0
        %2556 = vmatpush1.bf16.msra.mxu0 0
        %2557 = vmatprep.subr.bf16.mxu0 0
        %2558 = vmatpush1.bf16.msra.mxu0 0
        %2559 = vmatprep.subr.bf16.mxu0 0
        %2560 = vmatpush1.bf16.msra.mxu0 0
        %2561 = vmatprep.subr.bf16.mxu0 0
        %2562 = vmatpush1.bf16.msra.mxu0 0
        %2563 = vmatprep.subr.bf16.mxu0 0
        %2564 = vmatpush1.bf16.msra.mxu0 0
        %2565 = vmatprep.subr.bf16.mxu0 0
        %2566 = vmatpush1.bf16.msra.mxu0 0
        %2567 = vmatprep.mubr.bf16.mxu0 0
        %2568 = vmatmul.mubr.bf16.gmra.mrb[0].mxu0 %v2533
        %v2569 = vpop.f32.mrb[0].mxu0
        %v2570 = vadd.f32 0.0, %v2569
        %v2571 = vpop.f32.mrb[0].mxu0
        %v2572 = vpop.f32.mrb[0].mxu0
        %v2573 = vpop.f32.mrb[0].mxu0
        %2574 = vdwg.mxu0
        %v2575 = vadd.f32 %v2490, %v2570
        %v2576 = vld [vmem:[%s680] sm:$0x1]
        %v2578 = vlaneseq
        %v2579 = vshrl.u32 %v2578, 7
        %v2580 = vsub.s32 0, %v2579
        %v2581 = vrot.slane %v2576, %v2580
        %v2583 = vadd.f32 %v2575, %v2581
        %v2584 = vsel %vm761, %v2583, 0.0
        %2585 = vadd.xlane.f32.xlu0 %v2584
        %v2586 = vpop.xlane.xlu0 %2585
        %v2587 = vmul.f32 %v2586, %v1125
        %v2588 = vsub.f32 %v2583, %v2587
        %v2589 = vmul.f32 %v2588, %v2588
        %v2590 = vsel %vm761, %v2589, 0.0
        %2591 = vadd.xlane.f32.xlu0 %v2590
        %v2592 = vpop.xlane.xlu0 %2591
        %v2593 = vmul.f32 %v2592, %v1125
        %v2594 = vadd.f32 %v2593, 1e-05
        %v2595 = vrsqrt.pop %v2594
        %v2596 = vmul.f32 %v2588, %v2595
        %v2597 = vld [vmem:[%s683] sm:$0x1]
        %v2599 = vlaneseq
        %v2600 = vshrl.u32 %v2599, 7
        %v2601 = vsub.s32 0, %v2600
        %v2602 = vrot.slane %v2597, %v2601
        %v2604 = vmul.f32 %v2596, %v2602
        %v2605 = vld [vmem:[%s686] sm:$0x1]
        %v2607 = vlaneseq
        %v2608 = vshrl.u32 %v2607, 7
        %v2609 = vsub.s32 0, %v2608
        %v2610 = vrot.slane %v2605, %v2609
        %v2612 = vadd.f32 %v2604, %v2610
        %v2613 = vadd.f32 %v2082, %v2612
        %2614 = vst.msk [vmem:[%s1698] sm:$0xff] %vm761, %v2613
        // Predicated region
        $region81: #{tpu_custom_call.1} parent=75 // pred_check
          %p2615 = pneg %p420
        $region82: #{tpu_custom_call.1} parent=75 // pred_check_branch
          %2617 = sbr.rel (%p2615) target = $region84
        $region83: #{tpu_custom_call.1} parent=75 // pred_region
          %s2618 = smul.u32 2, %s30
          %s2620 = ssub.s32 256, 256
          %2621 = vsyncadd [#allocation6], %s2620
          %s2622 = smul.addr %s2618, 128
          %s2623 = scalar_lea.hbm %s14, %s2622
          %s2624 = sshll.u32 [#allocation5], 4
          %s2625 = int_to_ptr.vmem [resolvable:$true] %s2624
          %2630 = dma.vmem_to_hbm [thread:$0]  %s2625, 256, %s2623, [#allocation6], 128, 128, 8
        $region84: #{tpu_custom_call.1} parent=75 // pred_fallthru
          _
        // Predicated region
        $region85: #{tpu_custom_call.1} parent=75 // pred_check
          %p2631 = pneg %p420
        $region86: #{tpu_custom_call.1} parent=75 // pred_check_branch
          %2633 = sbr.rel (%p2631) target = $region88
        $region87: #{tpu_custom_call.1} parent=75 // pred_region
          %2634 = dma.done [#allocation6], 256
        $region88: #{tpu_custom_call.1} parent=75 // pred_fallthru
          _
      $region76: #{tpu_custom_call.1} parent=5 // pred_fallthru
        _
      %p2635 = scmp.le.s32.totalorder 2, %s21
      // Predicated region
      $region89: #{tpu_custom_call.1} parent=5 // pred_check
        %p2636 = pneg %p2635
      $region90: #{tpu_custom_call.1} parent=5 // pred_check_branch
        %2638 = sbr.rel (%p2636) target = $region92
      $region91: #{tpu_custom_call.1} parent=5 // pred_region
        %s2639 = ssub.s32 %s21, 2
      $region92: #{tpu_custom_call.1} parent=5 // pred_fallthru
        _
    $region6: #{tpu_custom_call.1} parent=1 // loop_footer
      %s25 = sadd.s32 1, %s21
    $region7: #{tpu_custom_call.1} parent=1 // loop_footer_branch
      %20 = sbr.rel target = $region3
    $region8: #{tpu_custom_call.1} parent=1 // loop_exit
      _
    %2640 = vsyncpa [#allocation6], 1
    %s2641 = scalar_lea.sflag [#allocation6], 1
    %2642 = vsyncpa %s2641, 1

</llo_original>
